<compile_context>
chip_gen: v6e
topology: v6e:2x2x1
jax: 0.10.0
libtpu: 0.0.40
codegen_flags: <defaults>
</compile_context>

<pallas_src>
import math
import functools

import jax
import jax.numpy as jnp
from jax import lax
from jax.experimental import pallas as pl
from jax.experimental.pallas import tpu as pltpu


# ----------------------------------------------------------------------------
# Pallas kernel: one GeometryAttentionLayer forward
# grid = (batch, L tiles, S tiles); S (keys) innermost, flash-style reduction.
# ----------------------------------------------------------------------------
def _geometry_attention_kernel(nhead, dim, inv_sqrt_d,
                               x_ref, xpe_ref, src_ref, spe_ref,
                               qv_ref, kb_ref,
                               wq_ref, wk_ref, wv_ref, wm_ref,
                               w1x_ref, w1m_ref, w2_ref,
                               g1_ref, b1_ref, g2_ref, b2_ref,
                               out_ref,
                               qh_s, m_s, l_s, acc_s):
    si = pl.program_id(2)
    bf16 = jnp.bfloat16

    def rowwise_linear(inp_bf16, w_ref):
        # y = inp @ W.T  (PyTorch Linear convention, W is [out, in]).
        # bf16 operands, f32 accumulation on the MXU.
        return lax.dot_general(inp_bf16, w_ref[...],
                               dimension_numbers=(((1,), (1,)), ((), ())),
                               preferred_element_type=jnp.float32)

    def split_heads(y):
        # [R, nhead*dim] f32 -> [nhead, R, dim] bf16 (stack along a new
        # leading/untiled axis -- no lane-axis concatenation).
        return jnp.stack(
            [y[:, h * dim:(h + 1) * dim] for h in range(nhead)], axis=0
        ).astype(bf16)

    # ---- new (b, l-tile): project Q once, reset the online-softmax state ----
    @pl.when(si == 0)
    def _init():
        q = (x_ref[0] + xpe_ref[0]).astype(bf16)                  # [Lt, D]
        qw = rowwise_linear(q, wq_ref) * inv_sqrt_d               # scale folded in
        qh_s[...] = split_heads(qw)                               # [H, Lt, d] bf16
        m_s[...] = jnp.full(m_s.shape, -1e30, jnp.float32)
        l_s[...] = jnp.zeros(l_s.shape, jnp.float32)
        acc_s[...] = jnp.zeros(acc_s.shape, jnp.float32)

    # ---- project K / V for this S tile --------------------------------------
    src = src_ref[0]                                              # [St, D]
    kin = (src + spe_ref[0]).astype(bf16)
    kh = split_heads(rowwise_linear(kin, wk_ref))                 # [H, St, d]
    vh = split_heads(rowwise_linear(src.astype(bf16), wv_ref))    # [H, St, d]

    # ---- scores, additive mask bias, online softmax update ------------------
    s = jnp.einsum("hld,hsd->hls", qh_s[...], kh,
                   preferred_element_type=jnp.float32)            # [H, Lt, St]
    # bias = -1e30 where (query valid) & (key invalid), else 0 (torch semantics)
    s = s + (qv_ref[0] * kb_ref[0])[None, :, :]

    m_prev = m_s[...]                                             # [H, Lt, 1]
    m_new = jnp.maximum(m_prev, jnp.max(s, axis=-1, keepdims=True))
    alpha = jnp.exp(m_prev - m_new)
    p = jnp.exp(s - m_new)                                        # [H, Lt, St]
    l_s[...] = alpha * l_s[...] + jnp.sum(p, axis=-1, keepdims=True)
    pv = jnp.einsum("hls,hsd->hld", p.astype(bf16), vh,
                    preferred_element_type=jnp.float32)           # [H, Lt, d]
    acc_s[...] = alpha * acc_s[...] + pv
    m_s[...] = m_new

    def layernorm(z, g_ref, b_ref):
        mu = jnp.mean(z, axis=-1, keepdims=True)
        var = jnp.mean(z * z, axis=-1, keepdims=True) - mu * mu   # one pass
        return (z - mu) * lax.rsqrt(var + 1e-5) * g_ref[...] + b_ref[...]

    # ---- last S tile: merge heads, norms, MLP, residual ----------------------
    @pl.when(si == pl.num_programs(2) - 1)
    def _finalize():
        o = acc_s[...] * pl.reciprocal(l_s[...], approx=True)     # [H, Lt, d]
        # merge: sum_h o_h @ Wm_h.T  (wm_ref pre-reshaped to [H, d, D])
        msg = jnp.sum(
            jnp.einsum("hld,hdm->hlm", o.astype(bf16), wm_ref[...],
                       preferred_element_type=jnp.float32),
            axis=0)                                               # [Lt, D]
        msg = layernorm(msg, g1_ref, b1_ref)

        # MLP on concat([x, msg]) done as split-weight matmuls (no lane concat)
        x = x_ref[0]
        h1 = rowwise_linear(x.astype(bf16), w1x_ref) + \
             rowwise_linear(msg.astype(bf16), w1m_ref)            # [Lt, 2D]
        h1 = jnp.maximum(h1, 0.0)
        msg2 = rowwise_linear(h1.astype(bf16), w2_ref)            # [Lt, D]
        msg2 = layernorm(msg2, g2_ref, b2_ref)

        out_ref[0] = (x + msg2).astype(out_ref.dtype)


def geometry_attention_layer(p, nhead, x, source, x_pe, source_pe,
                             x_mask, source_mask, *, l_tile=256, s_tile=512):
    """One GeometryAttentionLayer forward (pe_type='sinusoidal')."""
    B, L, D = x.shape
    S = source.shape[1]
    dim = D // nhead
    lt, st = min(l_tile, L), min(s_tile, S)
    assert L % lt == 0 and S % st == 0
    nl, ns = L // lt, S // st

    bf16 = jnp.bfloat16
    inv_sqrt_d = 1.0 / math.sqrt(dim)

    # Weight preprocessing (host side, cheap): bf16 cast, merge weight
    # pre-reshaped to head-batched [H, d, D], MLP W1 split into its x / message
    # halves so the kernel never concatenates along the lane axis.
    wq = p["wq"].astype(bf16)
    wk = p["wk"].astype(bf16)
    wv = p["wv"].astype(bf16)
    wm_r = jnp.transpose(p["wm"].reshape(D, nhead, dim), (1, 2, 0)).astype(bf16)
    w1x = p["w1"][:, :D].astype(bf16)          # multiplies x
    w1m = p["w1"][:, D:].astype(bf16)          # multiplies message
    w2 = p["w2"].astype(bf16)

    # Mask -> additive-bias factors (lane/sublane friendly, no bools in kernel)
    qv = x_mask.astype(jnp.float32)[:, :, None]                        # [B, L, 1]
    kb = jnp.where(source_mask, 0.0, -1e30).astype(jnp.float32)[:, None, :]  # [B, 1, S]

    kernel = functools.partial(_geometry_attention_kernel, nhead, dim, inv_sqrt_d)

    in_specs = [
        pl.BlockSpec((1, lt, D), lambda b, li, si: (b, li, 0)),        # x
        pl.BlockSpec((1, lt, D), lambda b, li, si: (b, li, 0)),        # x_pe
        pl.BlockSpec((1, st, D), lambda b, li, si: (b, si, 0)),        # source
        pl.BlockSpec((1, st, D), lambda b, li, si: (b, si, 0)),        # source_pe
        pl.BlockSpec((1, lt, 1), lambda b, li, si: (b, li, 0)),        # query-valid
        pl.BlockSpec((1, 1, st), lambda b, li, si: (b, 0, si)),        # key bias
        pl.BlockSpec((D, D), lambda b, li, si: (0, 0)),                # Wq (scaled in-kernel)
        pl.BlockSpec((D, D), lambda b, li, si: (0, 0)),                # Wk
        pl.BlockSpec((D, D), lambda b, li, si: (0, 0)),                # Wv
        pl.BlockSpec((nhead, dim, D), lambda b, li, si: (0, 0, 0)),    # Wmerge [H,d,D]
        pl.BlockSpec((2 * D, D), lambda b, li, si: (0, 0)),            # W1 (x half)
        pl.BlockSpec((2 * D, D), lambda b, li, si: (0, 0)),            # W1 (msg half)
        pl.BlockSpec((D, 2 * D), lambda b, li, si: (0, 0)),            # W2
        pl.BlockSpec((1, D), lambda b, li, si: (0, 0)),                # norm1 gamma
        pl.BlockSpec((1, D), lambda b, li, si: (0, 0)),                # norm1 beta
        pl.BlockSpec((1, D), lambda b, li, si: (0, 0)),                # norm2 gamma
        pl.BlockSpec((1, D), lambda b, li, si: (0, 0)),                # norm2 beta
    ]
    # TODO(synk): on v7x, additionally single-buffer the (grid-invariant) weight
    # BlockSpecs to reclaim VMEM for larger attention tiles.
    scratch = [
        pltpu.VMEM((nhead, lt, dim), bf16),          # Q heads (pre-scaled)
        pltpu.VMEM((nhead, lt, 1), jnp.float32),     # running max
        pltpu.VMEM((nhead, lt, 1), jnp.float32),     # running denom
        pltpu.VMEM((nhead, lt, dim), jnp.float32),   # running numerator
    ]

    return pl.pallas_call(
        kernel,
        out_shape=jax.ShapeDtypeStruct((B, L, D), x.dtype),
        grid=(B, nl, ns),
        in_specs=in_specs,
        out_specs=pl.BlockSpec((1, lt, D), lambda b, li, si: (b, li, 0)),
        scratch_shapes=scratch,
        compiler_params=pltpu.CompilerParams(
            dimension_semantics=("parallel", "parallel", "arbitrary"),
            vmem_limit_bytes=32 * 1024 * 1024),
    )(x, x_pe, source, source_pe, qv, kb,
      wq, wk, wv, wm_r, w1x, w1m, w2,
      p["g1"], p["b1"], p["g2"], p["b2"])


# ----------------------------------------------------------------------------
# Glue: VolPE (sinusoidal), parameter init, layer sequencing
# ----------------------------------------------------------------------------
# TODO(synk): original VolPE / Matching / SoftProcrustesLayer sources were not
# provided; VolPE is implemented in its Lepard-style sinusoidal form and the
# 'positioning' layer type is not used in this config.
def vol_pe_sinusoidal(xyz, feature_dim, vol_origin, voxel_size):
    vox = (xyz - vol_origin) / voxel_size
    x_pos, y_pos, z_pos = vox[..., 0:1], vox[..., 1:2], vox[..., 2:3]
    d3 = feature_dim // 3
    div_term = jnp.exp(jnp.arange(0, d3, 2, dtype=jnp.float32) *
                       (-math.log(10000.0) / d3))[None, None, :]
    sinx, cosx = jnp.sin(x_pos * div_term), jnp.cos(x_pos * div_term)
    siny, cosy = jnp.sin(y_pos * div_term), jnp.cos(y_pos * div_term)
    sinz, cosz = jnp.sin(z_pos * div_term), jnp.cos(z_pos * div_term)
    return jnp.concatenate([sinx, cosx, siny, cosy, sinz, cosz], axis=-1)


def _xavier_uniform(key, shape):
    fan_out, fan_in = shape
    bound = math.sqrt(6.0 / (fan_in + fan_out))
    return jax.random.uniform(key, shape, jnp.float32, -bound, bound)


def init_layer_params(key, d_model):
    ks = jax.random.split(key, 6)
    return {
        "wq": _xavier_uniform(ks[0], (d_model, d_model)),
        "wk": _xavier_uniform(ks[1], (d_model, d_model)),
        "wv": _xavier_uniform(ks[2], (d_model, d_model)),
        "wm": _xavier_uniform(ks[3], (d_model, d_model)),
        "w1": _xavier_uniform(ks[4], (2 * d_model, 2 * d_model)),
        "w2": _xavier_uniform(ks[5], (d_model, 2 * d_model)),
        "g1": jnp.ones((1, d_model), jnp.float32),
        "b1": jnp.zeros((1, d_model), jnp.float32),
        "g2": jnp.ones((1, d_model), jnp.float32),
        "b2": jnp.zeros((1, d_model), jnp.float32),
    }


def repositioning_transformer(layers, config, src_feat, tgt_feat,
                              s_pcd, t_pcd, src_mask, tgt_mask, T=None):
    d_model = config["feature_dim"]
    nhead = config["n_head"]
    assert src_feat.shape[2] == d_model

    if T is not None:
        R, t = T
        src_pcd_wrapped = jnp.swapaxes(
            jnp.matmul(R, jnp.swapaxes(s_pcd, 1, 2)) + t, 1, 2)
    else:
        src_pcd_wrapped = s_pcd
    tgt_pcd_wrapped = t_pcd

    src_pe = vol_pe_sinusoidal(src_pcd_wrapped, d_model,
                               config["vol_origin"], config["voxel_size"])
    tgt_pe = vol_pe_sinusoidal(tgt_pcd_wrapped, d_model,
                               config["vol_origin"], config["voxel_size"])

    # entangled == False path
    for layer_p, name in zip(layers, config["layer_types"]):
        if name == "self":
            src_feat = geometry_attention_layer(layer_p, nhead, src_feat, src_feat,
                                                src_pe, src_pe, src_mask, src_mask)
            tgt_feat = geometry_attention_layer(layer_p, nhead, tgt_feat, tgt_feat,
                                                tgt_pe, tgt_pe, tgt_mask, tgt_mask)
        elif name == "cross":
            src_feat = geometry_attention_layer(layer_p, nhead, src_feat, tgt_feat,
                                                src_pe, tgt_pe, src_mask, tgt_mask)
            tgt_feat = geometry_attention_layer(layer_p, nhead, tgt_feat, src_feat,
                                                tgt_pe, src_pe, tgt_mask, src_mask)
        else:
            # TODO(synk): 'positioning' (Matching + SoftProcrustes) not provided.
            pass
    return src_feat, tgt_feat, src_pe, tgt_pe


# ----------------------------------------------------------------------------
# Pure-JAX reference mirroring the PyTorch forward at the kernel's MXU
# precision (bf16 matmul operands, f32 accumulation) for the correctness check.
# ----------------------------------------------------------------------------
def _mm(x, w):
    # x @ W.T with bf16 operands, f32 accumulation (same precision as kernel).
    return jnp.einsum("...i,oi->...o", x.astype(jnp.bfloat16),
                      w.astype(jnp.bfloat16),
                      preferred_element_type=jnp.float32)


def _geometry_attention_ref(p, nhead, x, source, x_pe, source_pe,
                            x_mask, source_mask):
    bs, L, D = x.shape
    dim = D // nhead
    q, k, v = x + x_pe, source + source_pe, source
    # 1/sqrt(dim) folded into qw (mathematically identical to torch's a/sqrt(d))
    qw = (_mm(q, p["wq"]) * (1.0 / math.sqrt(dim))).reshape(bs, -1, nhead, dim)
    kw = _mm(k, p["wk"]).reshape(bs, -1, nhead, dim)
    vw = _mm(v, p["wv"]).reshape(bs, -1, nhead, dim)
    a = jnp.einsum("nlhd,nshd->nlsh", qw.astype(jnp.bfloat16),
                   kw.astype(jnp.bfloat16), preferred_element_type=jnp.float32)
    mask = x_mask[:, :, None, None] & (~source_mask)[:, None, :, None]
    a = jnp.where(mask, -jnp.inf, a)
    a = jax.nn.softmax(a, axis=2)
    o = jnp.einsum("nlsh,nshd->nlhd", a.astype(jnp.bfloat16),
                   vw.astype(jnp.bfloat16),
                   preferred_element_type=jnp.float32).reshape(bs, -1, D)

    def ln(z, g, b):
        mu = jnp.mean(z, -1, keepdims=True)
        var = jnp.mean((z - mu) ** 2, -1, keepdims=True)
        return (z - mu) / jnp.sqrt(var + 1e-5) * g + b

    message = ln(_mm(o, p["wm"]), p["g1"][0], p["b1"][0])
    cat = jnp.concatenate([x, message], axis=2)
    message = _mm(jnp.maximum(_mm(cat, p["w1"]), 0.0), p["w2"])
    message = ln(message, p["g2"][0], p["b2"][0])
    return x + message


def _transformer_ref(layers, config, src_feat, tgt_feat, s_pcd, t_pcd,
                     src_mask, tgt_mask):
    d_model, nhead = config["feature_dim"], config["n_head"]
    src_pe = vol_pe_sinusoidal(s_pcd, d_model, config["vol_origin"],
                               config["voxel_size"])
    tgt_pe = vol_pe_sinusoidal(t_pcd, d_model, config["vol_origin"],
                               config["voxel_size"])
    for layer_p, name in zip(layers, config["layer_types"]):
        if name == "self":
            src_feat = _geometry_attention_ref(layer_p, nhead, src_feat, src_feat,
                                               src_pe, src_pe, src_mask, src_mask)
            tgt_feat = _geometry_attention_ref(layer_p, nhead, tgt_feat, tgt_feat,
                                               tgt_pe, tgt_pe, tgt_mask, tgt_mask)
        elif name == "cross":
            src_feat = _geometry_attention_ref(layer_p, nhead, src_feat, tgt_feat,
                                               src_pe, tgt_pe, src_mask, tgt_mask)
            tgt_feat = _geometry_attention_ref(layer_p, nhead, tgt_feat, src_feat,
                                               tgt_pe, src_pe, tgt_mask, src_mask)
    return src_feat, tgt_feat, src_pe, tgt_pe


# ----------------------------------------------------------------------------
# Main
# ----------------------------------------------------------------------------
if __name__ == "__main__":
    key = jax.random.PRNGKey(0)
    B, N, d_model, nhead = 2, 16, 48, 4   # d_model divisible by 6 (VolPE) and nhead

    config = {
        "feature_dim": d_model,
        "n_head": nhead,
        "layer_types": ["self", "cross"],
        "pe_type": "sinusoidal",
        "positioning_type": "oracle",
        "entangled": False,
        "vol_origin": jnp.array([-1.0, -1.0, -1.0], jnp.float32),
        "voxel_size": 0.08,
    }

    k_feat_s, k_feat_t, k_pcd_s, k_pcd_t, k_l0, k_l1 = jax.random.split(key, 6)
    src_feat = jax.random.normal(k_feat_s, (B, N, d_model), jnp.float32)
    tgt_feat = jax.random.normal(k_feat_t, (B, N, d_model), jnp.float32)
    s_pcd = jax.random.uniform(k_pcd_s, (B, N, 3), jnp.float32, -1.0, 1.0)
    t_pcd = jax.random.uniform(k_pcd_t, (B, N, 3), jnp.float32, -1.0, 1.0)
    src_mask = jnp.ones((B, N), bool).at[1, -2:].set(False)
    tgt_mask = jnp.ones((B, N), bool).at[1, -1:].set(False)

    layers = [init_layer_params(k_l0, d_model),
              init_layer_params(k_l1, d_model)]

    out = repositioning_transformer(layers, config, src_feat, tgt_feat,
                                    s_pcd, t_pcd, src_mask, tgt_mask, T=None)
    out = jax.block_until_ready(out)
    src_o, tgt_o, src_pe, tgt_pe = out

    ref = _transformer_ref(layers, config, src_feat, tgt_feat,
                           s_pcd, t_pcd, src_mask, tgt_mask)
    ref = jax.block_until_ready(ref)

    # bf16 MXU operands + approx reciprocal -> compare at matching precision.
    assert jnp.allclose(src_o, ref[0], atol=3e-2, rtol=3e-2)
    assert jnp.allclose(tgt_o, ref[1], atol=3e-2, rtol=3e-2)
    assert jnp.allclose(src_pe, ref[2], atol=1e-5, rtol=1e-5)
    assert jnp.allclose(tgt_pe, ref[3], atol=1e-5, rtol=1e-5)

    print("KERNEL_OK")
</pallas_src>

<mosaic_0001>
module attributes {stable_mosaic.version = 11 : i64} {
  func.func @_geometry_attention_kernel(%arg0: i32, %arg1: i32, %arg2: i32, %arg3: memref<1x16x48xf32, #tpu.memory_space<vmem>>, %arg4: memref<1x16x48xf32, #tpu.memory_space<vmem>>, %arg5: memref<1x16x48xf32, #tpu.memory_space<vmem>>, %arg6: memref<1x16x48xf32, #tpu.memory_space<vmem>>, %arg7: memref<1x16x1xf32, #tpu.memory_space<vmem>>, %arg8: memref<1x1x16xf32, #tpu.memory_space<vmem>>, %arg9: memref<48x48xbf16, #tpu.memory_space<vmem>>, %arg10: memref<48x48xbf16, #tpu.memory_space<vmem>>, %arg11: memref<48x48xbf16, #tpu.memory_space<vmem>>, %arg12: memref<4x12x48xbf16, #tpu.memory_space<vmem>>, %arg13: memref<96x48xbf16, #tpu.memory_space<vmem>>, %arg14: memref<96x48xbf16, #tpu.memory_space<vmem>>, %arg15: memref<48x96xbf16, #tpu.memory_space<vmem>>, %arg16: memref<1x48xf32, #tpu.memory_space<vmem>>, %arg17: memref<1x48xf32, #tpu.memory_space<vmem>>, %arg18: memref<1x48xf32, #tpu.memory_space<vmem>>, %arg19: memref<1x48xf32, #tpu.memory_space<vmem>>, %arg20: memref<1x16x48xf32, #tpu.memory_space<vmem>>, %arg21: memref<4x16x12xbf16, #tpu.memory_space<vmem>>, %arg22: memref<4x16x1xf32, #tpu.memory_space<vmem>>, %arg23: memref<4x16x1xf32, #tpu.memory_space<vmem>>, %arg24: memref<4x16x12xf32, #tpu.memory_space<vmem>>) attributes {dimension_semantics = [#tpu.dimension_semantics<parallel>, #tpu.dimension_semantics<parallel>, #tpu.dimension_semantics<arbitrary>], iteration_bounds = array<i64: 2, 1, 1>, scalar_prefetch = 0 : i64, scratch_operands = 4 : i64, tpu.core_type = #tpu.core_type<tc>, window_params = [{transform_indices = @transform_0, window_bounds = array<i64: 1, 16, 48>}, {transform_indices = @transform_1, window_bounds = array<i64: 1, 16, 48>}, {transform_indices = @transform_2, window_bounds = array<i64: 1, 16, 48>}, {transform_indices = @transform_3, window_bounds = array<i64: 1, 16, 48>}, {transform_indices = @transform_4, window_bounds = array<i64: 1, 16, 1>}, {transform_indices = @transform_5, window_bounds = array<i64: 1, 1, 16>}, {pipeline_mode = #tpu.pipeline_mode<synchronous>, transform_indices = @transform_6, window_bounds = array<i64: 48, 48>}, {pipeline_mode = #tpu.pipeline_mode<synchronous>, transform_indices = @transform_7, window_bounds = array<i64: 48, 48>}, {pipeline_mode = #tpu.pipeline_mode<synchronous>, transform_indices = @transform_8, window_bounds = array<i64: 48, 48>}, {pipeline_mode = #tpu.pipeline_mode<synchronous>, transform_indices = @transform_9, window_bounds = array<i64: 4, 12, 48>}, {pipeline_mode = #tpu.pipeline_mode<synchronous>, transform_indices = @transform_10, window_bounds = array<i64: 96, 48>}, {pipeline_mode = #tpu.pipeline_mode<synchronous>, transform_indices = @transform_11, window_bounds = array<i64: 96, 48>}, {pipeline_mode = #tpu.pipeline_mode<synchronous>, transform_indices = @transform_12, window_bounds = array<i64: 48, 96>}, {pipeline_mode = #tpu.pipeline_mode<synchronous>, transform_indices = @transform_13, window_bounds = array<i64: 1, 48>}, {pipeline_mode = #tpu.pipeline_mode<synchronous>, transform_indices = @transform_14, window_bounds = array<i64: 1, 48>}, {pipeline_mode = #tpu.pipeline_mode<synchronous>, transform_indices = @transform_15, window_bounds = array<i64: 1, 48>}, {pipeline_mode = #tpu.pipeline_mode<synchronous>, transform_indices = @transform_16, window_bounds = array<i64: 1, 48>}, {transform_indices = @transform_17, window_bounds = array<i64: 1, 16, 48>}]} {
    %c0_i32 = arith.constant 0 : i32
    %0 = arith.cmpi eq, %arg2, %c0_i32 : i32
    %1 = arith.extui %0 : i1 to i32
    %c0_i32_0 = arith.constant 0 : i32
    %2 = arith.cmpi ne, %1, %c0_i32_0 : i32
    scf.if %2 {
      %c0_44 = arith.constant 0 : index
      %c0_45 = arith.constant 0 : index
      %c0_46 = arith.constant 0 : index
      %72 = vector.load %arg3[%c0_44, %c0_45, %c0_46] : memref<1x16x48xf32, #tpu.memory_space<vmem>>, vector<1x16x48xf32>
      %73 = vector.shape_cast %72 : vector<1x16x48xf32> to vector<16x48xf32>
      %c0_47 = arith.constant 0 : index
      %c0_48 = arith.constant 0 : index
      %c0_49 = arith.constant 0 : index
      %74 = vector.load %arg4[%c0_47, %c0_48, %c0_49] : memref<1x16x48xf32, #tpu.memory_space<vmem>>, vector<1x16x48xf32>
      %75 = vector.shape_cast %74 : vector<1x16x48xf32> to vector<16x48xf32>
      %76 = arith.addf %73, %75 : vector<16x48xf32>
      %77 = arith.truncf %76 : vector<16x48xf32> to vector<16x48xbf16>
      %c0_50 = arith.constant 0 : index
      %c0_51 = arith.constant 0 : index
      %78 = vector.load %arg9[%c0_50, %c0_51] : memref<48x48xbf16, #tpu.memory_space<vmem>>, vector<48x48xbf16>
      %cst_52 = arith.constant dense<0.000000e+00> : vector<16x48xf32>
      %79 = tpu.matmul %77, %78, %cst_52 {dimension_numbers = #tpu.dot_dimension_numbers<[1], [1], [0], [0], [0, 0, 1, 0], [], []>} : vector<16x48xbf16>, vector<48x48xbf16>, vector<16x48xf32> -> vector<16x48xf32>
      %cst_53 = arith.constant 0.288675129 : f32
      %80 = vector.broadcast %cst_53 : f32 to vector<16x48xf32>
      %81 = arith.mulf %79, %80 : vector<16x48xf32>
      %82 = vector.extract_strided_slice %81 {offsets = [0, 0], sizes = [16, 12], strides = [1, 1]} : vector<16x48xf32> to vector<16x12xf32>
      %83 = vector.extract_strided_slice %81 {offsets = [0, 12], sizes = [16, 12], strides = [1, 1]} : vector<16x48xf32> to vector<16x12xf32>
      %84 = vector.extract_strided_slice %81 {offsets = [0, 24], sizes = [16, 12], strides = [1, 1]} : vector<16x48xf32> to vector<16x12xf32>
      %85 = vector.extract_strided_slice %81 {offsets = [0, 36], sizes = [16, 12], strides = [1, 1]} : vector<16x48xf32> to vector<16x12xf32>
      %86 = vector.shape_cast %82 : vector<16x12xf32> to vector<1x16x12xf32>
      %87 = vector.shape_cast %83 : vector<16x12xf32> to vector<1x16x12xf32>
      %88 = vector.shape_cast %84 : vector<16x12xf32> to vector<1x16x12xf32>
      %89 = vector.shape_cast %85 : vector<16x12xf32> to vector<1x16x12xf32>
      %90 = tpu.concatenate %86, %87, %88, %89 in 0 : vector<1x16x12xf32>, vector<1x16x12xf32>, vector<1x16x12xf32>, vector<1x16x12xf32> -> vector<4x16x12xf32>
      %91 = arith.truncf %90 : vector<4x16x12xf32> to vector<4x16x12xbf16>
      %c0_54 = arith.constant 0 : index
      %c0_55 = arith.constant 0 : index
      %c0_56 = arith.constant 0 : index
      %92 = vector.load %arg21[%c0_54, %c0_55, %c0_56] : memref<4x16x12xbf16, #tpu.memory_space<vmem>>, vector<4x16x12xbf16>
      tpu.vector_store %arg21[%c0_54, %c0_55, %c0_56], %91 {strides = array<i32>} : memref<4x16x12xbf16, #tpu.memory_space<vmem>>, vector<4x16x12xbf16>,
      %cst_57 = arith.constant -1.000000e+30 : f32
      %93 = vector.broadcast %cst_57 : f32 to vector<4x16x1xf32>
      %c0_58 = arith.constant 0 : index
      %c0_59 = arith.constant 0 : index
      %c0_60 = arith.constant 0 : index
      %94 = vector.load %arg22[%c0_58, %c0_59, %c0_60] : memref<4x16x1xf32, #tpu.memory_space<vmem>>, vector<4x16x1xf32>
      tpu.vector_store %arg22[%c0_58, %c0_59, %c0_60], %93 {strides = array<i32>} : memref<4x16x1xf32, #tpu.memory_space<vmem>>, vector<4x16x1xf32>,
      %cst_61 = arith.constant 0.000000e+00 : f32
      %95 = vector.broadcast %cst_61 : f32 to vector<4x16x1xf32>
      %c0_62 = arith.constant 0 : index
      %c0_63 = arith.constant 0 : index
      %c0_64 = arith.constant 0 : index
      %96 = vector.load %arg23[%c0_62, %c0_63, %c0_64] : memref<4x16x1xf32, #tpu.memory_space<vmem>>, vector<4x16x1xf32>
      tpu.vector_store %arg23[%c0_62, %c0_63, %c0_64], %95 {strides = array<i32>} : memref<4x16x1xf32, #tpu.memory_space<vmem>>, vector<4x16x1xf32>,
      %cst_65 = arith.constant 0.000000e+00 : f32
      %97 = vector.broadcast %cst_65 : f32 to vector<4x16x12xf32>
      %c0_66 = arith.constant 0 : index
      %c0_67 = arith.constant 0 : index
      %c0_68 = arith.constant 0 : index
      %98 = vector.load %arg24[%c0_66, %c0_67, %c0_68] : memref<4x16x12xf32, #tpu.memory_space<vmem>>, vector<4x16x12xf32>
      tpu.vector_store %arg24[%c0_66, %c0_67, %c0_68], %97 {strides = array<i32>} : memref<4x16x12xf32, #tpu.memory_space<vmem>>, vector<4x16x12xf32>,
    } else {
    }
    %c0 = arith.constant 0 : index
    %c0_1 = arith.constant 0 : index
    %c0_2 = arith.constant 0 : index
    %3 = vector.load %arg5[%c0, %c0_1, %c0_2] : memref<1x16x48xf32, #tpu.memory_space<vmem>>, vector<1x16x48xf32>
    %4 = vector.shape_cast %3 : vector<1x16x48xf32> to vector<16x48xf32>
    %c0_3 = arith.constant 0 : index
    %c0_4 = arith.constant 0 : index
    %c0_5 = arith.constant 0 : index
    %5 = vector.load %arg6[%c0_3, %c0_4, %c0_5] : memref<1x16x48xf32, #tpu.memory_space<vmem>>, vector<1x16x48xf32>
    %6 = vector.shape_cast %5 : vector<1x16x48xf32> to vector<16x48xf32>
    %7 = arith.addf %4, %6 : vector<16x48xf32>
    %8 = arith.truncf %7 : vector<16x48xf32> to vector<16x48xbf16>
    %c0_6 = arith.constant 0 : index
    %c0_7 = arith.constant 0 : index
    %9 = vector.load %arg10[%c0_6, %c0_7] : memref<48x48xbf16, #tpu.memory_space<vmem>>, vector<48x48xbf16>
    %cst = arith.constant dense<0.000000e+00> : vector<16x48xf32>
    %10 = tpu.matmul %8, %9, %cst {dimension_numbers = #tpu.dot_dimension_numbers<[1], [1], [0], [0], [0, 0, 1, 0], [], []>} : vector<16x48xbf16>, vector<48x48xbf16>, vector<16x48xf32> -> vector<16x48xf32>
    %11 = vector.extract_strided_slice %10 {offsets = [0, 0], sizes = [16, 12], strides = [1, 1]} : vector<16x48xf32> to vector<16x12xf32>
    %12 = vector.extract_strided_slice %10 {offsets = [0, 12], sizes = [16, 12], strides = [1, 1]} : vector<16x48xf32> to vector<16x12xf32>
    %13 = vector.extract_strided_slice %10 {offsets = [0, 24], sizes = [16, 12], strides = [1, 1]} : vector<16x48xf32> to vector<16x12xf32>
    %14 = vector.extract_strided_slice %10 {offsets = [0, 36], sizes = [16, 12], strides = [1, 1]} : vector<16x48xf32> to vector<16x12xf32>
    %15 = vector.shape_cast %11 : vector<16x12xf32> to vector<1x16x12xf32>
    %16 = vector.shape_cast %12 : vector<16x12xf32> to vector<1x16x12xf32>
    %17 = vector.shape_cast %13 : vector<16x12xf32> to vector<1x16x12xf32>
    %18 = vector.shape_cast %14 : vector<16x12xf32> to vector<1x16x12xf32>
    %19 = tpu.concatenate %15, %16, %17, %18 in 0 : vector<1x16x12xf32>, vector<1x16x12xf32>, vector<1x16x12xf32>, vector<1x16x12xf32> -> vector<4x16x12xf32>
    %20 = arith.truncf %19 : vector<4x16x12xf32> to vector<4x16x12xbf16>
    %21 = arith.truncf %4 : vector<16x48xf32> to vector<16x48xbf16>
    %c0_8 = arith.constant 0 : index
    %c0_9 = arith.constant 0 : index
    %22 = vector.load %arg11[%c0_8, %c0_9] : memref<48x48xbf16, #tpu.memory_space<vmem>>, vector<48x48xbf16>
    %cst_10 = arith.constant dense<0.000000e+00> : vector<16x48xf32>
    %23 = tpu.matmul %21, %22, %cst_10 {dimension_numbers = #tpu.dot_dimension_numbers<[1], [1], [0], [0], [0, 0, 1, 0], [], []>} : vector<16x48xbf16>, vector<48x48xbf16>, vector<16x48xf32> -> vector<16x48xf32>
    %24 = vector.extract_strided_slice %23 {offsets = [0, 0], sizes = [16, 12], strides = [1, 1]} : vector<16x48xf32> to vector<16x12xf32>
    %25 = vector.extract_strided_slice %23 {offsets = [0, 12], sizes = [16, 12], strides = [1, 1]} : vector<16x48xf32> to vector<16x12xf32>
    %26 = vector.extract_strided_slice %23 {offsets = [0, 24], sizes = [16, 12], strides = [1, 1]} : vector<16x48xf32> to vector<16x12xf32>
    %27 = vector.extract_strided_slice %23 {offsets = [0, 36], sizes = [16, 12], strides = [1, 1]} : vector<16x48xf32> to vector<16x12xf32>
    %28 = vector.shape_cast %24 : vector<16x12xf32> to vector<1x16x12xf32>
    %29 = vector.shape_cast %25 : vector<16x12xf32> to vector<1x16x12xf32>
    %30 = vector.shape_cast %26 : vector<16x12xf32> to vector<1x16x12xf32>
    %31 = vector.shape_cast %27 : vector<16x12xf32> to vector<1x16x12xf32>
    %32 = tpu.concatenate %28, %29, %30, %31 in 0 : vector<1x16x12xf32>, vector<1x16x12xf32>, vector<1x16x12xf32>, vector<1x16x12xf32> -> vector<4x16x12xf32>
    %33 = arith.truncf %32 : vector<4x16x12xf32> to vector<4x16x12xbf16>
    %c0_11 = arith.constant 0 : index
    %c0_12 = arith.constant 0 : index
    %c0_13 = arith.constant 0 : index
    %34 = vector.load %arg21[%c0_11, %c0_12, %c0_13] : memref<4x16x12xbf16, #tpu.memory_space<vmem>>, vector<4x16x12xbf16>
    "tpu.trace_start"() <{level = 10 : i32, message = "hld,hsd->hls"}> : () -> ()
    %cst_14 = arith.constant dense<0.000000e+00> : vector<4x16x16xf32>
    %35 = tpu.matmul %34, %20, %cst_14 {dimension_numbers = #tpu.dot_dimension_numbers<[2], [2], [1], [1], [0, 0, 0, 1, 1, 1], [0], [0]>} : vector<4x16x12xbf16>, vector<4x16x12xbf16>, vector<4x16x16xf32> -> vector<4x16x16xf32>
    "tpu.trace_stop"() : () -> ()
    %c0_15 = arith.constant 0 : index
    %c0_16 = arith.constant 0 : index
    %c0_17 = arith.constant 0 : index
    %36 = vector.load %arg7[%c0_15, %c0_16, %c0_17] : memref<1x16x1xf32, #tpu.memory_space<vmem>>, vector<1x16x1xf32>
    %37 = vector.shape_cast %36 : vector<1x16x1xf32> to vector<16x1xf32>
    %c0_18 = arith.constant 0 : index
    %c0_19 = arith.constant 0 : index
    %c0_20 = arith.constant 0 : index
    %38 = vector.load %arg8[%c0_18, %c0_19, %c0_20] : memref<1x1x16xf32, #tpu.memory_space<vmem>>, vector<1x1x16xf32>
    %39 = vector.shape_cast %38 : vector<1x1x16xf32> to vector<1x16xf32>
    %40 = vector.broadcast %37 : vector<16x1xf32> to vector<16x16xf32>
    %41 = vector.broadcast %39 : vector<1x16xf32> to vector<16x16xf32>
    %42 = arith.mulf %40, %41 : vector<16x16xf32>
    %43 = vector.shape_cast %42 : vector<16x16xf32> to vector<1x16x16xf32>
    %44 = vector.broadcast %43 : vector<1x16x16xf32> to vector<4x16x16xf32>
    %45 = arith.addf %35, %44 : vector<4x16x16xf32>
    %c0_21 = arith.constant 0 : index
    %c0_22 = arith.constant 0 : index
    %c0_23 = arith.constant 0 : index
    %46 = vector.load %arg22[%c0_21, %c0_22, %c0_23] : memref<4x16x1xf32, #tpu.memory_space<vmem>>, vector<4x16x1xf32>
    %cst_24 = arith.constant dense<0xFF800000> : vector<4x16xf32>
    %47 = vector.multi_reduction <maximumf>, %45, %cst_24 [2] : vector<4x16x16xf32> to vector<4x16xf32>
    %48 = vector.shape_cast %47 : vector<4x16xf32> to vector<4x16x1xf32>
    %49 = arith.maximumf %46, %48 : vector<4x16x1xf32>
    %50 = arith.subf %46, %49 : vector<4x16x1xf32>
    %51 = math.exp %50 : vector<4x16x1xf32>
    %52 = vector.broadcast %49 : vector<4x16x1xf32> to vector<4x16x16xf32>
    %53 = arith.subf %45, %52 : vector<4x16x16xf32>
    %54 = math.exp %53 : vector<4x16x16xf32>
    %c0_25 = arith.constant 0 : index
    %c0_26 = arith.constant 0 : index
    %c0_27 = arith.constant 0 : index
    %55 = vector.load %arg23[%c0_25, %c0_26, %c0_27] : memref<4x16x1xf32, #tpu.memory_space<vmem>>, vector<4x16x1xf32>
    %56 = arith.mulf %51, %55 : vector<4x16x1xf32>
    %cst_28 = arith.constant dense<0.000000e+00> : vector<4x16xf32>
    %57 = vector.multi_reduction <add>, %54, %cst_28 [2] : vector<4x16x16xf32> to vector<4x16xf32>
    %58 = vector.shape_cast %57 : vector<4x16xf32> to vector<4x16x1xf32>
    %59 = arith.addf %56, %58 : vector<4x16x1xf32>
    %c0_29 = arith.constant 0 : index
    %c0_30 = arith.constant 0 : index
    %c0_31 = arith.constant 0 : index
    %60 = vector.load %arg23[%c0_29, %c0_30, %c0_31] : memref<4x16x1xf32, #tpu.memory_space<vmem>>, vector<4x16x1xf32>
    tpu.vector_store %arg23[%c0_29, %c0_30, %c0_31], %59 {strides = array<i32>} : memref<4x16x1xf32, #tpu.memory_space<vmem>>, vector<4x16x1xf32>,
    %61 = arith.truncf %54 : vector<4x16x16xf32> to vector<4x16x16xbf16>
    "tpu.trace_start"() <{level = 10 : i32, message = "hls,hsd->hld"}> : () -> ()
    %cst_32 = arith.constant dense<0.000000e+00> : vector<4x16x12xf32>
    %62 = tpu.matmul %61, %33, %cst_32 {dimension_numbers = #tpu.dot_dimension_numbers<[2], [1], [1], [2], [0, 0, 0, 1, 1, 2], [0], [0]>} : vector<4x16x16xbf16>, vector<4x16x12xbf16>, vector<4x16x12xf32> -> vector<4x16x12xf32>
    "tpu.trace_stop"() : () -> ()
    %c0_33 = arith.constant 0 : index
    %c0_34 = arith.constant 0 : index
    %c0_35 = arith.constant 0 : index
    %63 = vector.load %arg24[%c0_33, %c0_34, %c0_35] : memref<4x16x12xf32, #tpu.memory_space<vmem>>, vector<4x16x12xf32>
    %64 = vector.broadcast %51 : vector<4x16x1xf32> to vector<4x16x12xf32>
    %65 = arith.mulf %64, %63 : vector<4x16x12xf32>
    %66 = arith.addf %65, %62 : vector<4x16x12xf32>
    %c0_36 = arith.constant 0 : index
    %c0_37 = arith.constant 0 : index
    %c0_38 = arith.constant 0 : index
    %67 = vector.load %arg24[%c0_36, %c0_37, %c0_38] : memref<4x16x12xf32, #tpu.memory_space<vmem>>, vector<4x16x12xf32>
    tpu.vector_store %arg24[%c0_36, %c0_37, %c0_38], %66 {strides = array<i32>} : memref<4x16x12xf32, #tpu.memory_space<vmem>>, vector<4x16x12xf32>,
    %c0_39 = arith.constant 0 : index
    %c0_40 = arith.constant 0 : index
    %c0_41 = arith.constant 0 : index
    %68 = vector.load %arg22[%c0_39, %c0_40, %c0_41] : memref<4x16x1xf32, #tpu.memory_space<vmem>>, vector<4x16x1xf32>
    tpu.vector_store %arg22[%c0_39, %c0_40, %c0_41], %49 {strides = array<i32>} : memref<4x16x1xf32, #tpu.memory_space<vmem>>, vector<4x16x1xf32>,
    %c0_i32_42 = arith.constant 0 : i32
    %69 = arith.cmpi eq, %arg2, %c0_i32_42 : i32
    %70 = arith.extui %69 : i1 to i32
    %c0_i32_43 = arith.constant 0 : i32
    %71 = arith.cmpi ne, %70, %c0_i32_43 : i32
    scf.if %71 {
      %c0_44 = arith.constant 0 : index
      %c0_45 = arith.constant 0 : index
      %c0_46 = arith.constant 0 : index
      %72 = vector.load %arg24[%c0_44, %c0_45, %c0_46] : memref<4x16x12xf32, #tpu.memory_space<vmem>>, vector<4x16x12xf32>
      %c0_47 = arith.constant 0 : index
      %c0_48 = arith.constant 0 : index
      %c0_49 = arith.constant 0 : index
      %73 = vector.load %arg23[%c0_47, %c0_48, %c0_49] : memref<4x16x1xf32, #tpu.memory_space<vmem>>, vector<4x16x1xf32>
      %74 = tpu.reciprocal %73 {approx = true} : vector<4x16x1xf32> -> vector<4x16x1xf32>
      %75 = vector.broadcast %74 : vector<4x16x1xf32> to vector<4x16x12xf32>
      %76 = arith.mulf %72, %75 : vector<4x16x12xf32>
      %77 = arith.truncf %76 : vector<4x16x12xf32> to vector<4x16x12xbf16>
      %c0_50 = arith.constant 0 : index
      %c0_51 = arith.constant 0 : index
      %c0_52 = arith.constant 0 : index
      %78 = vector.load %arg12[%c0_50, %c0_51, %c0_52] : memref<4x12x48xbf16, #tpu.memory_space<vmem>>, vector<4x12x48xbf16>
      "tpu.trace_start"() <{level = 10 : i32, message = "hld,hdm->hlm"}> : () -> ()
      %cst_53 = arith.constant dense<0.000000e+00> : vector<4x16x48xf32>
      %79 = tpu.matmul %77, %78, %cst_53 {dimension_numbers = #tpu.dot_dimension_numbers<[2], [1], [1], [2], [0, 0, 0, 1, 1, 2], [0], [0]>} : vector<4x16x12xbf16>, vector<4x12x48xbf16>, vector<4x16x48xf32> -> vector<4x16x48xf32>
      "tpu.trace_stop"() : () -> ()
      %cst_54 = arith.constant dense<0.000000e+00> : vector<16x48xf32>
      %80 = vector.multi_reduction <add>, %79, %cst_54 [0] : vector<4x16x48xf32> to vector<16x48xf32>
      %cst_55 = arith.constant dense<0.000000e+00> : vector<16xf32>
      %81 = vector.multi_reduction <add>, %80, %cst_55 [1] : vector<16x48xf32> to vector<16xf32>
      %82 = vector.shape_cast %81 : vector<16xf32> to vector<16x1xf32>
      %cst_56 = arith.constant 4.800000e+01 : f32
      %83 = vector.broadcast %cst_56 : f32 to vector<16x1xf32>
      %84 = arith.divf %82, %83 : vector<16x1xf32>
      %85 = arith.mulf %80, %80 : vector<16x48xf32>
      %cst_57 = arith.constant dense<0.000000e+00> : vector<16xf32>
      %86 = vector.multi_reduction <add>, %85, %cst_57 [1] : vector<16x48xf32> to vector<16xf32>
      %87 = vector.shape_cast %86 : vector<16xf32> to vector<16x1xf32>
      %cst_58 = arith.constant 4.800000e+01 : f32
      %88 = vector.broadcast %cst_58 : f32 to vector<16x1xf32>
      %89 = arith.divf %87, %88 : vector<16x1xf32>
      %90 = arith.mulf %84, %84 : vector<16x1xf32>
      %91 = arith.subf %89, %90 : vector<16x1xf32>
      %92 = vector.broadcast %84 : vector<16x1xf32> to vector<16x48xf32>
      %93 = arith.subf %80, %92 : vector<16x48xf32>
      %cst_59 = arith.constant 9.99999974E-6 : f32
      %94 = vector.broadcast %cst_59 : f32 to vector<16x1xf32>
      %95 = arith.addf %91, %94 : vector<16x1xf32>
      %96 = math.rsqrt %95 : vector<16x1xf32>
      %97 = vector.broadcast %96 : vector<16x1xf32> to vector<16x48xf32>
      %98 = arith.mulf %93, %97 : vector<16x48xf32>
      %c0_60 = arith.constant 0 : index
      %c0_61 = arith.constant 0 : index
      %99 = vector.load %arg16[%c0_60, %c0_61] : memref<1x48xf32, #tpu.memory_space<vmem>>, vector<1x48xf32>
      %100 = vector.broadcast %99 : vector<1x48xf32> to vector<16x48xf32>
      %101 = arith.mulf %98, %100 : vector<16x48xf32>
      %c0_62 = arith.constant 0 : index
      %c0_63 = arith.constant 0 : index
      %102 = vector.load %arg17[%c0_62, %c0_63] : memref<1x48xf32, #tpu.memory_space<vmem>>, vector<1x48xf32>
      %103 = vector.broadcast %102 : vector<1x48xf32> to vector<16x48xf32>
      %104 = arith.addf %101, %103 : vector<16x48xf32>
      %c0_64 = arith.constant 0 : index
      %c0_65 = arith.constant 0 : index
      %c0_66 = arith.constant 0 : index
      %105 = vector.load %arg3[%c0_64, %c0_65, %c0_66] : memref<1x16x48xf32, #tpu.memory_space<vmem>>, vector<1x16x48xf32>
      %106 = vector.shape_cast %105 : vector<1x16x48xf32> to vector<16x48xf32>
      %107 = arith.truncf %106 : vector<16x48xf32> to vector<16x48xbf16>
      %c0_67 = arith.constant 0 : index
      %c0_68 = arith.constant 0 : index
      %108 = vector.load %arg13[%c0_67, %c0_68] : memref<96x48xbf16, #tpu.memory_space<vmem>>, vector<96x48xbf16>
      %cst_69 = arith.constant dense<0.000000e+00> : vector<16x96xf32>
      %109 = tpu.matmul %107, %108, %cst_69 {dimension_numbers = #tpu.dot_dimension_numbers<[1], [1], [0], [0], [0, 0, 1, 0], [], []>} : vector<16x48xbf16>, vector<96x48xbf16>, vector<16x96xf32> -> vector<16x96xf32>
      %110 = arith.truncf %104 : vector<16x48xf32> to vector<16x48xbf16>
      %c0_70 = arith.constant 0 : index
      %c0_71 = arith.constant 0 : index
      %111 = vector.load %arg14[%c0_70, %c0_71] : memref<96x48xbf16, #tpu.memory_space<vmem>>, vector<96x48xbf16>
      %cst_72 = arith.constant dense<0.000000e+00> : vector<16x96xf32>
      %112 = tpu.matmul %110, %111, %cst_72 {dimension_numbers = #tpu.dot_dimension_numbers<[1], [1], [0], [0], [0, 0, 1, 0], [], []>} : vector<16x48xbf16>, vector<96x48xbf16>, vector<16x96xf32> -> vector<16x96xf32>
      %113 = arith.addf %109, %112 : vector<16x96xf32>
      %cst_73 = arith.constant 0.000000e+00 : f32
      %114 = vector.broadcast %cst_73 : f32 to vector<16x96xf32>
      %115 = arith.maximumf %113, %114 : vector<16x96xf32>
      %116 = arith.truncf %115 : vector<16x96xf32> to vector<16x96xbf16>
      %c0_74 = arith.constant 0 : index
      %c0_75 = arith.constant 0 : index
      %117 = vector.load %arg15[%c0_74, %c0_75] : memref<48x96xbf16, #tpu.memory_space<vmem>>, vector<48x96xbf16>
      %cst_76 = arith.constant dense<0.000000e+00> : vector<16x48xf32>
      %118 = tpu.matmul %116, %117, %cst_76 {dimension_numbers = #tpu.dot_dimension_numbers<[1], [1], [0], [0], [0, 0, 1, 0], [], []>} : vector<16x96xbf16>, vector<48x96xbf16>, vector<16x48xf32> -> vector<16x48xf32>
      %cst_77 = arith.constant dense<0.000000e+00> : vector<16xf32>
      %119 = vector.multi_reduction <add>, %118, %cst_77 [1] : vector<16x48xf32> to vector<16xf32>
      %120 = vector.shape_cast %119 : vector<16xf32> to vector<16x1xf32>
      %cst_78 = arith.constant 4.800000e+01 : f32
      %121 = vector.broadcast %cst_78 : f32 to vector<16x1xf32>
      %122 = arith.divf %120, %121 : vector<16x1xf32>
      %123 = arith.mulf %118, %118 : vector<16x48xf32>
      %cst_79 = arith.constant dense<0.000000e+00> : vector<16xf32>
      %124 = vector.multi_reduction <add>, %123, %cst_79 [1] : vector<16x48xf32> to vector<16xf32>
      %125 = vector.shape_cast %124 : vector<16xf32> to vector<16x1xf32>
      %cst_80 = arith.constant 4.800000e+01 : f32
      %126 = vector.broadcast %cst_80 : f32 to vector<16x1xf32>
      %127 = arith.divf %125, %126 : vector<16x1xf32>
      %128 = arith.mulf %122, %122 : vector<16x1xf32>
      %129 = arith.subf %127, %128 : vector<16x1xf32>
      %130 = vector.broadcast %122 : vector<16x1xf32> to vector<16x48xf32>
      %131 = arith.subf %118, %130 : vector<16x48xf32>
      %cst_81 = arith.constant 9.99999974E-6 : f32
      %132 = vector.broadcast %cst_81 : f32 to vector<16x1xf32>
      %133 = arith.addf %129, %132 : vector<16x1xf32>
      %134 = math.rsqrt %133 : vector<16x1xf32>
      %135 = vector.broadcast %134 : vector<16x1xf32> to vector<16x48xf32>
      %136 = arith.mulf %131, %135 : vector<16x48xf32>
      %c0_82 = arith.constant 0 : index
      %c0_83 = arith.constant 0 : index
      %137 = vector.load %arg18[%c0_82, %c0_83] : memref<1x48xf32, #tpu.memory_space<vmem>>, vector<1x48xf32>
      %138 = vector.broadcast %137 : vector<1x48xf32> to vector<16x48xf32>
      %139 = arith.mulf %136, %138 : vector<16x48xf32>
      %c0_84 = arith.constant 0 : index
      %c0_85 = arith.constant 0 : index
      %140 = vector.load %arg19[%c0_84, %c0_85] : memref<1x48xf32, #tpu.memory_space<vmem>>, vector<1x48xf32>
      %141 = vector.broadcast %140 : vector<1x48xf32> to vector<16x48xf32>
      %142 = arith.addf %139, %141 : vector<16x48xf32>
      %143 = arith.addf %106, %142 : vector<16x48xf32>
      %c0_86 = arith.constant 0 : index
      %c0_87 = arith.constant 0 : index
      %c0_88 = arith.constant 0 : index
      %144 = vector.load %arg20[%c0_86, %c0_87, %c0_88] : memref<1x16x48xf32, #tpu.memory_space<vmem>>, vector<1x16x48xf32>
      %145 = vector.shape_cast %144 : vector<1x16x48xf32> to vector<16x48xf32>
      %146 = vector.shape_cast %143 : vector<16x48xf32> to vector<1x16x48xf32>
      tpu.vector_store %arg20[%c0_86, %c0_87, %c0_88], %146 {strides = array<i32>} : memref<1x16x48xf32, #tpu.memory_space<vmem>>, vector<1x16x48xf32>,
    } else {
    }
    return
  }
  func.func @transform_0(%arg0: i32, %arg1: i32, %arg2: i32) -> (i32, i32, i32) {
    %c0_i32 = arith.constant 0 : i32
    %c0_i32_0 = arith.constant 0 : i32
    return %arg0, %arg1, %c0_i32 : i32, i32, i32
  }
  func.func @transform_1(%arg0: i32, %arg1: i32, %arg2: i32) -> (i32, i32, i32) {
    %c0_i32 = arith.constant 0 : i32
    %c0_i32_0 = arith.constant 0 : i32
    return %arg0, %arg1, %c0_i32 : i32, i32, i32
  }
  func.func @transform_2(%arg0: i32, %arg1: i32, %arg2: i32) -> (i32, i32, i32) {
    %c0_i32 = arith.constant 0 : i32
    %c0_i32_0 = arith.constant 0 : i32
    return %arg0, %arg2, %c0_i32 : i32, i32, i32
  }
  func.func @transform_3(%arg0: i32, %arg1: i32, %arg2: i32) -> (i32, i32, i32) {
    %c0_i32 = arith.constant 0 : i32
    %c0_i32_0 = arith.constant 0 : i32
    return %arg0, %arg2, %c0_i32 : i32, i32, i32
  }
  func.func @transform_4(%arg0: i32, %arg1: i32, %arg2: i32) -> (i32, i32, i32) {
    %c0_i32 = arith.constant 0 : i32
    %c0_i32_0 = arith.constant 0 : i32
    return %arg0, %arg1, %c0_i32 : i32, i32, i32
  }
  func.func @transform_5(%arg0: i32, %arg1: i32, %arg2: i32) -> (i32, i32, i32) {
    %c0_i32 = arith.constant 0 : i32
    %c0_i32_0 = arith.constant 0 : i32
    return %arg0, %c0_i32, %arg2 : i32, i32, i32
  }
  func.func @transform_6(%arg0: i32, %arg1: i32, %arg2: i32) -> (i32, i32) {
    %c0_i32 = arith.constant 0 : i32
    %c0_i32_0 = arith.constant 0 : i32
    %c0_i32_1 = arith.constant 0 : i32
    return %c0_i32, %c0_i32_0 : i32, i32
  }
  func.func @transform_7(%arg0: i32, %arg1: i32, %arg2: i32) -> (i32, i32) {
    %c0_i32 = arith.constant 0 : i32
    %c0_i32_0 = arith.constant 0 : i32
    %c0_i32_1 = arith.constant 0 : i32
    return %c0_i32, %c0_i32_0 : i32, i32
  }
  func.func @transform_8(%arg0: i32, %arg1: i32, %arg2: i32) -> (i32, i32) {
    %c0_i32 = arith.constant 0 : i32
    %c0_i32_0 = arith.constant 0 : i32
    %c0_i32_1 = arith.constant 0 : i32
    return %c0_i32, %c0_i32_0 : i32, i32
  }
  func.func @transform_9(%arg0: i32, %arg1: i32, %arg2: i32) -> (i32, i32, i32) {
    %c0_i32 = arith.constant 0 : i32
    %c0_i32_0 = arith.constant 0 : i32
    %c0_i32_1 = arith.constant 0 : i32
    %c0_i32_2 = arith.constant 0 : i32
    return %c0_i32, %c0_i32_0, %c0_i32_1 : i32, i32, i32
  }
  func.func @transform_10(%arg0: i32, %arg1: i32, %arg2: i32) -> (i32, i32) {
    %c0_i32 = arith.constant 0 : i32
    %c0_i32_0 = arith.constant 0 : i32
    %c0_i32_1 = arith.constant 0 : i32
    return %c0_i32, %c0_i32_0 : i32, i32
  }
  func.func @transform_11(%arg0: i32, %arg1: i32, %arg2: i32) -> (i32, i32) {
    %c0_i32 = arith.constant 0 : i32
    %c0_i32_0 = arith.constant 0 : i32
    %c0_i32_1 = arith.constant 0 : i32
    return %c0_i32, %c0_i32_0 : i32, i32
  }
  func.func @transform_12(%arg0: i32, %arg1: i32, %arg2: i32) -> (i32, i32) {
    %c0_i32 = arith.constant 0 : i32
    %c0_i32_0 = arith.constant 0 : i32
    %c0_i32_1 = arith.constant 0 : i32
    return %c0_i32, %c0_i32_0 : i32, i32
  }
  func.func @transform_13(%arg0: i32, %arg1: i32, %arg2: i32) -> (i32, i32) {
    %c0_i32 = arith.constant 0 : i32
    %c0_i32_0 = arith.constant 0 : i32
    %c0_i32_1 = arith.constant 0 : i32
    return %c0_i32, %c0_i32_0 : i32, i32
  }
  func.func @transform_14(%arg0: i32, %arg1: i32, %arg2: i32) -> (i32, i32) {
    %c0_i32 = arith.constant 0 : i32
    %c0_i32_0 = arith.constant 0 : i32
    %c0_i32_1 = arith.constant 0 : i32
    return %c0_i32, %c0_i32_0 : i32, i32
  }
  func.func @transform_15(%arg0: i32, %arg1: i32, %arg2: i32) -> (i32, i32) {
    %c0_i32 = arith.constant 0 : i32
    %c0_i32_0 = arith.constant 0 : i32
    %c0_i32_1 = arith.constant 0 : i32
    return %c0_i32, %c0_i32_0 : i32, i32
  }
  func.func @transform_16(%arg0: i32, %arg1: i32, %arg2: i32) -> (i32, i32) {
    %c0_i32 = arith.constant 0 : i32
    %c0_i32_0 = arith.constant 0 : i32
    %c0_i32_1 = arith.constant 0 : i32
    return %c0_i32, %c0_i32_0 : i32, i32
  }
  func.func @transform_17(%arg0: i32, %arg1: i32, %arg2: i32) -> (i32, i32, i32) {
    %c0_i32 = arith.constant 0 : i32
    %c0_i32_0 = arith.constant 0 : i32
    return %arg0, %arg1, %c0_i32 : i32, i32, i32
  }
}

</mosaic_0001>

<llo_original>
// kernel: tpu_custom_call.1
$region0: #{tpu_custom_call.1}
  #allocation0 [shape = 'u32[]', space=smem, size = 0x4, offset = 0x4, fixed_abs, tag = 'smem constant byte address 0x4 - core index']
  #allocation1 [shape = 'u32[144,128]{1,0:T(1,128)}', space=vmem, size = 0x12000, scoped, tag = 'internal scratch']
  #allocation2 [shape = 'bf16[4,16,12]{2,1,0:T(8,128)(2,1)}', space=vmem, size = 0x4000, scoped, tag = 'scratch operand']
  #allocation3 [shape = 'f32[4,16,1]{2,1,0:T(8,128)}', space=vmem, size = 0x8000, scoped, tag = 'scratch operand']
  #allocation4 [shape = 'f32[4,16,1]{2,1,0:T(8,128)}', space=vmem, size = 0x8000, scoped, tag = 'scratch operand']
  #allocation5 [shape = 'f32[4,16,12]{2,1,0:T(8,128)}', space=vmem, size = 0x8000, scoped, tag = 'scratch operand']
  %s0 = inlined_call_operand.vmem [shape: f32[2,16,48], index: 0, kind: input, shape index: {}]
  %s1 = inlined_call_operand.vmem [shape: f32[2,16,48], index: 1, kind: input, shape index: {}]
  %s2 = inlined_call_operand.vmem [shape: f32[2,16,48], index: 2, kind: input, shape index: {}]
  %s3 = inlined_call_operand.vmem [shape: f32[2,16,48], index: 3, kind: input, shape index: {}]
  %s4 = inlined_call_operand.vmem [shape: f32[2,16,1], index: 4, kind: input, shape index: {}]
  %s5 = inlined_call_operand.hbm [shape: f32[2,1,16], index: 5, kind: input, shape index: {}]
  %s6 = inlined_call_operand.vmem [shape: bf16[48,48], index: 6, kind: input, shape index: {}]
  %s7 = inlined_call_operand.vmem [shape: bf16[48,48], index: 7, kind: input, shape index: {}]
  %s8 = inlined_call_operand.hbm [shape: bf16[48,48], index: 8, kind: input, shape index: {}]
  %s9 = inlined_call_operand.vmem [shape: bf16[4,12,48], index: 9, kind: input, shape index: {}]
  %s10 = inlined_call_operand.vmem [shape: bf16[96,48], index: 10, kind: input, shape index: {}]
  %s11 = inlined_call_operand.vmem [shape: bf16[96,48], index: 11, kind: input, shape index: {}]
  %s12 = inlined_call_operand.hbm [shape: bf16[48,96], index: 12, kind: input, shape index: {}]
  %s13 = inlined_call_operand.vmem [shape: f32[1,48], index: 13, kind: input, shape index: {}]
  %s14 = inlined_call_operand.vmem [shape: f32[1,48], index: 14, kind: input, shape index: {}]
  %s15 = inlined_call_operand.vmem [shape: f32[1,48], index: 15, kind: input, shape index: {}]
  %s16 = inlined_call_operand.vmem [shape: f32[1,48], index: 16, kind: input, shape index: {}]
  %s17 = inlined_call_operand.hbm [shape: f32[2,16,48], index: 17, kind: output, shape index: {}]
  %s18 = sld [smem:[#allocation0]]
  $region121: #{tpu_custom_call.1} parent=0
    _
  %s20 = ssub.s32 1, %s18
  %s21 = scalar_select 0, %s20, %s18
  $region1: #{tpu_custom_call.1} parent=0
    #allocation6 [shape = 'u8[1024]{0}', space=vmem, size = 0x400, scoped, tag = 'input window, operand 5']
    #allocation7 [shape = 's32[2]{0}', space=sflag, size = 0x8, scoped, tag = 'scoped memory for tpu_custom_call.1']
    #allocation8 [shape = 's32[2]{0}', space=sflag, size = 0x8, scoped, tag = 'scoped memory for tpu_custom_call.1']
    #allocation9 [shape = 'u8[12288]{0}', space=vmem, size = 0x3000, scoped, tag = 'input window, operand 8, single buffered']
    #allocation10 [shape = 's32[1]{0}', space=sflag, size = 0x4, scoped, tag = 'scoped memory for tpu_custom_call.1']
    #allocation11 [shape = 'u8[12288]{0}', space=vmem, size = 0x3000, scoped, tag = 'input window, operand 12, single buffered']
    #allocation12 [shape = 'u8[16384]{0}', space=vmem, size = 0x4000, scoped, tag = 'output window, operand 0']
    %22 = vsyncpa [#allocation7], 0
    %s23 = scalar_lea.sflag [#allocation7], 1
    %24 = vsyncpa %s23, 0
    %25 = vsyncpa [#allocation10], 0
    %26 = vsyncpa [#allocation8], 0
    %s27 = scalar_lea.sflag [#allocation8], 1
    %28 = vsyncpa %s27, 0
    loop: start=0, step=1, limit=4
    $region2: #{tpu_custom_call.1} parent=1 // loop_pre_header
      _
    $region3: #{tpu_custom_call.1} parent=1 // loop_header
      %s30 = sphi 0, %s34
      %p31 = scmp.ge.s32.totalorder %s30, 4
      %s37 = sphi 0, %s56
      %s38 = sphi 0, %s52
      %s39 = sphi 0, %s48
      %s40 = sphi 0, %s37
      %s41 = sphi 0, %s38
      %s42 = sphi 0, %s39
      %s43 = sphi 0, %s40
      %s44 = sphi 0, %s41
      %s45 = sphi 0, %s42
      %s61 = sphi 0, %s63
      %s64 = sphi 0, %s61
      %s65 = sphi 0, %s64
      %s81 = sphi 0, %s65
      %s89 = sphi 0, %s91
      %s92 = sphi 0, %s89
      %s93 = sphi 0, %s92
      %s109 = sphi 0, %s93
      %s117 = sphi 0, %s119
      %s120 = sphi 0, %s117
      %s121 = sphi 0, %s120
      %s137 = sphi 0, %s121
      %s145 = sphi 0, %s147
      %s148 = sphi 0, %s145
      %s149 = sphi 0, %s148
      %s165 = sphi 0, %s149
      %s173 = sphi 0, %s175
      %s176 = sphi 0, %s173
      %s177 = sphi 0, %s176
      %s193 = sphi 0, %s177
      %s201 = sphi 0, %s203
      %s204 = sphi 0, %s201
      %s205 = sphi 0, %s204
      %s221 = sphi 0, %s205
      %s225 = sphi 0, %s225
      %s227 = sphi 0, %s225
      %s228 = sphi 0, %s227
      %s242 = sphi 0, %s228
      %s246 = sphi 0, %s246
      %s248 = sphi 0, %s246
      %s249 = sphi 0, %s248
      %s263 = sphi 0, %s249
      %s267 = sphi 0, %s267
      %s269 = sphi 0, %s267
      %s270 = sphi 0, %s269
      %s284 = sphi 0, %s270
      %s288 = sphi 0, %s288
      %s290 = sphi 0, %s288
      %s291 = sphi 0, %s290
      %s305 = sphi 0, %s291
      %s309 = sphi 0, %s309
      %s311 = sphi 0, %s309
      %s312 = sphi 0, %s311
      %s326 = sphi 0, %s312
      %s330 = sphi 0, %s330
      %s332 = sphi 0, %s330
      %s333 = sphi 0, %s332
      %s347 = sphi 0, %s333
      %s351 = sphi 0, %s351
      %s353 = sphi 0, %s351
      %s354 = sphi 0, %s353
      %s368 = sphi 0, %s354
      %s372 = sphi 0, %s372
      %s374 = sphi 0, %s372
      %s375 = sphi 0, %s374
      %s389 = sphi 0, %s375
      %s393 = sphi 0, %s393
      %s395 = sphi 0, %s393
      %s396 = sphi 0, %s395
      %s410 = sphi 0, %s396
      %s414 = sphi 0, %s414
      %s416 = sphi 0, %s414
      %s417 = sphi 0, %s416
      %s431 = sphi 0, %s417
      %s435 = sphi 0, %s435
      %s437 = sphi 0, %s435
      %s438 = sphi 0, %s437
      %s452 = sphi 0, %s438
      %s460 = sphi 0, %s462
      %s463 = sphi 0, %s460
      %s464 = sphi 0, %s463
      %s480 = sphi 0, %s464
    $region4: #{tpu_custom_call.1} parent=1 // loop_header_branch
      %33 = sbr.rel (%p31) target = $region8
    $region5: #{tpu_custom_call.1} parent=1 // loop_body
      %s35 = ssub.s32 %s30, 1
      %s36 = ssub.s32 %s30, 2
      %s46 = sadd.s32 1, %s39
      %p47 = scmp.ge.s32.totalorder %s46, 1
      %s48 = scalar_select %p47, 0, %s46
      %s49 = sadd.s32 1, %s38
      %s50 = scalar_select %p47, %s49, %s38
      %p51 = scmp.ge.s32.totalorder %s50, 1
      %s52 = scalar_select %p51, 0, %s50
      %s53 = sadd.s32 1, %s37
      %s54 = scalar_select %p51, %s53, %s37
      %p55 = scmp.ge.s32.totalorder %s54, 2
      %s56 = scalar_select %p55, 0, %s54
      %s57 = ssub.s32 %s37, %s56
      %s58 = ssub.s32 %s38, %s52
      %s59 = sor.u32 %s57, %s58
      %p60 = scmp.eq.s32.totalorder %s59, 0
      %s62 = sadd.s32 %s61, 1
      %s63 = scalar_select %p60, %s61, %s62
      %p66 = pneg %p60
      %p67 = scmp.eq.s32.totalorder %s30, 1
      %p68 = por %p66, %p67
      %p69 = scmp.ne.s32.totalorder %s61, %s64
      %p70 = scmp.eq.s32.totalorder %s30, 0
      %p71 = por %p69, %p70
      %p72 = scmp.ne.s32.totalorder %s61, %s64
      %p73 = scmp.eq.s32.totalorder %s35, 1
      %p74 = por %p72, %p73
      %p75 = scmp.ne.s32.totalorder %s64, %s65
      %p76 = scmp.eq.s32.totalorder %s35, 0
      %p77 = por %p75, %p76
      %p78 = scmp.ne.s32.totalorder %s64, %s65
      %p79 = scmp.eq.s32.totalorder %s36, 1
      %p80 = por %p78, %p79
      %p82 = scmp.ne.s32.totalorder %s65, %s81
      %p83 = scmp.eq.s32.totalorder %s36, 0
      %p84 = por %p82, %p83
      %s85 = ssub.s32 %s37, %s56
      %s86 = ssub.s32 %s38, %s52
      %s87 = sor.u32 %s85, %s86
      %p88 = scmp.eq.s32.totalorder %s87, 0
      %s90 = sadd.s32 %s89, 1
      %s91 = scalar_select %p88, %s89, %s90
      %p94 = pneg %p88
      %p95 = scmp.eq.s32.totalorder %s30, 1
      %p96 = por %p94, %p95
      %p97 = scmp.ne.s32.totalorder %s89, %s92
      %p98 = scmp.eq.s32.totalorder %s30, 0
      %p99 = por %p97, %p98
      %p100 = scmp.ne.s32.totalorder %s89, %s92
      %p101 = scmp.eq.s32.totalorder %s35, 1
      %p102 = por %p100, %p101
      %p103 = scmp.ne.s32.totalorder %s92, %s93
      %p104 = scmp.eq.s32.totalorder %s35, 0
      %p105 = por %p103, %p104
      %p106 = scmp.ne.s32.totalorder %s92, %s93
      %p107 = scmp.eq.s32.totalorder %s36, 1
      %p108 = por %p106, %p107
      %p110 = scmp.ne.s32.totalorder %s93, %s109
      %p111 = scmp.eq.s32.totalorder %s36, 0
      %p112 = por %p110, %p111
      %s113 = ssub.s32 %s37, %s56
      %s114 = ssub.s32 %s39, %s48
      %s115 = sor.u32 %s113, %s114
      %p116 = scmp.eq.s32.totalorder %s115, 0
      %s118 = sadd.s32 %s117, 1
      %s119 = scalar_select %p116, %s117, %s118
      %p122 = pneg %p116
      %p123 = scmp.eq.s32.totalorder %s30, 1
      %p124 = por %p122, %p123
      %p125 = scmp.ne.s32.totalorder %s117, %s120
      %p126 = scmp.eq.s32.totalorder %s30, 0
      %p127 = por %p125, %p126
      %p128 = scmp.ne.s32.totalorder %s117, %s120
      %p129 = scmp.eq.s32.totalorder %s35, 1
      %p130 = por %p128, %p129
      %p131 = scmp.ne.s32.totalorder %s120, %s121
      %p132 = scmp.eq.s32.totalorder %s35, 0
      %p133 = por %p131, %p132
      %p134 = scmp.ne.s32.totalorder %s120, %s121
      %p135 = scmp.eq.s32.totalorder %s36, 1
      %p136 = por %p134, %p135
      %p138 = scmp.ne.s32.totalorder %s121, %s137
      %p139 = scmp.eq.s32.totalorder %s36, 0
      %p140 = por %p138, %p139
      %s141 = ssub.s32 %s37, %s56
      %s142 = ssub.s32 %s39, %s48
      %s143 = sor.u32 %s141, %s142
      %p144 = scmp.eq.s32.totalorder %s143, 0
      %s146 = sadd.s32 %s145, 1
      %s147 = scalar_select %p144, %s145, %s146
      %p150 = pneg %p144
      %p151 = scmp.eq.s32.totalorder %s30, 1
      %p152 = por %p150, %p151
      %p153 = scmp.ne.s32.totalorder %s145, %s148
      %p154 = scmp.eq.s32.totalorder %s30, 0
      %p155 = por %p153, %p154
      %p156 = scmp.ne.s32.totalorder %s145, %s148
      %p157 = scmp.eq.s32.totalorder %s35, 1
      %p158 = por %p156, %p157
      %p159 = scmp.ne.s32.totalorder %s148, %s149
      %p160 = scmp.eq.s32.totalorder %s35, 0
      %p161 = por %p159, %p160
      %p162 = scmp.ne.s32.totalorder %s148, %s149
      %p163 = scmp.eq.s32.totalorder %s36, 1
      %p164 = por %p162, %p163
      %p166 = scmp.ne.s32.totalorder %s149, %s165
      %p167 = scmp.eq.s32.totalorder %s36, 0
      %p168 = por %p166, %p167
      %s169 = ssub.s32 %s37, %s56
      %s170 = ssub.s32 %s38, %s52
      %s171 = sor.u32 %s169, %s170
      %p172 = scmp.eq.s32.totalorder %s171, 0
      %s174 = sadd.s32 %s173, 1
      %s175 = scalar_select %p172, %s173, %s174
      %p178 = pneg %p172
      %p179 = scmp.eq.s32.totalorder %s30, 1
      %p180 = por %p178, %p179
      %p181 = scmp.ne.s32.totalorder %s173, %s176
      %p182 = scmp.eq.s32.totalorder %s30, 0
      %p183 = por %p181, %p182
      %p184 = scmp.ne.s32.totalorder %s173, %s176
      %p185 = scmp.eq.s32.totalorder %s35, 1
      %p186 = por %p184, %p185
      %p187 = scmp.ne.s32.totalorder %s176, %s177
      %p188 = scmp.eq.s32.totalorder %s35, 0
      %p189 = por %p187, %p188
      %p190 = scmp.ne.s32.totalorder %s176, %s177
      %p191 = scmp.eq.s32.totalorder %s36, 1
      %p192 = por %p190, %p191
      %p194 = scmp.ne.s32.totalorder %s177, %s193
      %p195 = scmp.eq.s32.totalorder %s36, 0
      %p196 = por %p194, %p195
      %s197 = ssub.s32 %s37, %s56
      %s198 = ssub.s32 %s39, %s48
      %s199 = sor.u32 %s197, %s198
      %p200 = scmp.eq.s32.totalorder %s199, 0
      %s202 = sadd.s32 %s201, 1
      %s203 = scalar_select %p200, %s201, %s202
      %p206 = pneg %p200
      %p207 = scmp.eq.s32.totalorder %s30, 1
      %p208 = por %p206, %p207
      %p209 = scmp.ne.s32.totalorder %s201, %s204
      %p210 = scmp.eq.s32.totalorder %s30, 0
      %p211 = por %p209, %p210
      %p212 = scmp.ne.s32.totalorder %s201, %s204
      %p213 = scmp.eq.s32.totalorder %s35, 1
      %p214 = por %p212, %p213
      %p215 = scmp.ne.s32.totalorder %s204, %s205
      %p216 = scmp.eq.s32.totalorder %s35, 0
      %p217 = por %p215, %p216
      %p218 = scmp.ne.s32.totalorder %s204, %s205
      %p219 = scmp.eq.s32.totalorder %s36, 1
      %p220 = por %p218, %p219
      %p222 = scmp.ne.s32.totalorder %s205, %s221
      %p223 = scmp.eq.s32.totalorder %s36, 0
      %p224 = por %p222, %p223
      %s226 = sadd.s32 %s225, 1
      %p229 = scmp.eq.s32.totalorder %s30, 1
      %p230 = scmp.ne.s32.totalorder %s225, %s227
      %p231 = scmp.eq.s32.totalorder %s30, 0
      %p232 = por %p230, %p231
      %p233 = scmp.ne.s32.totalorder %s225, %s227
      %p234 = scmp.eq.s32.totalorder %s35, 1
      %p235 = por %p233, %p234
      %p236 = scmp.ne.s32.totalorder %s227, %s228
      %p237 = scmp.eq.s32.totalorder %s35, 0
      %p238 = por %p236, %p237
      %p239 = scmp.ne.s32.totalorder %s227, %s228
      %p240 = scmp.eq.s32.totalorder %s36, 1
      %p241 = por %p239, %p240
      %p243 = scmp.ne.s32.totalorder %s228, %s242
      %p244 = scmp.eq.s32.totalorder %s36, 0
      %p245 = por %p243, %p244
      %s247 = sadd.s32 %s246, 1
      %p250 = scmp.eq.s32.totalorder %s30, 1
      %p251 = scmp.ne.s32.totalorder %s246, %s248
      %p252 = scmp.eq.s32.totalorder %s30, 0
      %p253 = por %p251, %p252
      %p254 = scmp.ne.s32.totalorder %s246, %s248
      %p255 = scmp.eq.s32.totalorder %s35, 1
      %p256 = por %p254, %p255
      %p257 = scmp.ne.s32.totalorder %s248, %s249
      %p258 = scmp.eq.s32.totalorder %s35, 0
      %p259 = por %p257, %p258
      %p260 = scmp.ne.s32.totalorder %s248, %s249
      %p261 = scmp.eq.s32.totalorder %s36, 1
      %p262 = por %p260, %p261
      %p264 = scmp.ne.s32.totalorder %s249, %s263
      %p265 = scmp.eq.s32.totalorder %s36, 0
      %p266 = por %p264, %p265
      %s268 = sadd.s32 %s267, 1
      %p271 = scmp.eq.s32.totalorder %s30, 1
      %p272 = scmp.ne.s32.totalorder %s267, %s269
      %p273 = scmp.eq.s32.totalorder %s30, 0
      %p274 = por %p272, %p273
      %p275 = scmp.ne.s32.totalorder %s267, %s269
      %p276 = scmp.eq.s32.totalorder %s35, 1
      %p277 = por %p275, %p276
      %p278 = scmp.ne.s32.totalorder %s269, %s270
      %p279 = scmp.eq.s32.totalorder %s35, 0
      %p280 = por %p278, %p279
      %p281 = scmp.ne.s32.totalorder %s269, %s270
      %p282 = scmp.eq.s32.totalorder %s36, 1
      %p283 = por %p281, %p282
      %p285 = scmp.ne.s32.totalorder %s270, %s284
      %p286 = scmp.eq.s32.totalorder %s36, 0
      %p287 = por %p285, %p286
      %s289 = sadd.s32 %s288, 1
      %p292 = scmp.eq.s32.totalorder %s30, 1
      %p293 = scmp.ne.s32.totalorder %s288, %s290
      %p294 = scmp.eq.s32.totalorder %s30, 0
      %p295 = por %p293, %p294
      %p296 = scmp.ne.s32.totalorder %s288, %s290
      %p297 = scmp.eq.s32.totalorder %s35, 1
      %p298 = por %p296, %p297
      %p299 = scmp.ne.s32.totalorder %s290, %s291
      %p300 = scmp.eq.s32.totalorder %s35, 0
      %p301 = por %p299, %p300
      %p302 = scmp.ne.s32.totalorder %s290, %s291
      %p303 = scmp.eq.s32.totalorder %s36, 1
      %p304 = por %p302, %p303
      %p306 = scmp.ne.s32.totalorder %s291, %s305
      %p307 = scmp.eq.s32.totalorder %s36, 0
      %p308 = por %p306, %p307
      %s310 = sadd.s32 %s309, 1
      %p313 = scmp.eq.s32.totalorder %s30, 1
      %p314 = scmp.ne.s32.totalorder %s309, %s311
      %p315 = scmp.eq.s32.totalorder %s30, 0
      %p316 = por %p314, %p315
      %p317 = scmp.ne.s32.totalorder %s309, %s311
      %p318 = scmp.eq.s32.totalorder %s35, 1
      %p319 = por %p317, %p318
      %p320 = scmp.ne.s32.totalorder %s311, %s312
      %p321 = scmp.eq.s32.totalorder %s35, 0
      %p322 = por %p320, %p321
      %p323 = scmp.ne.s32.totalorder %s311, %s312
      %p324 = scmp.eq.s32.totalorder %s36, 1
      %p325 = por %p323, %p324
      %p327 = scmp.ne.s32.totalorder %s312, %s326
      %p328 = scmp.eq.s32.totalorder %s36, 0
      %p329 = por %p327, %p328
      %s331 = sadd.s32 %s330, 1
      %p334 = scmp.eq.s32.totalorder %s30, 1
      %p335 = scmp.ne.s32.totalorder %s330, %s332
      %p336 = scmp.eq.s32.totalorder %s30, 0
      %p337 = por %p335, %p336
      %p338 = scmp.ne.s32.totalorder %s330, %s332
      %p339 = scmp.eq.s32.totalorder %s35, 1
      %p340 = por %p338, %p339
      %p341 = scmp.ne.s32.totalorder %s332, %s333
      %p342 = scmp.eq.s32.totalorder %s35, 0
      %p343 = por %p341, %p342
      %p344 = scmp.ne.s32.totalorder %s332, %s333
      %p345 = scmp.eq.s32.totalorder %s36, 1
      %p346 = por %p344, %p345
      %p348 = scmp.ne.s32.totalorder %s333, %s347
      %p349 = scmp.eq.s32.totalorder %s36, 0
      %p350 = por %p348, %p349
      %s352 = sadd.s32 %s351, 1
      %p355 = scmp.eq.s32.totalorder %s30, 1
      %p356 = scmp.ne.s32.totalorder %s351, %s353
      %p357 = scmp.eq.s32.totalorder %s30, 0
      %p358 = por %p356, %p357
      %p359 = scmp.ne.s32.totalorder %s351, %s353
      %p360 = scmp.eq.s32.totalorder %s35, 1
      %p361 = por %p359, %p360
      %p362 = scmp.ne.s32.totalorder %s353, %s354
      %p363 = scmp.eq.s32.totalorder %s35, 0
      %p364 = por %p362, %p363
      %p365 = scmp.ne.s32.totalorder %s353, %s354
      %p366 = scmp.eq.s32.totalorder %s36, 1
      %p367 = por %p365, %p366
      %p369 = scmp.ne.s32.totalorder %s354, %s368
      %p370 = scmp.eq.s32.totalorder %s36, 0
      %p371 = por %p369, %p370
      %s373 = sadd.s32 %s372, 1
      %p376 = scmp.eq.s32.totalorder %s30, 1
      %p377 = scmp.ne.s32.totalorder %s372, %s374
      %p378 = scmp.eq.s32.totalorder %s30, 0
      %p379 = por %p377, %p378
      %p380 = scmp.ne.s32.totalorder %s372, %s374
      %p381 = scmp.eq.s32.totalorder %s35, 1
      %p382 = por %p380, %p381
      %p383 = scmp.ne.s32.totalorder %s374, %s375
      %p384 = scmp.eq.s32.totalorder %s35, 0
      %p385 = por %p383, %p384
      %p386 = scmp.ne.s32.totalorder %s374, %s375
      %p387 = scmp.eq.s32.totalorder %s36, 1
      %p388 = por %p386, %p387
      %p390 = scmp.ne.s32.totalorder %s375, %s389
      %p391 = scmp.eq.s32.totalorder %s36, 0
      %p392 = por %p390, %p391
      %s394 = sadd.s32 %s393, 1
      %p397 = scmp.eq.s32.totalorder %s30, 1
      %p398 = scmp.ne.s32.totalorder %s393, %s395
      %p399 = scmp.eq.s32.totalorder %s30, 0
      %p400 = por %p398, %p399
      %p401 = scmp.ne.s32.totalorder %s393, %s395
      %p402 = scmp.eq.s32.totalorder %s35, 1
      %p403 = por %p401, %p402
      %p404 = scmp.ne.s32.totalorder %s395, %s396
      %p405 = scmp.eq.s32.totalorder %s35, 0
      %p406 = por %p404, %p405
      %p407 = scmp.ne.s32.totalorder %s395, %s396
      %p408 = scmp.eq.s32.totalorder %s36, 1
      %p409 = por %p407, %p408
      %p411 = scmp.ne.s32.totalorder %s396, %s410
      %p412 = scmp.eq.s32.totalorder %s36, 0
      %p413 = por %p411, %p412
      %s415 = sadd.s32 %s414, 1
      %p418 = scmp.eq.s32.totalorder %s30, 1
      %p419 = scmp.ne.s32.totalorder %s414, %s416
      %p420 = scmp.eq.s32.totalorder %s30, 0
      %p421 = por %p419, %p420
      %p422 = scmp.ne.s32.totalorder %s414, %s416
      %p423 = scmp.eq.s32.totalorder %s35, 1
      %p424 = por %p422, %p423
      %p425 = scmp.ne.s32.totalorder %s416, %s417
      %p426 = scmp.eq.s32.totalorder %s35, 0
      %p427 = por %p425, %p426
      %p428 = scmp.ne.s32.totalorder %s416, %s417
      %p429 = scmp.eq.s32.totalorder %s36, 1
      %p430 = por %p428, %p429
      %p432 = scmp.ne.s32.totalorder %s417, %s431
      %p433 = scmp.eq.s32.totalorder %s36, 0
      %p434 = por %p432, %p433
      %s436 = sadd.s32 %s435, 1
      %p439 = scmp.eq.s32.totalorder %s30, 1
      %p440 = scmp.ne.s32.totalorder %s435, %s437
      %p441 = scmp.eq.s32.totalorder %s30, 0
      %p442 = por %p440, %p441
      %p443 = scmp.ne.s32.totalorder %s435, %s437
      %p444 = scmp.eq.s32.totalorder %s35, 1
      %p445 = por %p443, %p444
      %p446 = scmp.ne.s32.totalorder %s437, %s438
      %p447 = scmp.eq.s32.totalorder %s35, 0
      %p448 = por %p446, %p447
      %p449 = scmp.ne.s32.totalorder %s437, %s438
      %p450 = scmp.eq.s32.totalorder %s36, 1
      %p451 = por %p449, %p450
      %p453 = scmp.ne.s32.totalorder %s438, %s452
      %p454 = scmp.eq.s32.totalorder %s36, 0
      %p455 = por %p453, %p454
      %s456 = ssub.s32 %s37, %s56
      %s457 = ssub.s32 %s38, %s52
      %s458 = sor.u32 %s456, %s457
      %p459 = scmp.eq.s32.totalorder %s458, 0
      %s461 = sadd.s32 %s460, 1
      %s462 = scalar_select %p459, %s460, %s461
      %p465 = pneg %p459
      %p466 = scmp.eq.s32.totalorder %s30, 1
      %p467 = por %p465, %p466
      %p468 = scmp.ne.s32.totalorder %s460, %s463
      %p469 = scmp.eq.s32.totalorder %s30, 0
      %p470 = por %p468, %p469
      %p471 = scmp.ne.s32.totalorder %s460, %s463
      %p472 = scmp.eq.s32.totalorder %s35, 1
      %p473 = por %p471, %p472
      %p474 = scmp.ne.s32.totalorder %s463, %s464
      %p475 = scmp.eq.s32.totalorder %s35, 0
      %p476 = por %p474, %p475
      %p477 = scmp.ne.s32.totalorder %s463, %s464
      %p478 = scmp.eq.s32.totalorder %s36, 1
      %p479 = por %p477, %p478
      %p481 = scmp.ne.s32.totalorder %s464, %s480
      %p482 = scmp.eq.s32.totalorder %s36, 0
      %p483 = por %p481, %p482
      %p484 = scmp.le.s32.totalorder 1, %s30
      %p485 = scmp.lt.s32.totalorder %s30, 3
      %p486 = pnand %p484, %p485
      %p487 = pneg %p486
      // Predicated region
      $region9: #{tpu_custom_call.1} parent=5 // pred_check
        _
      $region10: #{tpu_custom_call.1} parent=5 // pred_check_branch
        %489 = sbr.rel (%p486) target = $region12
      $region11: #{tpu_custom_call.1} parent=5 // pred_region
        %s490 = ssub.s32 %s30, 1
        // Predicated region
        $region13: #{tpu_custom_call.1} parent=11 // pred_check
          %p491 = pneg %p238
        $region14: #{tpu_custom_call.1} parent=11 // pred_check_branch
          %493 = sbr.rel (%p491) target = $region16
        $region15: #{tpu_custom_call.1} parent=11 // pred_region
          _
        $region16: #{tpu_custom_call.1} parent=11 // pred_fallthru
          _
        // Predicated region
        $region17: #{tpu_custom_call.1} parent=11 // pred_check
          %p494 = pneg %p259
        $region18: #{tpu_custom_call.1} parent=11 // pred_check_branch
          %496 = sbr.rel (%p494) target = $region20
        $region19: #{tpu_custom_call.1} parent=11 // pred_region
          _
        $region20: #{tpu_custom_call.1} parent=11 // pred_fallthru
          _
        // Predicated region
        $region21: #{tpu_custom_call.1} parent=11 // pred_check
          %p497 = pneg %p280
        $region22: #{tpu_custom_call.1} parent=11 // pred_check_branch
          %499 = sbr.rel (%p497) target = $region24
        $region23: #{tpu_custom_call.1} parent=11 // pred_region
          %s501 = ssub.s32 384, 384
          %502 = vsyncadd [#allocation10], %s501
          %s503 = sshll.u32 [#allocation9], 4
          %s504 = int_to_ptr.vmem [resolvable:$true] %s503
          %509 = dma.hbm_to_vmem [thread:$0]  %s8, 384, %s504, [#allocation10], 64, 64, 4
        $region24: #{tpu_custom_call.1} parent=11 // pred_fallthru
          _
        // Predicated region
        $region25: #{tpu_custom_call.1} parent=11 // pred_check
          %p510 = pneg %p301
        $region26: #{tpu_custom_call.1} parent=11 // pred_check_branch
          %512 = sbr.rel (%p510) target = $region28
        $region27: #{tpu_custom_call.1} parent=11 // pred_region
          _
        $region28: #{tpu_custom_call.1} parent=11 // pred_fallthru
          _
        // Predicated region
        $region29: #{tpu_custom_call.1} parent=11 // pred_check
          %p513 = pneg %p322
        $region30: #{tpu_custom_call.1} parent=11 // pred_check_branch
          %515 = sbr.rel (%p513) target = $region32
        $region31: #{tpu_custom_call.1} parent=11 // pred_region
          _
        $region32: #{tpu_custom_call.1} parent=11 // pred_fallthru
          _
        // Predicated region
        $region33: #{tpu_custom_call.1} parent=11 // pred_check
          %p516 = pneg %p343
        $region34: #{tpu_custom_call.1} parent=11 // pred_check_branch
          %518 = sbr.rel (%p516) target = $region36
        $region35: #{tpu_custom_call.1} parent=11 // pred_region
          _
        $region36: #{tpu_custom_call.1} parent=11 // pred_fallthru
          _
        // Predicated region
        $region37: #{tpu_custom_call.1} parent=11 // pred_check
          %p519 = pneg %p364
        $region38: #{tpu_custom_call.1} parent=11 // pred_check_branch
          %521 = sbr.rel (%p519) target = $region40
        $region39: #{tpu_custom_call.1} parent=11 // pred_region
          %s523 = ssub.s32 384, 384
          %524 = vsyncadd [#allocation10], %s523
          %s525 = sshll.u32 [#allocation11], 4
          %s526 = int_to_ptr.vmem [resolvable:$true] %s525
          %531 = dma.hbm_to_vmem [thread:$0]  %s12, 384, %s526, [#allocation10], 64, 64, 4
        $region40: #{tpu_custom_call.1} parent=11 // pred_fallthru
          _
        // Predicated region
        $region41: #{tpu_custom_call.1} parent=11 // pred_check
          %p532 = pneg %p385
        $region42: #{tpu_custom_call.1} parent=11 // pred_check_branch
          %534 = sbr.rel (%p532) target = $region44
        $region43: #{tpu_custom_call.1} parent=11 // pred_region
          _
        $region44: #{tpu_custom_call.1} parent=11 // pred_fallthru
          _
        // Predicated region
        $region45: #{tpu_custom_call.1} parent=11 // pred_check
          %p535 = pneg %p406
        $region46: #{tpu_custom_call.1} parent=11 // pred_check_branch
          %537 = sbr.rel (%p535) target = $region48
        $region47: #{tpu_custom_call.1} parent=11 // pred_region
          _
        $region48: #{tpu_custom_call.1} parent=11 // pred_fallthru
          _
        // Predicated region
        $region49: #{tpu_custom_call.1} parent=11 // pred_check
          %p538 = pneg %p427
        $region50: #{tpu_custom_call.1} parent=11 // pred_check_branch
          %540 = sbr.rel (%p538) target = $region52
        $region51: #{tpu_custom_call.1} parent=11 // pred_region
          _
        $region52: #{tpu_custom_call.1} parent=11 // pred_fallthru
          _
        // Predicated region
        $region53: #{tpu_custom_call.1} parent=11 // pred_check
          %p541 = pneg %p448
        $region54: #{tpu_custom_call.1} parent=11 // pred_check_branch
          %543 = sbr.rel (%p541) target = $region56
        $region55: #{tpu_custom_call.1} parent=11 // pred_region
          _
        $region56: #{tpu_custom_call.1} parent=11 // pred_fallthru
          _
      $region12: #{tpu_custom_call.1} parent=5 // pred_fallthru
        _
      %p544 = scmp.lt.s32.totalorder %s30, 2
      // Predicated region
      $region57: #{tpu_custom_call.1} parent=5 // pred_check
        %p545 = pneg %p544
      $region58: #{tpu_custom_call.1} parent=5 // pred_check_branch
        %547 = sbr.rel (%p545) target = $region60
      $region59: #{tpu_custom_call.1} parent=5 // pred_region
        // Predicated region
        $region61: #{tpu_custom_call.1} parent=59 // pred_check
          %p548 = pneg %p71
        $region62: #{tpu_custom_call.1} parent=59 // pred_check_branch
          %550 = sbr.rel (%p548) target = $region64
        $region63: #{tpu_custom_call.1} parent=59 // pred_region
          %s551 = smul.u32 2, %s38
          %p552 = scmp.lt.s32.totalorder %s37, 1
          %s553 = scalar_select %p552, %s37, 1
          %p554 = scmp.lt.s32.totalorder %s551, 1
          %s555 = scalar_select %p554, %s551, 1
          %s556 = smul.addr %s553, 2
          %s557 = sadd.s32 %s555, %s556
          %s558 = smul.addr %s557, 8
          %s559 = scalar_lea.vmem %s0, %s558
          %s560 = smul.u32 2, %s38
        $region64: #{tpu_custom_call.1} parent=59 // pred_fallthru
          _
        // Predicated region
        $region65: #{tpu_custom_call.1} parent=59 // pred_check
          %p561 = pneg %p99
        $region66: #{tpu_custom_call.1} parent=59 // pred_check_branch
          %563 = sbr.rel (%p561) target = $region68
        $region67: #{tpu_custom_call.1} parent=59 // pred_region
          %s564 = smul.u32 2, %s38
          %p565 = scmp.lt.s32.totalorder %s37, 1
          %s566 = scalar_select %p565, %s37, 1
          %p567 = scmp.lt.s32.totalorder %s564, 1
          %s568 = scalar_select %p567, %s564, 1
          %s569 = smul.addr %s566, 2
          %s570 = sadd.s32 %s568, %s569
          %s571 = smul.addr %s570, 8
          %s572 = scalar_lea.vmem %s1, %s571
          %s573 = smul.u32 2, %s38
        $region68: #{tpu_custom_call.1} parent=59 // pred_fallthru
          _
        // Predicated region
        $region69: #{tpu_custom_call.1} parent=59 // pred_check
          %p574 = pneg %p127
        $region70: #{tpu_custom_call.1} parent=59 // pred_check_branch
          %576 = sbr.rel (%p574) target = $region72
        $region71: #{tpu_custom_call.1} parent=59 // pred_region
          %s577 = smul.u32 2, %s39
          %p578 = scmp.lt.s32.totalorder %s37, 1
          %s579 = scalar_select %p578, %s37, 1
          %p580 = scmp.lt.s32.totalorder %s577, 1
          %s581 = scalar_select %p580, %s577, 1
          %s582 = smul.addr %s579, 2
          %s583 = sadd.s32 %s581, %s582
          %s584 = smul.addr %s583, 8
          %s585 = scalar_lea.vmem %s2, %s584
          %s586 = smul.u32 2, %s39
        $region72: #{tpu_custom_call.1} parent=59 // pred_fallthru
          _
        // Predicated region
        $region73: #{tpu_custom_call.1} parent=59 // pred_check
          %p587 = pneg %p155
        $region74: #{tpu_custom_call.1} parent=59 // pred_check_branch
          %589 = sbr.rel (%p587) target = $region76
        $region75: #{tpu_custom_call.1} parent=59 // pred_region
          %s590 = smul.u32 2, %s39
          %p591 = scmp.lt.s32.totalorder %s37, 1
          %s592 = scalar_select %p591, %s37, 1
          %p593 = scmp.lt.s32.totalorder %s590, 1
          %s594 = scalar_select %p593, %s590, 1
          %s595 = smul.addr %s592, 2
          %s596 = sadd.s32 %s594, %s595
          %s597 = smul.addr %s596, 8
          %s598 = scalar_lea.vmem %s3, %s597
          %s599 = smul.u32 2, %s39
        $region76: #{tpu_custom_call.1} parent=59 // pred_fallthru
          _
        // Predicated region
        $region77: #{tpu_custom_call.1} parent=59 // pred_check
          %p600 = pneg %p183
        $region78: #{tpu_custom_call.1} parent=59 // pred_check_branch
          %602 = sbr.rel (%p600) target = $region80
        $region79: #{tpu_custom_call.1} parent=59 // pred_region
          %s603 = smul.u32 2, %s38
          %p604 = scmp.lt.s32.totalorder %s37, 1
          %s605 = scalar_select %p604, %s37, 1
          %p606 = scmp.lt.s32.totalorder %s603, 1
          %s607 = scalar_select %p606, %s603, 1
          %s608 = smul.addr %s605, 2
          %s609 = sadd.s32 %s607, %s608
          %s610 = smul.addr %s609, 8
          %s611 = scalar_lea.vmem %s4, %s610
          %s612 = smul.u32 2, %s38
        $region80: #{tpu_custom_call.1} parent=59 // pred_fallthru
          _
        // Predicated region
        $region81: #{tpu_custom_call.1} parent=59 // pred_check
          %p613 = pneg %p211
        $region82: #{tpu_custom_call.1} parent=59 // pred_check_branch
          %615 = sbr.rel (%p613) target = $region84
        $region83: #{tpu_custom_call.1} parent=59 // pred_region
          %s616 = sand.u32 %s201, 1
          %s617 = scalar_lea.sflag [#allocation7], %s616
          %s618 = sand.u32 %s201, 1
          %s619 = scalar_lea.vmem [#allocation6], %s618
          %s621 = ssub.s32 16, 16
          %622 = vsyncadd %s617, %s621
          %s623 = sadd.s32 %s39, %s37
          %s624 = smul.addr %s623, 16
          %s625 = scalar_lea.hbm %s5, %s624
          %s627 = sshll.u32 %s619, 4
          %s628 = int_to_ptr.vmem [resolvable:$true] %s627
          %630 = dma.hbm_to_vmem [thread:$0]  %s625, 16, %s628, %s617
        $region84: #{tpu_custom_call.1} parent=59 // pred_fallthru
          _
      $region60: #{tpu_custom_call.1} parent=5 // pred_fallthru
        _
      %p631 = scmp.le.s32.totalorder 1, %s30
      %p632 = scmp.lt.s32.totalorder %s30, 3
      %p633 = pnand %p631, %p632
      %p634 = pneg %p633
      // Predicated region
      $region85: #{tpu_custom_call.1} parent=5 // pred_check
        _
      $region86: #{tpu_custom_call.1} parent=5 // pred_check_branch
        %636 = sbr.rel (%p633) target = $region88
      $region87: #{tpu_custom_call.1} parent=5 // pred_region
        %s637 = ssub.s32 %s30, 1
        %s638 = sand.u32 %s204, 1
        %s639 = scalar_lea.sflag [#allocation7], %s638
        %s640 = sand.u32 %s204, 1
        %s641 = scalar_lea.vmem [#allocation6], %s640
        // Predicated region
        $region89: #{tpu_custom_call.1} parent=87 // pred_check
          %p642 = pneg %p217
        $region90: #{tpu_custom_call.1} parent=87 // pred_check_branch
          %644 = sbr.rel (%p642) target = $region92
        $region91: #{tpu_custom_call.1} parent=87 // pred_region
          %645 = dma.done %s639, 16
        $region92: #{tpu_custom_call.1} parent=87 // pred_fallthru
          _
        // Predicated region
        $region93: #{tpu_custom_call.1} parent=87 // pred_check
          %p646 = pneg %p280
        $region94: #{tpu_custom_call.1} parent=87 // pred_check_branch
          %648 = sbr.rel (%p646) target = $region96
        $region95: #{tpu_custom_call.1} parent=87 // pred_region
          %649 = dma.done [#allocation10], 384
        $region96: #{tpu_custom_call.1} parent=87 // pred_fallthru
          _
        // Predicated region
        $region97: #{tpu_custom_call.1} parent=87 // pred_check
          %p650 = pneg %p364
        $region98: #{tpu_custom_call.1} parent=87 // pred_check_branch
          %652 = sbr.rel (%p650) target = $region100
        $region99: #{tpu_custom_call.1} parent=87 // pred_region
          %653 = dma.done [#allocation10], 384
        $region100: #{tpu_custom_call.1} parent=87 // pred_fallthru
          _
        %s654 = smul.u32 2, %s41
        %p655 = scmp.lt.s32.totalorder %s40, 1
        %s656 = scalar_select %p655, %s40, 1
        %p657 = scmp.lt.s32.totalorder %s654, 1
        %s658 = scalar_select %p657, %s654, 1
        %s659 = smul.addr %s656, 2
        %s660 = sadd.s32 %s658, %s659
        %s661 = smul.addr %s660, 8
        %s662 = scalar_lea.vmem %s0, %s661
        %p663 = pneg %p77
        %p664 = pneg %p74
        %s665 = smul.u32 2, %s41
        %p666 = scmp.lt.s32.totalorder %s40, 1
        %s667 = scalar_select %p666, %s40, 1
        %p668 = scmp.lt.s32.totalorder %s665, 1
        %s669 = scalar_select %p668, %s665, 1
        %s670 = smul.addr %s667, 2
        %s671 = sadd.s32 %s669, %s670
        %s672 = smul.addr %s671, 8
        %s673 = scalar_lea.vmem %s1, %s672
        %p674 = pneg %p105
        %p675 = pneg %p102
        %s676 = smul.u32 2, %s42
        %p677 = scmp.lt.s32.totalorder %s40, 1
        %s678 = scalar_select %p677, %s40, 1
        %p679 = scmp.lt.s32.totalorder %s676, 1
        %s680 = scalar_select %p679, %s676, 1
        %s681 = smul.addr %s678, 2
        %s682 = sadd.s32 %s680, %s681
        %s683 = smul.addr %s682, 8
        %s684 = scalar_lea.vmem %s2, %s683
        %p685 = pneg %p133
        %p686 = pneg %p130
        %s687 = smul.u32 2, %s42
        %p688 = scmp.lt.s32.totalorder %s40, 1
        %s689 = scalar_select %p688, %s40, 1
        %p690 = scmp.lt.s32.totalorder %s687, 1
        %s691 = scalar_select %p690, %s687, 1
        %s692 = smul.addr %s689, 2
        %s693 = sadd.s32 %s691, %s692
        %s694 = smul.addr %s693, 8
        %s695 = scalar_lea.vmem %s3, %s694
        %p696 = pneg %p161
        %p697 = pneg %p158
        %s698 = smul.u32 2, %s41
        %p699 = scmp.lt.s32.totalorder %s40, 1
        %s700 = scalar_select %p699, %s40, 1
        %p701 = scmp.lt.s32.totalorder %s698, 1
        %s702 = scalar_select %p701, %s698, 1
        %s703 = smul.addr %s700, 2
        %s704 = sadd.s32 %s702, %s703
        %s705 = smul.addr %s704, 8
        %s706 = scalar_lea.vmem %s4, %s705
        %p707 = pneg %p189
        %p708 = pneg %p186
        %s709 = sand.u32 %s204, 1
        %s710 = scalar_lea.sflag [#allocation7], %s709
        %s711 = sand.u32 %s204, 1
        %s712 = scalar_lea.vmem [#allocation6], %s711
        %p713 = pneg %p217
        %p714 = pneg %p214
        %p715 = pneg %p238
        %p716 = pneg %p235
        %p717 = pneg %p259
        %p718 = pneg %p256
        %p719 = pneg %p280
        %p720 = pneg %p277
        %p721 = pneg %p301
        %p722 = pneg %p298
        %p723 = pneg %p322
        %p724 = pneg %p319
        %p725 = pneg %p343
        %p726 = pneg %p340
        %p727 = pneg %p364
        %p728 = pneg %p361
        %p729 = pneg %p385
        %p730 = pneg %p382
        %p731 = pneg %p406
        %p732 = pneg %p403
        %p733 = pneg %p427
        %p734 = pneg %p424
        %p735 = pneg %p448
        %p736 = pneg %p445
        %p737 = pneg %p476
        %p738 = pneg %p473
        %s739 = sand.u32 %s463, 1
        %s740 = scalar_lea.sflag [#allocation8], %s739
        %s741 = sand.u32 %s463, 1
        %s742 = smul.addr %s741, 16
        %s743 = scalar_lea.vmem [#allocation12], %s742
        %s744 = smul.u32 2, %s41
        %p745 = scmp.lt.s32.totalorder %s40, 1
        %s746 = scalar_select %p745, %s40, 1
        %p747 = scmp.lt.s32.totalorder %s744, 1
        %s748 = scalar_select %p747, %s744, 1
        %s749 = smul.addr %s746, 2
        %s750 = sadd.s32 %s748, %s749
        %s751 = smul.addr %s750, 8
        %s752 = scalar_lea.vmem %s0, %s751
        %s753 = smul.u32 2, %s41
        %s754 = smul.u32 2, %s41
        %p755 = scmp.lt.s32.totalorder %s40, 1
        %s756 = scalar_select %p755, %s40, 1
        %p757 = scmp.lt.s32.totalorder %s754, 1
        %s758 = scalar_select %p757, %s754, 1
        %s759 = smul.addr %s756, 2
        %s760 = sadd.s32 %s758, %s759
        %s761 = smul.addr %s760, 8
        %s762 = scalar_lea.vmem %s1, %s761
        %s763 = smul.u32 2, %s41
        %s764 = smul.u32 2, %s42
        %p765 = scmp.lt.s32.totalorder %s40, 1
        %s766 = scalar_select %p765, %s40, 1
        %p767 = scmp.lt.s32.totalorder %s764, 1
        %s768 = scalar_select %p767, %s764, 1
        %s769 = smul.addr %s766, 2
        %s770 = sadd.s32 %s768, %s769
        %s771 = smul.addr %s770, 8
        %s772 = scalar_lea.vmem %s2, %s771
        %s773 = smul.u32 2, %s42
        %s774 = smul.u32 2, %s42
        %p775 = scmp.lt.s32.totalorder %s40, 1
        %s776 = scalar_select %p775, %s40, 1
        %p777 = scmp.lt.s32.totalorder %s774, 1
        %s778 = scalar_select %p777, %s774, 1
        %s779 = smul.addr %s776, 2
        %s780 = sadd.s32 %s778, %s779
        %s781 = smul.addr %s780, 8
        %s782 = scalar_lea.vmem %s3, %s781
        %s783 = smul.u32 2, %s42
        %s784 = smul.u32 2, %s41
        %p785 = scmp.lt.s32.totalorder %s40, 1
        %s786 = scalar_select %p785, %s40, 1
        %p787 = scmp.lt.s32.totalorder %s784, 1
        %s788 = scalar_select %p787, %s784, 1
        %s789 = smul.addr %s786, 2
        %s790 = sadd.s32 %s788, %s789
        %s791 = smul.addr %s790, 8
        %s792 = scalar_lea.vmem %s4, %s791
        %s793 = smul.u32 2, %s41
        %s794 = smul.u32 2, %s41
        %p796 = scmp.eq.s32.totalorder %s42, 0
        // Predicated region
        $region101: #{tpu_custom_call.1} parent=87 // pred_check
          %p797 = pneg %p796
        $region102: #{tpu_custom_call.1} parent=87 // pred_check_branch
          %799 = sbr.rel (%p797) target = $region104
        $region103: #{tpu_custom_call.1} parent=87 // pred_region
          %v800 = vld [vmem:[%s752] sm:$0xff]
          %v801 = vld [vmem:[%s752 + $0x8] sm:$0xff]
          %v802 = vld [vmem:[%s762] sm:$0xff]
          %v803 = vld [vmem:[%s762 + $0x8] sm:$0xff]
          %v804 = vadd.f32 %v800, %v802
          %v805 = vadd.f32 %v801, %v803
          %v806 = vpack.c.bf16 %v805, %v804
          %v807 = vld [vmem:[%s6] sm:$0xf]
          %v808 = vld [vmem:[%s6 + $0x4] sm:$0xf]
          %v809 = vld [vmem:[%s6 + $0x8] sm:$0xf]
          %v810 = vld [vmem:[%s6 + $0xc] sm:$0xf]
          %v811 = vld [vmem:[%s6 + $0x10] sm:$0xf]
          %v812 = vld [vmem:[%s6 + $0x14] sm:$0xf]
          %v819 = vunpack.c.l.b16 %v807
          %v820 = vunpack.c.l.b16 %v808
          %v821 = vunpack.c.l.b16 %v809
          %v822 = vunpack.c.l.b16 %v810
          %v823 = vunpack.c.l.b16 %v811
          %v824 = vunpack.c.l.b16 %v812
          %v825 = vpack.c.b16 %v820, %v819
          %v826 = vpack.c.b16 %v822, %v821
          %v827 = vpack.c.b16 %v824, %v823
          %vm828 = vcmask 392192
          %v830 = vsel %vm828, %v806, 0
          %v833 = vsel %vm828, %v825, 0
          %v836 = vsel %vm828, %v826, 0
          %v839 = vsel %vm828, %v827, 0
          %841 = vmatprep.subr.bf16.mxu0 0
          %842 = vmatpush1.bf16.xpose.msra.mxu0 0
          %843 = vmatprep.subr.bf16.mxu0 0
          %844 = vmatpush1.bf16.xpose.msra.mxu0 0
          %845 = vmatprep.subr.bf16.mxu0 0
          %846 = vmatpush1.bf16.xpose.msra.mxu0 0
          %847 = vmatprep.subr.bf16.mxu0 0
          %848 = vmatpush1.bf16.xpose.msra.mxu0 0
          %849 = vmatprep.subr.bf16.mxu0 0
          %850 = vmatpush1.bf16.xpose.msra.mxu0 0
          %851 = vmatprep.subr.bf16.mxu0 0
          %852 = vmatpush1.bf16.xpose.msra.mxu0 %v839
          %853 = vmatprep.subr.bf16.mxu0 0
          %854 = vmatpush1.bf16.xpose.msra.mxu0 %v836
          %855 = vmatprep.subr.bf16.mxu0 0
          %856 = vmatpush1.bf16.xpose.msra.mxu0 %v833
          %857 = vmatprep.subr.bf16.mxu0 0
          %858 = vmatpush2.bf16.xpose.msra.mxu0 0
          %859 = vmatprep.subr.bf16.mxu0 0
          %860 = vmatpush2.bf16.xpose.msra.mxu0 0
          %861 = vmatprep.subr.bf16.mxu0 0
          %862 = vmatpush2.bf16.xpose.msra.mxu0 0
          %863 = vmatprep.subr.bf16.mxu0 0
          %864 = vmatpush2.bf16.xpose.msra.mxu0 0
          %865 = vmatprep.subr.bf16.mxu0 0
          %866 = vmatpush2.bf16.xpose.msra.mxu0 0
          %867 = vmatprep.subr.bf16.mxu0 0
          %868 = vmatpush2.bf16.xpose.msra.mxu0 0
          %869 = vmatprep.subr.bf16.mxu0 0
          %870 = vmatpush2.bf16.xpose.msra.mxu0 0
          %871 = vmatprep.subr.bf16.mxu0 0
          %872 = vmatpush2.bf16.xpose.msra.mxu0 0
          %873 = vmatprep.mubr.bf16.mxu0 0
          %874 = vmatmul.mubr.bf16.gmra.mxu0 %v830
          %v875 = vpop.f32.mrf.mxu0
          %v876 = vadd.f32 0.0, %v875
          %v877 = vpop.f32.mrf.mxu0
          %v878 = vpop.f32.mrf.mxu0
          %v879 = vadd.f32 0.0, %v878
          %v880 = vpop.f32.mrf.mxu0
          %881 = vdwg.mxu0
          %v882 = vmul.f32 %v876, 0.28867513
          %v883 = vmul.f32 %v879, 0.28867513
          %886 = vrot.lane.b32.xlu0 %v882, 116
          %v887 = vpop.permute.xlu0 %886
          %888 = vrot.lane.b32.xlu0 %v883, 116
          %v889 = vpop.permute.xlu0 %888
          %892 = vrot.lane.b32.xlu0 %v882, 104
          %v893 = vpop.permute.xlu0 %892
          %894 = vrot.lane.b32.xlu0 %v883, 104
          %v895 = vpop.permute.xlu0 %894
          %898 = vrot.lane.b32.xlu0 %v882, 92
          %v899 = vpop.permute.xlu0 %898
          %900 = vrot.lane.b32.xlu0 %v883, 92
          %v901 = vpop.permute.xlu0 %900
          %v904 = vpack.c.bf16 %v883, %v882
          %v905 = vpack.c.bf16 %v889, %v887
          %v906 = vpack.c.bf16 %v895, %v893
          %v907 = vpack.c.bf16 %v901, %v899
          %v912 = vunpack.c.l.b16 %v904
          %v913 = vunpack.c.h.b16 %v904
          %v914 = vunpack.c.l.b16 %v905
          %v915 = vunpack.c.h.b16 %v905
          %v916 = vunpack.c.l.b16 %v906
          %v917 = vunpack.c.h.b16 %v906
          %v918 = vunpack.c.l.b16 %v907
          %v919 = vunpack.c.h.b16 %v907
          %v920 = vpack.c.b16 %v912, %v912
          %v921 = vpack.c.b16 %v913, %v913
          %v922 = vpack.c.b16 %v914, %v914
          %v923 = vpack.c.b16 %v915, %v915
          %v924 = vpack.c.b16 %v916, %v916
          %v925 = vpack.c.b16 %v917, %v917
          %v926 = vpack.c.b16 %v918, %v918
          %v927 = vpack.c.b16 %v919, %v919
          %vm936 = vcmask 93184
          %937 = vst.msk [vmem:[#allocation2] sm:$0xf] %vm936, %v920
          %938 = vst.msk [vmem:[#allocation2 + $0x4] sm:$0xf] %vm936, %v921
          %939 = vst.msk [vmem:[#allocation2 + $0x8] sm:$0xf] %vm936, %v922
          %940 = vst.msk [vmem:[#allocation2 + $0xc] sm:$0xf] %vm936, %v923
          %941 = vst.msk [vmem:[#allocation2 + $0x10] sm:$0xf] %vm936, %v924
          %942 = vst.msk [vmem:[#allocation2 + $0x14] sm:$0xf] %vm936, %v925
          %943 = vst.msk [vmem:[#allocation2 + $0x18] sm:$0xf] %vm936, %v926
          %944 = vst.msk [vmem:[#allocation2 + $0x1c] sm:$0xf] %vm936, %v927
          %vm945 = vcmask 7168
          %946 = vst.msk [vmem:[#allocation3] sm:$0xff] %vm945, -1e+30
          %947 = vst.msk [vmem:[#allocation3 + $0x8] sm:$0xff] %vm945, -1e+30
          %948 = vst.msk [vmem:[#allocation3 + $0x10] sm:$0xff] %vm945, -1e+30
          %949 = vst.msk [vmem:[#allocation3 + $0x18] sm:$0xff] %vm945, -1e+30
          %950 = vst.msk [vmem:[#allocation3 + $0x20] sm:$0xff] %vm945, -1e+30
          %951 = vst.msk [vmem:[#allocation3 + $0x28] sm:$0xff] %vm945, -1e+30
          %952 = vst.msk [vmem:[#allocation3 + $0x30] sm:$0xff] %vm945, -1e+30
          %953 = vst.msk [vmem:[#allocation3 + $0x38] sm:$0xff] %vm945, -1e+30
          %954 = vst.msk [vmem:[#allocation4] sm:$0xff] %vm945, 0.0
          %955 = vst.msk [vmem:[#allocation4 + $0x8] sm:$0xff] %vm945, 0.0
          %956 = vst.msk [vmem:[#allocation4 + $0x10] sm:$0xff] %vm945, 0.0
          %957 = vst.msk [vmem:[#allocation4 + $0x18] sm:$0xff] %vm945, 0.0
          %958 = vst.msk [vmem:[#allocation4 + $0x20] sm:$0xff] %vm945, 0.0
          %959 = vst.msk [vmem:[#allocation4 + $0x28] sm:$0xff] %vm945, 0.0
          %960 = vst.msk [vmem:[#allocation4 + $0x30] sm:$0xff] %vm945, 0.0
          %961 = vst.msk [vmem:[#allocation4 + $0x38] sm:$0xff] %vm945, 0.0
          %vm962 = vcmask 97280
          %963 = vst.msk [vmem:[#allocation5] sm:$0xff] %vm962, 0.0
          %964 = vst.msk [vmem:[#allocation5 + $0x8] sm:$0xff] %vm962, 0.0
          %965 = vst.msk [vmem:[#allocation5 + $0x10] sm:$0xff] %vm962, 0.0
          %966 = vst.msk [vmem:[#allocation5 + $0x18] sm:$0xff] %vm962, 0.0
          %967 = vst.msk [vmem:[#allocation5 + $0x20] sm:$0xff] %vm962, 0.0
          %968 = vst.msk [vmem:[#allocation5 + $0x28] sm:$0xff] %vm962, 0.0
          %969 = vst.msk [vmem:[#allocation5 + $0x30] sm:$0xff] %vm962, 0.0
          %970 = vst.msk [vmem:[#allocation5 + $0x38] sm:$0xff] %vm962, 0.0
        $region104: #{tpu_custom_call.1} parent=87 // pred_fallthru
          _
        %v971 = vld [vmem:[%s772] sm:$0xff]
        %v972 = vld [vmem:[%s772 + $0x8] sm:$0xff]
        %v973 = vld [vmem:[%s782] sm:$0xff]
        %v974 = vld [vmem:[%s782 + $0x8] sm:$0xff]
        %v975 = vadd.f32 %v971, %v973
        %v976 = vadd.f32 %v972, %v974
        %v977 = vpack.c.bf16 %v976, %v975
        %v978 = vld [vmem:[%s7] sm:$0xf]
        %v979 = vld [vmem:[%s7 + $0x4] sm:$0xf]
        %v980 = vld [vmem:[%s7 + $0x8] sm:$0xf]
        %v981 = vld [vmem:[%s7 + $0xc] sm:$0xf]
        %v982 = vld [vmem:[%s7 + $0x10] sm:$0xf]
        %v983 = vld [vmem:[%s7 + $0x14] sm:$0xf]
        %v990 = vunpack.c.l.b16 %v978
        %v991 = vunpack.c.l.b16 %v979
        %v992 = vunpack.c.l.b16 %v980
        %v993 = vunpack.c.l.b16 %v981
        %v994 = vunpack.c.l.b16 %v982
        %v995 = vunpack.c.l.b16 %v983
        %v996 = vpack.c.b16 %v991, %v990
        %v997 = vpack.c.b16 %v993, %v992
        %v998 = vpack.c.b16 %v995, %v994
        %vm999 = vcmask 392192
        %v1001 = vsel %vm999, %v977, 0
        %v1004 = vsel %vm999, %v996, 0
        %v1007 = vsel %vm999, %v997, 0
        %v1010 = vsel %vm999, %v998, 0
        %1012 = vmatprep.subr.bf16.mxu0 0
        %1013 = vmatpush1.bf16.xpose.msra.mxu0 0
        %1014 = vmatprep.subr.bf16.mxu0 0
        %1015 = vmatpush1.bf16.xpose.msra.mxu0 0
        %1016 = vmatprep.subr.bf16.mxu0 0
        %1017 = vmatpush1.bf16.xpose.msra.mxu0 0
        %1018 = vmatprep.subr.bf16.mxu0 0
        %1019 = vmatpush1.bf16.xpose.msra.mxu0 0
        %1020 = vmatprep.subr.bf16.mxu0 0
        %1021 = vmatpush1.bf16.xpose.msra.mxu0 0
        %1022 = vmatprep.subr.bf16.mxu0 0
        %1023 = vmatpush1.bf16.xpose.msra.mxu0 %v1010
        %1024 = vmatprep.subr.bf16.mxu0 0
        %1025 = vmatpush1.bf16.xpose.msra.mxu0 %v1007
        %1026 = vmatprep.subr.bf16.mxu0 0
        %1027 = vmatpush1.bf16.xpose.msra.mxu0 %v1004
        %1028 = vmatprep.subr.bf16.mxu0 0
        %1029 = vmatpush2.bf16.xpose.msra.mxu0 0
        %1030 = vmatprep.subr.bf16.mxu0 0
        %1031 = vmatpush2.bf16.xpose.msra.mxu0 0
        %1032 = vmatprep.subr.bf16.mxu0 0
        %1033 = vmatpush2.bf16.xpose.msra.mxu0 0
        %1034 = vmatprep.subr.bf16.mxu0 0
        %1035 = vmatpush2.bf16.xpose.msra.mxu0 0
        %1036 = vmatprep.subr.bf16.mxu0 0
        %1037 = vmatpush2.bf16.xpose.msra.mxu0 0
        %1038 = vmatprep.subr.bf16.mxu0 0
        %1039 = vmatpush2.bf16.xpose.msra.mxu0 0
        %1040 = vmatprep.subr.bf16.mxu0 0
        %1041 = vmatpush2.bf16.xpose.msra.mxu0 0
        %1042 = vmatprep.subr.bf16.mxu0 0
        %1043 = vmatpush2.bf16.xpose.msra.mxu0 0
        %1044 = vmatprep.mubr.bf16.mxu0 0
        %1045 = vmatmul.mubr.bf16.gmra.mxu0 %v1001
        %v1046 = vpop.f32.mrf.mxu0
        %v1047 = vadd.f32 0.0, %v1046
        %v1048 = vpop.f32.mrf.mxu0
        %v1049 = vpop.f32.mrf.mxu0
        %v1050 = vadd.f32 0.0, %v1049
        %v1051 = vpop.f32.mrf.mxu0
        %1052 = vdwg.mxu0
        %1055 = vrot.lane.b32.xlu0 %v1047, 116
        %v1056 = vpop.permute.xlu0 %1055
        %1057 = vrot.lane.b32.xlu0 %v1050, 116
        %v1058 = vpop.permute.xlu0 %1057
        %1061 = vrot.lane.b32.xlu0 %v1047, 104
        %v1062 = vpop.permute.xlu0 %1061
        %1063 = vrot.lane.b32.xlu0 %v1050, 104
        %v1064 = vpop.permute.xlu0 %1063
        %1067 = vrot.lane.b32.xlu0 %v1047, 92
        %v1068 = vpop.permute.xlu0 %1067
        %1069 = vrot.lane.b32.xlu0 %v1050, 92
        %v1070 = vpop.permute.xlu0 %1069
        %v1073 = vpack.c.bf16 %v1050, %v1047
        %v1074 = vpack.c.bf16 %v1058, %v1056
        %v1075 = vpack.c.bf16 %v1064, %v1062
        %v1076 = vpack.c.bf16 %v1070, %v1068
        %v1077 = vpack.c.bf16 %v972, %v971
        %v1078 = vld [vmem:[#allocation9] sm:$0xf]
        %v1079 = vld [vmem:[#allocation9 + $0x4] sm:$0xf]
        %v1080 = vld [vmem:[#allocation9 + $0x8] sm:$0xf]
        %v1081 = vld [vmem:[#allocation9 + $0xc] sm:$0xf]
        %v1082 = vld [vmem:[#allocation9 + $0x10] sm:$0xf]
        %v1083 = vld [vmem:[#allocation9 + $0x14] sm:$0xf]
        %v1090 = vunpack.c.l.b16 %v1078
        %v1091 = vunpack.c.l.b16 %v1079
        %v1092 = vunpack.c.l.b16 %v1080
        %v1093 = vunpack.c.l.b16 %v1081
        %v1094 = vunpack.c.l.b16 %v1082
        %v1095 = vunpack.c.l.b16 %v1083
        %v1096 = vpack.c.b16 %v1091, %v1090
        %v1097 = vpack.c.b16 %v1093, %v1092
        %v1098 = vpack.c.b16 %v1095, %v1094
        %v1100 = vsel %vm999, %v1077, 0
        %v1103 = vsel %vm999, %v1096, 0
        %v1106 = vsel %vm999, %v1097, 0
        %v1109 = vsel %vm999, %v1098, 0
        %1111 = vmatprep.subr.bf16.mxu0 0
        %1112 = vmatpush1.bf16.xpose.msra.mxu0 0
        %1113 = vmatprep.subr.bf16.mxu0 0
        %1114 = vmatpush1.bf16.xpose.msra.mxu0 0
        %1115 = vmatprep.subr.bf16.mxu0 0
        %1116 = vmatpush1.bf16.xpose.msra.mxu0 0
        %1117 = vmatprep.subr.bf16.mxu0 0
        %1118 = vmatpush1.bf16.xpose.msra.mxu0 0
        %1119 = vmatprep.subr.bf16.mxu0 0
        %1120 = vmatpush1.bf16.xpose.msra.mxu0 0
        %1121 = vmatprep.subr.bf16.mxu0 0
        %1122 = vmatpush1.bf16.xpose.msra.mxu0 %v1109
        %1123 = vmatprep.subr.bf16.mxu0 0
        %1124 = vmatpush1.bf16.xpose.msra.mxu0 %v1106
        %1125 = vmatprep.subr.bf16.mxu0 0
        %1126 = vmatpush1.bf16.xpose.msra.mxu0 %v1103
        %1127 = vmatprep.subr.bf16.mxu0 0
        %1128 = vmatpush2.bf16.xpose.msra.mxu0 0
        %1129 = vmatprep.subr.bf16.mxu0 0
        %1130 = vmatpush2.bf16.xpose.msra.mxu0 0
        %1131 = vmatprep.subr.bf16.mxu0 0
        %1132 = vmatpush2.bf16.xpose.msra.mxu0 0
        %1133 = vmatprep.subr.bf16.mxu0 0
        %1134 = vmatpush2.bf16.xpose.msra.mxu0 0
        %1135 = vmatprep.subr.bf16.mxu0 0
        %1136 = vmatpush2.bf16.xpose.msra.mxu0 0
        %1137 = vmatprep.subr.bf16.mxu0 0
        %1138 = vmatpush2.bf16.xpose.msra.mxu0 0
        %1139 = vmatprep.subr.bf16.mxu0 0
        %1140 = vmatpush2.bf16.xpose.msra.mxu0 0
        %1141 = vmatprep.subr.bf16.mxu0 0
        %1142 = vmatpush2.bf16.xpose.msra.mxu0 0
        %1143 = vmatprep.mubr.bf16.mxu0 0
        %1144 = vmatmul.mubr.bf16.gmra.mxu0 %v1100
        %v1145 = vpop.f32.mrf.mxu0
        %v1146 = vadd.f32 0.0, %v1145
        %v1147 = vpop.f32.mrf.mxu0
        %v1148 = vpop.f32.mrf.mxu0
        %v1149 = vadd.f32 0.0, %v1148
        %v1150 = vpop.f32.mrf.mxu0
        %1151 = vdwg.mxu0
        %1154 = vrot.lane.b32.xlu0 %v1146, 116
        %v1155 = vpop.permute.xlu0 %1154
        %1156 = vrot.lane.b32.xlu0 %v1149, 116
        %v1157 = vpop.permute.xlu0 %1156
        %1160 = vrot.lane.b32.xlu0 %v1146, 104
        %v1161 = vpop.permute.xlu0 %1160
        %1162 = vrot.lane.b32.xlu0 %v1149, 104
        %v1163 = vpop.permute.xlu0 %1162
        %1166 = vrot.lane.b32.xlu0 %v1146, 92
        %v1167 = vpop.permute.xlu0 %1166
        %1168 = vrot.lane.b32.xlu0 %v1149, 92
        %v1169 = vpop.permute.xlu0 %1168
        %v1172 = vpack.c.bf16 %v1149, %v1146
        %v1173 = vpack.c.bf16 %v1157, %v1155
        %v1174 = vpack.c.bf16 %v1163, %v1161
        %v1175 = vpack.c.bf16 %v1169, %v1167
        %v1176 = vld [vmem:[#allocation2] sm:$0xf]
        %v1177 = vld [vmem:[#allocation2 + $0x4] sm:$0xf]
        %v1178 = vld [vmem:[#allocation2 + $0x8] sm:$0xf]
        %v1179 = vld [vmem:[#allocation2 + $0xc] sm:$0xf]
        %v1180 = vld [vmem:[#allocation2 + $0x10] sm:$0xf]
        %v1181 = vld [vmem:[#allocation2 + $0x14] sm:$0xf]
        %v1182 = vld [vmem:[#allocation2 + $0x18] sm:$0xf]
        %v1183 = vld [vmem:[#allocation2 + $0x1c] sm:$0xf]
        %v1184 = vld [vmem:[%s792] sm:$0xff]
        %v1185 = vld [vmem:[%s792 + $0x8] sm:$0xff]
        %v1186 = vld [vmem:[%s641] sm:$0x1]
        %1188 = vset.pattern.permute.xlu0 0
        %1189 = vperm.xlu0 %1188, %v1184
        %v1190 = vpop.permute.xlu0 %1189
        %1193 = vset.pattern.permute.xlu0 0
        %1194 = vperm.xlu0 %1193, %v1185
        %v1195 = vpop.permute.xlu0 %1194
        %v1198 = vlaneseq
        %v1199 = vshrl.u32 %v1198, 7
        %v1200 = vsub.s32 0, %v1199
        %v1201 = vrot.slane %v1186, %v1200
        %v1203 = vmul.f32 %v1190, %v1201
        %v1204 = vmul.f32 %v1195, %v1201
        %v1207 = vunpack.c.l.b16 %v1176
        %v1208 = vunpack.c.l.b16 %v1177
        %v1209 = vpack.c.b16 %v1208, %v1207
        %vm1210 = vcmask 97280
        %v1212 = vsel %vm1210, %v1209, 0
        %v1215 = vsel %vm1210, %v1073, 0
        %1217 = vmatprep.subr.bf16.mxu0 0
        %1218 = vmatpush1.bf16.xpose.msra.mxu0 0
        %1219 = vmatprep.subr.bf16.mxu0 0
        %1220 = vmatpush1.bf16.xpose.msra.mxu0 0
        %1221 = vmatprep.subr.bf16.mxu0 0
        %1222 = vmatpush1.bf16.xpose.msra.mxu0 0
        %1223 = vmatprep.subr.bf16.mxu0 0
        %1224 = vmatpush1.bf16.xpose.msra.mxu0 0
        %1225 = vmatprep.subr.bf16.mxu0 0
        %1226 = vmatpush1.bf16.xpose.msra.mxu0 0
        %1227 = vmatprep.subr.bf16.mxu0 0
        %1228 = vmatpush1.bf16.xpose.msra.mxu0 0
        %1229 = vmatprep.subr.bf16.mxu0 0
        %1230 = vmatpush1.bf16.xpose.msra.mxu0 0
        %1231 = vmatprep.subr.bf16.mxu0 0
        %1232 = vmatpush1.bf16.xpose.msra.mxu0 %v1215
        %1233 = vmatprep.subr.bf16.mxu0 0
        %1234 = vmatpush2.bf16.xpose.msra.mxu0 0
        %1235 = vmatprep.subr.bf16.mxu0 0
        %1236 = vmatpush2.bf16.xpose.msra.mxu0 0
        %1237 = vmatprep.subr.bf16.mxu0 0
        %1238 = vmatpush2.bf16.xpose.msra.mxu0 0
        %1239 = vmatprep.subr.bf16.mxu0 0
        %1240 = vmatpush2.bf16.xpose.msra.mxu0 0
        %1241 = vmatprep.subr.bf16.mxu0 0
        %1242 = vmatpush2.bf16.xpose.msra.mxu0 0
        %1243 = vmatprep.subr.bf16.mxu0 0
        %1244 = vmatpush2.bf16.xpose.msra.mxu0 0
        %1245 = vmatprep.subr.bf16.mxu0 0
        %1246 = vmatpush2.bf16.xpose.msra.mxu0 0
        %1247 = vmatprep.subr.bf16.mxu0 0
        %1248 = vmatpush2.bf16.xpose.msra.mxu0 0
        %1249 = vmatprep.mubr.bf16.mxu0 0
        %1250 = vmatmul.mubr.bf16.gmra.mxu0 %v1212
        %v1251 = vpop.f32.mrf.mxu0
        %v1252 = vadd.f32 %v1203, %v1251
        %v1253 = vpop.f32.mrf.mxu0
        %v1254 = vpop.f32.mrf.mxu0
        %v1255 = vadd.f32 %v1204, %v1254
        %v1256 = vpop.f32.mrf.mxu0
        %1257 = vdwg.mxu0
        %v1260 = vunpack.c.l.b16 %v1178
        %v1261 = vunpack.c.l.b16 %v1179
        %v1262 = vpack.c.b16 %v1261, %v1260
        %v1264 = vsel %vm1210, %v1262, 0
        %v1267 = vsel %vm1210, %v1074, 0
        %1269 = vmatprep.subr.bf16.mxu0 0
        %1270 = vmatpush1.bf16.xpose.msra.mxu0 0
        %1271 = vmatprep.subr.bf16.mxu0 0
        %1272 = vmatpush1.bf16.xpose.msra.mxu0 0
        %1273 = vmatprep.subr.bf16.mxu0 0
        %1274 = vmatpush1.bf16.xpose.msra.mxu0 0
        %1275 = vmatprep.subr.bf16.mxu0 0
        %1276 = vmatpush1.bf16.xpose.msra.mxu0 0
        %1277 = vmatprep.subr.bf16.mxu0 0
        %1278 = vmatpush1.bf16.xpose.msra.mxu0 0
        %1279 = vmatprep.subr.bf16.mxu0 0
        %1280 = vmatpush1.bf16.xpose.msra.mxu0 0
        %1281 = vmatprep.subr.bf16.mxu0 0
        %1282 = vmatpush1.bf16.xpose.msra.mxu0 0
        %1283 = vmatprep.subr.bf16.mxu0 0
        %1284 = vmatpush1.bf16.xpose.msra.mxu0 %v1267
        %1285 = vmatprep.subr.bf16.mxu0 0
        %1286 = vmatpush2.bf16.xpose.msra.mxu0 0
        %1287 = vmatprep.subr.bf16.mxu0 0
        %1288 = vmatpush2.bf16.xpose.msra.mxu0 0
        %1289 = vmatprep.subr.bf16.mxu0 0
        %1290 = vmatpush2.bf16.xpose.msra.mxu0 0
        %1291 = vmatprep.subr.bf16.mxu0 0
        %1292 = vmatpush2.bf16.xpose.msra.mxu0 0
        %1293 = vmatprep.subr.bf16.mxu0 0
        %1294 = vmatpush2.bf16.xpose.msra.mxu0 0
        %1295 = vmatprep.subr.bf16.mxu0 0
        %1296 = vmatpush2.bf16.xpose.msra.mxu0 0
        %1297 = vmatprep.subr.bf16.mxu0 0
        %1298 = vmatpush2.bf16.xpose.msra.mxu0 0
        %1299 = vmatprep.subr.bf16.mxu0 0
        %1300 = vmatpush2.bf16.xpose.msra.mxu0 0
        %1301 = vmatprep.mubr.bf16.mxu0 0
        %1302 = vmatmul.mubr.bf16.gmra.mxu0 %v1264
        %v1303 = vpop.f32.mrf.mxu0
        %v1304 = vadd.f32 %v1203, %v1303
        %v1305 = vpop.f32.mrf.mxu0
        %v1306 = vpop.f32.mrf.mxu0
        %v1307 = vadd.f32 %v1204, %v1306
        %v1308 = vpop.f32.mrf.mxu0
        %1309 = vdwg.mxu0
        %v1312 = vunpack.c.l.b16 %v1180
        %v1313 = vunpack.c.l.b16 %v1181
        %v1314 = vpack.c.b16 %v1313, %v1312
        %v1316 = vsel %vm1210, %v1314, 0
        %v1319 = vsel %vm1210, %v1075, 0
        %1321 = vmatprep.subr.bf16.mxu0 0
        %1322 = vmatpush1.bf16.xpose.msra.mxu0 0
        %1323 = vmatprep.subr.bf16.mxu0 0
        %1324 = vmatpush1.bf16.xpose.msra.mxu0 0
        %1325 = vmatprep.subr.bf16.mxu0 0
        %1326 = vmatpush1.bf16.xpose.msra.mxu0 0
        %1327 = vmatprep.subr.bf16.mxu0 0
        %1328 = vmatpush1.bf16.xpose.msra.mxu0 0
        %1329 = vmatprep.subr.bf16.mxu0 0
        %1330 = vmatpush1.bf16.xpose.msra.mxu0 0
        %1331 = vmatprep.subr.bf16.mxu0 0
        %1332 = vmatpush1.bf16.xpose.msra.mxu0 0
        %1333 = vmatprep.subr.bf16.mxu0 0
        %1334 = vmatpush1.bf16.xpose.msra.mxu0 0
        %1335 = vmatprep.subr.bf16.mxu0 0
        %1336 = vmatpush1.bf16.xpose.msra.mxu0 %v1319
        %1337 = vmatprep.subr.bf16.mxu0 0
        %1338 = vmatpush2.bf16.xpose.msra.mxu0 0
        %1339 = vmatprep.subr.bf16.mxu0 0
        %1340 = vmatpush2.bf16.xpose.msra.mxu0 0
        %1341 = vmatprep.subr.bf16.mxu0 0
        %1342 = vmatpush2.bf16.xpose.msra.mxu0 0
        %1343 = vmatprep.subr.bf16.mxu0 0
        %1344 = vmatpush2.bf16.xpose.msra.mxu0 0
        %1345 = vmatprep.subr.bf16.mxu0 0
        %1346 = vmatpush2.bf16.xpose.msra.mxu0 0
        %1347 = vmatprep.subr.bf16.mxu0 0
        %1348 = vmatpush2.bf16.xpose.msra.mxu0 0
        %1349 = vmatprep.subr.bf16.mxu0 0
        %1350 = vmatpush2.bf16.xpose.msra.mxu0 0
        %1351 = vmatprep.subr.bf16.mxu0 0
        %1352 = vmatpush2.bf16.xpose.msra.mxu0 0
        %1353 = vmatprep.mubr.bf16.mxu0 0
        %1354 = vmatmul.mubr.bf16.gmra.mxu0 %v1316
        %v1355 = vpop.f32.mrf.mxu0
        %v1356 = vadd.f32 %v1203, %v1355
        %v1357 = vpop.f32.mrf.mxu0
        %v1358 = vpop.f32.mrf.mxu0
        %v1359 = vadd.f32 %v1204, %v1358
        %v1360 = vpop.f32.mrf.mxu0
        %1361 = vdwg.mxu0
        %v1364 = vunpack.c.l.b16 %v1182
        %v1365 = vunpack.c.l.b16 %v1183
        %v1366 = vpack.c.b16 %v1365, %v1364
        %v1368 = vsel %vm1210, %v1366, 0
        %v1371 = vsel %vm1210, %v1076, 0
        %1373 = vmatprep.subr.bf16.mxu0 0
        %1374 = vmatpush1.bf16.xpose.msra.mxu0 0
        %1375 = vmatprep.subr.bf16.mxu0 0
        %1376 = vmatpush1.bf16.xpose.msra.mxu0 0
        %1377 = vmatprep.subr.bf16.mxu0 0
        %1378 = vmatpush1.bf16.xpose.msra.mxu0 0
        %1379 = vmatprep.subr.bf16.mxu0 0
        %1380 = vmatpush1.bf16.xpose.msra.mxu0 0
        %1381 = vmatprep.subr.bf16.mxu0 0
        %1382 = vmatpush1.bf16.xpose.msra.mxu0 0
        %1383 = vmatprep.subr.bf16.mxu0 0
        %1384 = vmatpush1.bf16.xpose.msra.mxu0 0
        %1385 = vmatprep.subr.bf16.mxu0 0
        %1386 = vmatpush1.bf16.xpose.msra.mxu0 0
        %1387 = vmatprep.subr.bf16.mxu0 0
        %1388 = vmatpush1.bf16.xpose.msra.mxu0 %v1371
        %1389 = vmatprep.subr.bf16.mxu0 0
        %1390 = vmatpush2.bf16.xpose.msra.mxu0 0
        %1391 = vmatprep.subr.bf16.mxu0 0
        %1392 = vmatpush2.bf16.xpose.msra.mxu0 0
        %1393 = vmatprep.subr.bf16.mxu0 0
        %1394 = vmatpush2.bf16.xpose.msra.mxu0 0
        %1395 = vmatprep.subr.bf16.mxu0 0
        %1396 = vmatpush2.bf16.xpose.msra.mxu0 0
        %1397 = vmatprep.subr.bf16.mxu0 0
        %1398 = vmatpush2.bf16.xpose.msra.mxu0 0
        %1399 = vmatprep.subr.bf16.mxu0 0
        %1400 = vmatpush2.bf16.xpose.msra.mxu0 0
        %1401 = vmatprep.subr.bf16.mxu0 0
        %1402 = vmatpush2.bf16.xpose.msra.mxu0 0
        %1403 = vmatprep.subr.bf16.mxu0 0
        %1404 = vmatpush2.bf16.xpose.msra.mxu0 0
        %1405 = vmatprep.mubr.bf16.mxu0 0
        %1406 = vmatmul.mubr.bf16.gmra.mxu0 %v1368
        %v1407 = vpop.f32.mrf.mxu0
        %v1408 = vadd.f32 %v1203, %v1407
        %v1409 = vpop.f32.mrf.mxu0
        %v1410 = vpop.f32.mrf.mxu0
        %v1411 = vadd.f32 %v1204, %v1410
        %v1412 = vpop.f32.mrf.mxu0
        %1413 = vdwg.mxu0
        %v1414 = vld [vmem:[#allocation3] sm:$0xff]
        %v1415 = vld [vmem:[#allocation3 + $0x8] sm:$0xff]
        %v1416 = vld [vmem:[#allocation3 + $0x10] sm:$0xff]
        %v1417 = vld [vmem:[#allocation3 + $0x18] sm:$0xff]
        %v1418 = vld [vmem:[#allocation3 + $0x20] sm:$0xff]
        %v1419 = vld [vmem:[#allocation3 + $0x28] sm:$0xff]
        %v1420 = vld [vmem:[#allocation3 + $0x30] sm:$0xff]
        %v1421 = vld [vmem:[#allocation3 + $0x38] sm:$0xff]
        %vm1422 = vcmask 130048
        %v1423 = vsel %vm1422, %v1252, -inf
        %1424 = vmax.xlane.f32.xlu0 %v1423
        %v1425 = vpop.xlane.xlu0 %1424
        %v1426 = vsel %vm1422, %v1255, -inf
        %1427 = vmax.xlane.f32.xlu0 %v1426
        %v1428 = vpop.xlane.xlu0 %1427
        %v1429 = vsel %vm1422, %v1304, -inf
        %1430 = vmax.xlane.f32.xlu0 %v1429
        %v1431 = vpop.xlane.xlu0 %1430
        %v1432 = vsel %vm1422, %v1307, -inf
        %1433 = vmax.xlane.f32.xlu0 %v1432
        %v1434 = vpop.xlane.xlu0 %1433
        %v1435 = vsel %vm1422, %v1356, -inf
        %1436 = vmax.xlane.f32.xlu0 %v1435
        %v1437 = vpop.xlane.xlu0 %1436
        %v1438 = vsel %vm1422, %v1359, -inf
        %1439 = vmax.xlane.f32.xlu0 %v1438
        %v1440 = vpop.xlane.xlu0 %1439
        %v1441 = vsel %vm1422, %v1408, -inf
        %1442 = vmax.xlane.f32.xlu0 %v1441
        %v1443 = vpop.xlane.xlu0 %1442
        %v1444 = vsel %vm1422, %v1411, -inf
        %1445 = vmax.xlane.f32.xlu0 %v1444
        %v1446 = vpop.xlane.xlu0 %1445
        %v1447 = vmax.f32 %v1414, %v1425
        %v1448 = vmax.f32 %v1415, %v1428
        %v1449 = vmax.f32 %v1416, %v1431
        %v1450 = vmax.f32 %v1417, %v1434
        %v1451 = vmax.f32 %v1418, %v1437
        %v1452 = vmax.f32 %v1419, %v1440
        %v1453 = vmax.f32 %v1420, %v1443
        %v1454 = vmax.f32 %v1421, %v1446
        %v1455 = vsub.f32 %v1414, %v1447
        %v1456 = vsub.f32 %v1415, %v1448
        %v1457 = vsub.f32 %v1416, %v1449
        %v1458 = vsub.f32 %v1417, %v1450
        %v1459 = vsub.f32 %v1418, %v1451
        %v1460 = vsub.f32 %v1419, %v1452
        %v1461 = vsub.f32 %v1420, %v1453
        %v1462 = vsub.f32 %v1421, %v1454
        %v1463 = vmul.f32 %v1455, 1.442695
        %v1464 = vpow.pop %v1463
        %v1465 = vmul.f32 %v1456, 1.442695
        %v1466 = vpow.pop %v1465
        %v1467 = vmul.f32 %v1457, 1.442695
        %v1468 = vpow.pop %v1467
        %v1469 = vmul.f32 %v1458, 1.442695
        %v1470 = vpow.pop %v1469
        %v1471 = vmul.f32 %v1459, 1.442695
        %v1472 = vpow.pop %v1471
        %v1473 = vmul.f32 %v1460, 1.442695
        %v1474 = vpow.pop %v1473
        %v1475 = vmul.f32 %v1461, 1.442695
        %v1476 = vpow.pop %v1475
        %v1477 = vmul.f32 %v1462, 1.442695
        %v1478 = vpow.pop %v1477
        %1480 = vset.pattern.permute.xlu0 0
        %1481 = vperm.xlu0 %1480, %v1447
        %v1482 = vpop.permute.xlu0 %1481
        %1485 = vset.pattern.permute.xlu0 0
        %1486 = vperm.xlu0 %1485, %v1448
        %v1487 = vpop.permute.xlu0 %1486
        %1490 = vset.pattern.permute.xlu0 0
        %1491 = vperm.xlu0 %1490, %v1449
        %v1492 = vpop.permute.xlu0 %1491
        %1495 = vset.pattern.permute.xlu0 0
        %1496 = vperm.xlu0 %1495, %v1450
        %v1497 = vpop.permute.xlu0 %1496
        %1500 = vset.pattern.permute.xlu0 0
        %1501 = vperm.xlu0 %1500, %v1451
        %v1502 = vpop.permute.xlu0 %1501
        %1505 = vset.pattern.permute.xlu0 0
        %1506 = vperm.xlu0 %1505, %v1452
        %v1507 = vpop.permute.xlu0 %1506
        %1510 = vset.pattern.permute.xlu0 0
        %1511 = vperm.xlu0 %1510, %v1453
        %v1512 = vpop.permute.xlu0 %1511
        %1515 = vset.pattern.permute.xlu0 0
        %1516 = vperm.xlu0 %1515, %v1454
        %v1517 = vpop.permute.xlu0 %1516
        %v1519 = vsub.f32 %v1252, %v1482
        %v1520 = vsub.f32 %v1255, %v1487
        %v1521 = vsub.f32 %v1304, %v1492
        %v1522 = vsub.f32 %v1307, %v1497
        %v1523 = vsub.f32 %v1356, %v1502
        %v1524 = vsub.f32 %v1359, %v1507
        %v1525 = vsub.f32 %v1408, %v1512
        %v1526 = vsub.f32 %v1411, %v1517
        %v1527 = vmul.f32 %v1519, 1.442695
        %v1528 = vpow.pop %v1527
        %v1529 = vmul.f32 %v1520, 1.442695
        %v1530 = vpow.pop %v1529
        %v1531 = vmul.f32 %v1521, 1.442695
        %v1532 = vpow.pop %v1531
        %v1533 = vmul.f32 %v1522, 1.442695
        %v1534 = vpow.pop %v1533
        %v1535 = vmul.f32 %v1523, 1.442695
        %v1536 = vpow.pop %v1535
        %v1537 = vmul.f32 %v1524, 1.442695
        %v1538 = vpow.pop %v1537
        %v1539 = vmul.f32 %v1525, 1.442695
        %v1540 = vpow.pop %v1539
        %v1541 = vmul.f32 %v1526, 1.442695
        %v1542 = vpow.pop %v1541
        %v1543 = vld [vmem:[#allocation4] sm:$0xff]
        %v1544 = vld [vmem:[#allocation4 + $0x8] sm:$0xff]
        %v1545 = vld [vmem:[#allocation4 + $0x10] sm:$0xff]
        %v1546 = vld [vmem:[#allocation4 + $0x18] sm:$0xff]
        %v1547 = vld [vmem:[#allocation4 + $0x20] sm:$0xff]
        %v1548 = vld [vmem:[#allocation4 + $0x28] sm:$0xff]
        %v1549 = vld [vmem:[#allocation4 + $0x30] sm:$0xff]
        %v1550 = vld [vmem:[#allocation4 + $0x38] sm:$0xff]
        %v1551 = vmul.f32 %v1464, %v1543
        %v1552 = vmul.f32 %v1466, %v1544
        %v1553 = vmul.f32 %v1468, %v1545
        %v1554 = vmul.f32 %v1470, %v1546
        %v1555 = vmul.f32 %v1472, %v1547
        %v1556 = vmul.f32 %v1474, %v1548
        %v1557 = vmul.f32 %v1476, %v1549
        %v1558 = vmul.f32 %v1478, %v1550
        %v1559 = vsel %vm1422, %v1528, 0.0
        %1560 = vadd.xlane.f32.xlu0 %v1559
        %v1561 = vpop.xlane.xlu0 %1560
        %v1562 = vsel %vm1422, %v1530, 0.0
        %1563 = vadd.xlane.f32.xlu0 %v1562
        %v1564 = vpop.xlane.xlu0 %1563
        %v1565 = vsel %vm1422, %v1532, 0.0
        %1566 = vadd.xlane.f32.xlu0 %v1565
        %v1567 = vpop.xlane.xlu0 %1566
        %v1568 = vsel %vm1422, %v1534, 0.0
        %1569 = vadd.xlane.f32.xlu0 %v1568
        %v1570 = vpop.xlane.xlu0 %1569
        %v1571 = vsel %vm1422, %v1536, 0.0
        %1572 = vadd.xlane.f32.xlu0 %v1571
        %v1573 = vpop.xlane.xlu0 %1572
        %v1574 = vsel %vm1422, %v1538, 0.0
        %1575 = vadd.xlane.f32.xlu0 %v1574
        %v1576 = vpop.xlane.xlu0 %1575
        %v1577 = vsel %vm1422, %v1540, 0.0
        %1578 = vadd.xlane.f32.xlu0 %v1577
        %v1579 = vpop.xlane.xlu0 %1578
        %v1580 = vsel %vm1422, %v1542, 0.0
        %1581 = vadd.xlane.f32.xlu0 %v1580
        %v1582 = vpop.xlane.xlu0 %1581
        %v1583 = vadd.f32 %v1551, %v1561
        %v1584 = vadd.f32 %v1552, %v1564
        %v1585 = vadd.f32 %v1553, %v1567
        %v1586 = vadd.f32 %v1554, %v1570
        %v1587 = vadd.f32 %v1555, %v1573
        %v1588 = vadd.f32 %v1556, %v1576
        %v1589 = vadd.f32 %v1557, %v1579
        %v1590 = vadd.f32 %v1558, %v1582
        %vm1591 = vcmask 7168
        %1592 = vst.msk [vmem:[#allocation4] sm:$0xff] %vm1591, %v1583
        %1593 = vst.msk [vmem:[#allocation4 + $0x8] sm:$0xff] %vm1591, %v1584
        %1594 = vst.msk [vmem:[#allocation4 + $0x10] sm:$0xff] %vm1591, %v1585
        %1595 = vst.msk [vmem:[#allocation4 + $0x18] sm:$0xff] %vm1591, %v1586
        %1596 = vst.msk [vmem:[#allocation4 + $0x20] sm:$0xff] %vm1591, %v1587
        %1597 = vst.msk [vmem:[#allocation4 + $0x28] sm:$0xff] %vm1591, %v1588
        %1598 = vst.msk [vmem:[#allocation4 + $0x30] sm:$0xff] %vm1591, %v1589
        %1599 = vst.msk [vmem:[#allocation4 + $0x38] sm:$0xff] %vm1591, %v1590
        %v1600 = vpack.c.bf16 %v1530, %v1528
        %v1601 = vpack.c.bf16 %v1534, %v1532
        %v1602 = vpack.c.bf16 %v1538, %v1536
        %v1603 = vpack.c.bf16 %v1542, %v1540
        %v1605 = vsel %vm1422, %v1600, 0
        %1607 = vmatprep.subr.bf16.mxu0 0
        %1608 = vmatpush1.bf16.msra.mxu0 0
        %1609 = vmatprep.subr.bf16.mxu0 0
        %1610 = vmatpush1.bf16.msra.mxu0 0
        %1611 = vmatprep.subr.bf16.mxu0 0
        %1612 = vmatpush1.bf16.msra.mxu0 0
        %1613 = vmatprep.subr.bf16.mxu0 0
        %1614 = vmatpush1.bf16.msra.mxu0 0
        %1615 = vmatprep.subr.bf16.mxu0 0
        %1616 = vmatpush1.bf16.msra.mxu0 0
        %1617 = vmatprep.subr.bf16.mxu0 0
        %1618 = vmatpush1.bf16.msra.mxu0 0
        %1619 = vmatprep.subr.bf16.mxu0 0
        %1620 = vmatpush1.bf16.msra.mxu0 0
        %1621 = vmatprep.subr.bf16.mxu0 0
        %1622 = vmatpush1.bf16.msra.mxu0 %v1172
        %1623 = vmatprep.subr.bf16.mxu0 0
        %1624 = vmatpush2.bf16.msra.mxu0 0
        %1625 = vmatprep.subr.bf16.mxu0 0
        %1626 = vmatpush2.bf16.msra.mxu0 0
        %1627 = vmatprep.subr.bf16.mxu0 0
        %1628 = vmatpush2.bf16.msra.mxu0 0
        %1629 = vmatprep.subr.bf16.mxu0 0
        %1630 = vmatpush2.bf16.msra.mxu0 0
        %1631 = vmatprep.subr.bf16.mxu0 0
        %1632 = vmatpush2.bf16.msra.mxu0 0
        %1633 = vmatprep.subr.bf16.mxu0 0
        %1634 = vmatpush2.bf16.msra.mxu0 0
        %1635 = vmatprep.subr.bf16.mxu0 0
        %1636 = vmatpush2.bf16.msra.mxu0 0
        %1637 = vmatprep.subr.bf16.mxu0 0
        %1638 = vmatpush2.bf16.msra.mxu0 0
        %1639 = vmatprep.mubr.bf16.mxu0 0
        %1640 = vmatmul.mubr.bf16.gmra.mxu0 %v1605
        %v1641 = vpop.f32.mrf.mxu0
        %v1642 = vadd.f32 0.0, %v1641
        %v1643 = vpop.f32.mrf.mxu0
        %v1644 = vpop.f32.mrf.mxu0
        %v1645 = vadd.f32 0.0, %v1644
        %v1646 = vpop.f32.mrf.mxu0
        %1647 = vdwg.mxu0
        %v1649 = vsel %vm1422, %v1601, 0
        %1651 = vmatprep.subr.bf16.mxu0 0
        %1652 = vmatpush1.bf16.msra.mxu0 0
        %1653 = vmatprep.subr.bf16.mxu0 0
        %1654 = vmatpush1.bf16.msra.mxu0 0
        %1655 = vmatprep.subr.bf16.mxu0 0
        %1656 = vmatpush1.bf16.msra.mxu0 0
        %1657 = vmatprep.subr.bf16.mxu0 0
        %1658 = vmatpush1.bf16.msra.mxu0 0
        %1659 = vmatprep.subr.bf16.mxu0 0
        %1660 = vmatpush1.bf16.msra.mxu0 0
        %1661 = vmatprep.subr.bf16.mxu0 0
        %1662 = vmatpush1.bf16.msra.mxu0 0
        %1663 = vmatprep.subr.bf16.mxu0 0
        %1664 = vmatpush1.bf16.msra.mxu0 0
        %1665 = vmatprep.subr.bf16.mxu0 0
        %1666 = vmatpush1.bf16.msra.mxu0 %v1173
        %1667 = vmatprep.subr.bf16.mxu0 0
        %1668 = vmatpush2.bf16.msra.mxu0 0
        %1669 = vmatprep.subr.bf16.mxu0 0
        %1670 = vmatpush2.bf16.msra.mxu0 0
        %1671 = vmatprep.subr.bf16.mxu0 0
        %1672 = vmatpush2.bf16.msra.mxu0 0
        %1673 = vmatprep.subr.bf16.mxu0 0
        %1674 = vmatpush2.bf16.msra.mxu0 0
        %1675 = vmatprep.subr.bf16.mxu0 0
        %1676 = vmatpush2.bf16.msra.mxu0 0
        %1677 = vmatprep.subr.bf16.mxu0 0
        %1678 = vmatpush2.bf16.msra.mxu0 0
        %1679 = vmatprep.subr.bf16.mxu0 0
        %1680 = vmatpush2.bf16.msra.mxu0 0
        %1681 = vmatprep.subr.bf16.mxu0 0
        %1682 = vmatpush2.bf16.msra.mxu0 0
        %1683 = vmatprep.mubr.bf16.mxu0 0
        %1684 = vmatmul.mubr.bf16.gmra.mxu0 %v1649
        %v1685 = vpop.f32.mrf.mxu0
        %v1686 = vadd.f32 0.0, %v1685
        %v1687 = vpop.f32.mrf.mxu0
        %v1688 = vpop.f32.mrf.mxu0
        %v1689 = vadd.f32 0.0, %v1688
        %v1690 = vpop.f32.mrf.mxu0
        %1691 = vdwg.mxu0
        %v1693 = vsel %vm1422, %v1602, 0
        %1695 = vmatprep.subr.bf16.mxu0 0
        %1696 = vmatpush1.bf16.msra.mxu0 0
        %1697 = vmatprep.subr.bf16.mxu0 0
        %1698 = vmatpush1.bf16.msra.mxu0 0
        %1699 = vmatprep.subr.bf16.mxu0 0
        %1700 = vmatpush1.bf16.msra.mxu0 0
        %1701 = vmatprep.subr.bf16.mxu0 0
        %1702 = vmatpush1.bf16.msra.mxu0 0
        %1703 = vmatprep.subr.bf16.mxu0 0
        %1704 = vmatpush1.bf16.msra.mxu0 0
        %1705 = vmatprep.subr.bf16.mxu0 0
        %1706 = vmatpush1.bf16.msra.mxu0 0
        %1707 = vmatprep.subr.bf16.mxu0 0
        %1708 = vmatpush1.bf16.msra.mxu0 0
        %1709 = vmatprep.subr.bf16.mxu0 0
        %1710 = vmatpush1.bf16.msra.mxu0 %v1174
        %1711 = vmatprep.subr.bf16.mxu0 0
        %1712 = vmatpush2.bf16.msra.mxu0 0
        %1713 = vmatprep.subr.bf16.mxu0 0
        %1714 = vmatpush2.bf16.msra.mxu0 0
        %1715 = vmatprep.subr.bf16.mxu0 0
        %1716 = vmatpush2.bf16.msra.mxu0 0
        %1717 = vmatprep.subr.bf16.mxu0 0
        %1718 = vmatpush2.bf16.msra.mxu0 0
        %1719 = vmatprep.subr.bf16.mxu0 0
        %1720 = vmatpush2.bf16.msra.mxu0 0
        %1721 = vmatprep.subr.bf16.mxu0 0
        %1722 = vmatpush2.bf16.msra.mxu0 0
        %1723 = vmatprep.subr.bf16.mxu0 0
        %1724 = vmatpush2.bf16.msra.mxu0 0
        %1725 = vmatprep.subr.bf16.mxu0 0
        %1726 = vmatpush2.bf16.msra.mxu0 0
        %1727 = vmatprep.mubr.bf16.mxu0 0
        %1728 = vmatmul.mubr.bf16.gmra.mxu0 %v1693
        %v1729 = vpop.f32.mrf.mxu0
        %v1730 = vadd.f32 0.0, %v1729
        %v1731 = vpop.f32.mrf.mxu0
        %v1732 = vpop.f32.mrf.mxu0
        %v1733 = vadd.f32 0.0, %v1732
        %v1734 = vpop.f32.mrf.mxu0
        %1735 = vdwg.mxu0
        %v1737 = vsel %vm1422, %v1603, 0
        %1739 = vmatprep.subr.bf16.mxu0 0
        %1740 = vmatpush1.bf16.msra.mxu0 0
        %1741 = vmatprep.subr.bf16.mxu0 0
        %1742 = vmatpush1.bf16.msra.mxu0 0
        %1743 = vmatprep.subr.bf16.mxu0 0
        %1744 = vmatpush1.bf16.msra.mxu0 0
        %1745 = vmatprep.subr.bf16.mxu0 0
        %1746 = vmatpush1.bf16.msra.mxu0 0
        %1747 = vmatprep.subr.bf16.mxu0 0
        %1748 = vmatpush1.bf16.msra.mxu0 0
        %1749 = vmatprep.subr.bf16.mxu0 0
        %1750 = vmatpush1.bf16.msra.mxu0 0
        %1751 = vmatprep.subr.bf16.mxu0 0
        %1752 = vmatpush1.bf16.msra.mxu0 0
        %1753 = vmatprep.subr.bf16.mxu0 0
        %1754 = vmatpush1.bf16.msra.mxu0 %v1175
        %1755 = vmatprep.subr.bf16.mxu0 0
        %1756 = vmatpush2.bf16.msra.mxu0 0
        %1757 = vmatprep.subr.bf16.mxu0 0
        %1758 = vmatpush2.bf16.msra.mxu0 0
        %1759 = vmatprep.subr.bf16.mxu0 0
        %1760 = vmatpush2.bf16.msra.mxu0 0
        %1761 = vmatprep.subr.bf16.mxu0 0
        %1762 = vmatpush2.bf16.msra.mxu0 0
        %1763 = vmatprep.subr.bf16.mxu0 0
        %1764 = vmatpush2.bf16.msra.mxu0 0
        %1765 = vmatprep.subr.bf16.mxu0 0
        %1766 = vmatpush2.bf16.msra.mxu0 0
        %1767 = vmatprep.subr.bf16.mxu0 0
        %1768 = vmatpush2.bf16.msra.mxu0 0
        %1769 = vmatprep.subr.bf16.mxu0 0
        %1770 = vmatpush2.bf16.msra.mxu0 0
        %1771 = vmatprep.mubr.bf16.mxu0 0
        %1772 = vmatmul.mubr.bf16.gmra.mxu0 %v1737
        %v1773 = vpop.f32.mrf.mxu0
        %v1774 = vadd.f32 0.0, %v1773
        %v1775 = vpop.f32.mrf.mxu0
        %v1776 = vpop.f32.mrf.mxu0
        %v1777 = vadd.f32 0.0, %v1776
        %v1778 = vpop.f32.mrf.mxu0
        %1779 = vdwg.mxu0
        %v1780 = vld [vmem:[#allocation5] sm:$0xff]
        %v1781 = vld [vmem:[#allocation5 + $0x8] sm:$0xff]
        %v1782 = vld [vmem:[#allocation5 + $0x10] sm:$0xff]
        %v1783 = vld [vmem:[#allocation5 + $0x18] sm:$0xff]
        %v1784 = vld [vmem:[#allocation5 + $0x20] sm:$0xff]
        %v1785 = vld [vmem:[#allocation5 + $0x28] sm:$0xff]
        %v1786 = vld [vmem:[#allocation5 + $0x30] sm:$0xff]
        %v1787 = vld [vmem:[#allocation5 + $0x38] sm:$0xff]
        %1789 = vset.pattern.permute.xlu0 0
        %1790 = vperm.xlu0 %1789, %v1464
        %v1791 = vpop.permute.xlu0 %1790
        %1794 = vset.pattern.permute.xlu0 0
        %1795 = vperm.xlu0 %1794, %v1466
        %v1796 = vpop.permute.xlu0 %1795
        %1799 = vset.pattern.permute.xlu0 0
        %1800 = vperm.xlu0 %1799, %v1468
        %v1801 = vpop.permute.xlu0 %1800
        %1804 = vset.pattern.permute.xlu0 0
        %1805 = vperm.xlu0 %1804, %v1470
        %v1806 = vpop.permute.xlu0 %1805
        %1809 = vset.pattern.permute.xlu0 0
        %1810 = vperm.xlu0 %1809, %v1472
        %v1811 = vpop.permute.xlu0 %1810
        %1814 = vset.pattern.permute.xlu0 0
        %1815 = vperm.xlu0 %1814, %v1474
        %v1816 = vpop.permute.xlu0 %1815
        %1819 = vset.pattern.permute.xlu0 0
        %1820 = vperm.xlu0 %1819, %v1476
        %v1821 = vpop.permute.xlu0 %1820
        %1824 = vset.pattern.permute.xlu0 0
        %1825 = vperm.xlu0 %1824, %v1478
        %v1826 = vpop.permute.xlu0 %1825
        %v1828 = vmul.f32 %v1791, %v1780
        %v1829 = vmul.f32 %v1796, %v1781
        %v1830 = vmul.f32 %v1801, %v1782
        %v1831 = vmul.f32 %v1806, %v1783
        %v1832 = vmul.f32 %v1811, %v1784
        %v1833 = vmul.f32 %v1816, %v1785
        %v1834 = vmul.f32 %v1821, %v1786
        %v1835 = vmul.f32 %v1826, %v1787
        %v1836 = vadd.f32 %v1828, %v1642
        %v1837 = vadd.f32 %v1829, %v1645
        %v1838 = vadd.f32 %v1830, %v1686
        %v1839 = vadd.f32 %v1831, %v1689
        %v1840 = vadd.f32 %v1832, %v1730
        %v1841 = vadd.f32 %v1833, %v1733
        %v1842 = vadd.f32 %v1834, %v1774
        %v1843 = vadd.f32 %v1835, %v1777
        %1844 = vst.msk [vmem:[#allocation5] sm:$0xff] %vm1210, %v1836
        %1845 = vst.msk [vmem:[#allocation5 + $0x8] sm:$0xff] %vm1210, %v1837
        %1846 = vst.msk [vmem:[#allocation5 + $0x10] sm:$0xff] %vm1210, %v1838
        %1847 = vst.msk [vmem:[#allocation5 + $0x18] sm:$0xff] %vm1210, %v1839
        %1848 = vst.msk [vmem:[#allocation5 + $0x20] sm:$0xff] %vm1210, %v1840
        %1849 = vst.msk [vmem:[#allocation5 + $0x28] sm:$0xff] %vm1210, %v1841
        %1850 = vst.msk [vmem:[#allocation5 + $0x30] sm:$0xff] %vm1210, %v1842
        %1851 = vst.msk [vmem:[#allocation5 + $0x38] sm:$0xff] %vm1210, %v1843
        %1852 = vst.msk [vmem:[#allocation3] sm:$0xff] %vm1591, %v1447
        %1853 = vst.msk [vmem:[#allocation3 + $0x8] sm:$0xff] %vm1591, %v1448
        %1854 = vst.msk [vmem:[#allocation3 + $0x10] sm:$0xff] %vm1591, %v1449
        %1855 = vst.msk [vmem:[#allocation3 + $0x18] sm:$0xff] %vm1591, %v1450
        %1856 = vst.msk [vmem:[#allocation3 + $0x20] sm:$0xff] %vm1591, %v1451
        %1857 = vst.msk [vmem:[#allocation3 + $0x28] sm:$0xff] %vm1591, %v1452
        %1858 = vst.msk [vmem:[#allocation3 + $0x30] sm:$0xff] %vm1591, %v1453
        %1859 = vst.msk [vmem:[#allocation3 + $0x38] sm:$0xff] %vm1591, %v1454
        // Predicated region
        $region105: #{tpu_custom_call.1} parent=87 // pred_check
          %p1860 = pneg %p796
        $region106: #{tpu_custom_call.1} parent=87 // pred_check_branch
          %1862 = sbr.rel (%p1860) target = $region108
        $region107: #{tpu_custom_call.1} parent=87 // pred_region
          %v1863 = vld [vmem:[#allocation5] sm:$0xff]
          %v1864 = vld [vmem:[#allocation5 + $0x8] sm:$0xff]
          %v1865 = vld [vmem:[#allocation5 + $0x10] sm:$0xff]
          %v1866 = vld [vmem:[#allocation5 + $0x18] sm:$0xff]
          %v1867 = vld [vmem:[#allocation5 + $0x20] sm:$0xff]
          %v1868 = vld [vmem:[#allocation5 + $0x28] sm:$0xff]
          %v1869 = vld [vmem:[#allocation5 + $0x30] sm:$0xff]
          %v1870 = vld [vmem:[#allocation5 + $0x38] sm:$0xff]
          %v1871 = vld [vmem:[#allocation4] sm:$0xff]
          %v1872 = vld [vmem:[#allocation4 + $0x8] sm:$0xff]
          %v1873 = vld [vmem:[#allocation4 + $0x10] sm:$0xff]
          %v1874 = vld [vmem:[#allocation4 + $0x18] sm:$0xff]
          %v1875 = vld [vmem:[#allocation4 + $0x20] sm:$0xff]
          %v1876 = vld [vmem:[#allocation4 + $0x28] sm:$0xff]
          %v1877 = vld [vmem:[#allocation4 + $0x30] sm:$0xff]
          %v1878 = vld [vmem:[#allocation4 + $0x38] sm:$0xff]
          %v1879 = vrcp.pop %v1871
          %v1880 = vrcp.pop %v1872
          %v1881 = vrcp.pop %v1873
          %v1882 = vrcp.pop %v1874
          %v1883 = vrcp.pop %v1875
          %v1884 = vrcp.pop %v1876
          %v1885 = vrcp.pop %v1877
          %v1886 = vrcp.pop %v1878
          %1888 = vset.pattern.permute.xlu0 0
          %1889 = vperm.xlu0 %1888, %v1879
          %v1890 = vpop.permute.xlu0 %1889
          %1893 = vset.pattern.permute.xlu0 0
          %1894 = vperm.xlu0 %1893, %v1880
          %v1895 = vpop.permute.xlu0 %1894
          %1898 = vset.pattern.permute.xlu0 0
          %1899 = vperm.xlu0 %1898, %v1881
          %v1900 = vpop.permute.xlu0 %1899
          %1903 = vset.pattern.permute.xlu0 0
          %1904 = vperm.xlu0 %1903, %v1882
          %v1905 = vpop.permute.xlu0 %1904
          %1908 = vset.pattern.permute.xlu0 0
          %1909 = vperm.xlu0 %1908, %v1883
          %v1910 = vpop.permute.xlu0 %1909
          %1913 = vset.pattern.permute.xlu0 0
          %1914 = vperm.xlu0 %1913, %v1884
          %v1915 = vpop.permute.xlu0 %1914
          %1918 = vset.pattern.permute.xlu0 0
          %1919 = vperm.xlu0 %1918, %v1885
          %v1920 = vpop.permute.xlu0 %1919
          %1923 = vset.pattern.permute.xlu0 0
          %1924 = vperm.xlu0 %1923, %v1886
          %v1925 = vpop.permute.xlu0 %1924
          %v1927 = vmul.f32 %v1863, %v1890
          %v1928 = vmul.f32 %v1864, %v1895
          %v1929 = vmul.f32 %v1865, %v1900
          %v1930 = vmul.f32 %v1866, %v1905
          %v1931 = vmul.f32 %v1867, %v1910
          %v1932 = vmul.f32 %v1868, %v1915
          %v1933 = vmul.f32 %v1869, %v1920
          %v1934 = vmul.f32 %v1870, %v1925
          %v1935 = vpack.c.bf16 %v1928, %v1927
          %v1936 = vpack.c.bf16 %v1930, %v1929
          %v1937 = vpack.c.bf16 %v1932, %v1931
          %v1938 = vpack.c.bf16 %v1934, %v1933
          %v1939 = vld [vmem:[%s9] sm:$0xf]
          %v1940 = vld [vmem:[%s9 + $0x4] sm:$0x3]
          %v1941 = vld [vmem:[%s9 + $0x8] sm:$0xf]
          %v1942 = vld [vmem:[%s9 + $0xc] sm:$0x3]
          %v1943 = vld [vmem:[%s9 + $0x10] sm:$0xf]
          %v1944 = vld [vmem:[%s9 + $0x14] sm:$0x3]
          %v1945 = vld [vmem:[%s9 + $0x18] sm:$0xf]
          %v1946 = vld [vmem:[%s9 + $0x1c] sm:$0x3]
          %v1949 = vunpack.c.l.b16 %v1939
          %v1950 = vunpack.c.l.b16 %v1940
          %v1951 = vpack.c.b16 %v1950, %v1949
          %v1953 = vsel %vm1210, %v1935, 0
          %vm1955 = vcmask 1045504
          %v1957 = vsel %vm1955, %v1951, 0
          %1959 = vmatprep.subr.bf16.mxu0 0
          %1960 = vmatpush1.bf16.msra.mxu0 0
          %1961 = vmatprep.subr.bf16.mxu0 0
          %1962 = vmatpush1.bf16.msra.mxu0 0
          %1963 = vmatprep.subr.bf16.mxu0 0
          %1964 = vmatpush1.bf16.msra.mxu0 0
          %1965 = vmatprep.subr.bf16.mxu0 0
          %1966 = vmatpush1.bf16.msra.mxu0 0
          %1967 = vmatprep.subr.bf16.mxu0 0
          %1968 = vmatpush1.bf16.msra.mxu0 0
          %1969 = vmatprep.subr.bf16.mxu0 0
          %1970 = vmatpush1.bf16.msra.mxu0 0
          %1971 = vmatprep.subr.bf16.mxu0 0
          %1972 = vmatpush1.bf16.msra.mxu0 0
          %1973 = vmatprep.subr.bf16.mxu0 0
          %1974 = vmatpush1.bf16.msra.mxu0 %v1957
          %1975 = vmatprep.subr.bf16.mxu0 0
          %1976 = vmatpush2.bf16.msra.mxu0 0
          %1977 = vmatprep.subr.bf16.mxu0 0
          %1978 = vmatpush2.bf16.msra.mxu0 0
          %1979 = vmatprep.subr.bf16.mxu0 0
          %1980 = vmatpush2.bf16.msra.mxu0 0
          %1981 = vmatprep.subr.bf16.mxu0 0
          %1982 = vmatpush2.bf16.msra.mxu0 0
          %1983 = vmatprep.subr.bf16.mxu0 0
          %1984 = vmatpush2.bf16.msra.mxu0 0
          %1985 = vmatprep.subr.bf16.mxu0 0
          %1986 = vmatpush2.bf16.msra.mxu0 0
          %1987 = vmatprep.subr.bf16.mxu0 0
          %1988 = vmatpush2.bf16.msra.mxu0 0
          %1989 = vmatprep.subr.bf16.mxu0 0
          %1990 = vmatpush2.bf16.msra.mxu0 0
          %1991 = vmatprep.mubr.bf16.mxu0 0
          %1992 = vmatmul.mubr.bf16.gmra.mxu0 %v1953
          %v1993 = vpop.f32.mrf.mxu0
          %v1994 = vadd.f32 0.0, %v1993
          %v1995 = vpop.f32.mrf.mxu0
          %v1996 = vpop.f32.mrf.mxu0
          %v1997 = vadd.f32 0.0, %v1996
          %v1998 = vpop.f32.mrf.mxu0
          %1999 = vdwg.mxu0
          %v2002 = vunpack.c.l.b16 %v1941
          %v2003 = vunpack.c.l.b16 %v1942
          %v2004 = vpack.c.b16 %v2003, %v2002
          %v2006 = vsel %vm1210, %v1936, 0
          %v2009 = vsel %vm1955, %v2004, 0
          %2011 = vmatprep.subr.bf16.mxu0 0
          %2012 = vmatpush1.bf16.msra.mxu0 0
          %2013 = vmatprep.subr.bf16.mxu0 0
          %2014 = vmatpush1.bf16.msra.mxu0 0
          %2015 = vmatprep.subr.bf16.mxu0 0
          %2016 = vmatpush1.bf16.msra.mxu0 0
          %2017 = vmatprep.subr.bf16.mxu0 0
          %2018 = vmatpush1.bf16.msra.mxu0 0
          %2019 = vmatprep.subr.bf16.mxu0 0
          %2020 = vmatpush1.bf16.msra.mxu0 0
          %2021 = vmatprep.subr.bf16.mxu0 0
          %2022 = vmatpush1.bf16.msra.mxu0 0
          %2023 = vmatprep.subr.bf16.mxu0 0
          %2024 = vmatpush1.bf16.msra.mxu0 0
          %2025 = vmatprep.subr.bf16.mxu0 0
          %2026 = vmatpush1.bf16.msra.mxu0 %v2009
          %2027 = vmatprep.subr.bf16.mxu0 0
          %2028 = vmatpush2.bf16.msra.mxu0 0
          %2029 = vmatprep.subr.bf16.mxu0 0
          %2030 = vmatpush2.bf16.msra.mxu0 0
          %2031 = vmatprep.subr.bf16.mxu0 0
          %2032 = vmatpush2.bf16.msra.mxu0 0
          %2033 = vmatprep.subr.bf16.mxu0 0
          %2034 = vmatpush2.bf16.msra.mxu0 0
          %2035 = vmatprep.subr.bf16.mxu0 0
          %2036 = vmatpush2.bf16.msra.mxu0 0
          %2037 = vmatprep.subr.bf16.mxu0 0
          %2038 = vmatpush2.bf16.msra.mxu0 0
          %2039 = vmatprep.subr.bf16.mxu0 0
          %2040 = vmatpush2.bf16.msra.mxu0 0
          %2041 = vmatprep.subr.bf16.mxu0 0
          %2042 = vmatpush2.bf16.msra.mxu0 0
          %2043 = vmatprep.mubr.bf16.mxu0 0
          %2044 = vmatmul.mubr.bf16.gmra.mxu0 %v2006
          %v2045 = vpop.f32.mrf.mxu0
          %v2046 = vadd.f32 0.0, %v2045
          %v2047 = vpop.f32.mrf.mxu0
          %v2048 = vpop.f32.mrf.mxu0
          %v2049 = vadd.f32 0.0, %v2048
          %v2050 = vpop.f32.mrf.mxu0
          %2051 = vdwg.mxu0
          %v2054 = vunpack.c.l.b16 %v1943
          %v2055 = vunpack.c.l.b16 %v1944
          %v2056 = vpack.c.b16 %v2055, %v2054
          %v2058 = vsel %vm1210, %v1937, 0
          %v2061 = vsel %vm1955, %v2056, 0
          %2063 = vmatprep.subr.bf16.mxu0 0
          %2064 = vmatpush1.bf16.msra.mxu0 0
          %2065 = vmatprep.subr.bf16.mxu0 0
          %2066 = vmatpush1.bf16.msra.mxu0 0
          %2067 = vmatprep.subr.bf16.mxu0 0
          %2068 = vmatpush1.bf16.msra.mxu0 0
          %2069 = vmatprep.subr.bf16.mxu0 0
          %2070 = vmatpush1.bf16.msra.mxu0 0
          %2071 = vmatprep.subr.bf16.mxu0 0
          %2072 = vmatpush1.bf16.msra.mxu0 0
          %2073 = vmatprep.subr.bf16.mxu0 0
          %2074 = vmatpush1.bf16.msra.mxu0 0
          %2075 = vmatprep.subr.bf16.mxu0 0
          %2076 = vmatpush1.bf16.msra.mxu0 0
          %2077 = vmatprep.subr.bf16.mxu0 0
          %2078 = vmatpush1.bf16.msra.mxu0 %v2061
          %2079 = vmatprep.subr.bf16.mxu0 0
          %2080 = vmatpush2.bf16.msra.mxu0 0
          %2081 = vmatprep.subr.bf16.mxu0 0
          %2082 = vmatpush2.bf16.msra.mxu0 0
          %2083 = vmatprep.subr.bf16.mxu0 0
          %2084 = vmatpush2.bf16.msra.mxu0 0
          %2085 = vmatprep.subr.bf16.mxu0 0
          %2086 = vmatpush2.bf16.msra.mxu0 0
          %2087 = vmatprep.subr.bf16.mxu0 0
          %2088 = vmatpush2.bf16.msra.mxu0 0
          %2089 = vmatprep.subr.bf16.mxu0 0
          %2090 = vmatpush2.bf16.msra.mxu0 0
          %2091 = vmatprep.subr.bf16.mxu0 0
          %2092 = vmatpush2.bf16.msra.mxu0 0
          %2093 = vmatprep.subr.bf16.mxu0 0
          %2094 = vmatpush2.bf16.msra.mxu0 0
          %2095 = vmatprep.mubr.bf16.mxu0 0
          %2096 = vmatmul.mubr.bf16.gmra.mxu0 %v2058
          %v2097 = vpop.f32.mrf.mxu0
          %v2098 = vadd.f32 0.0, %v2097
          %v2099 = vpop.f32.mrf.mxu0
          %v2100 = vpop.f32.mrf.mxu0
          %v2101 = vadd.f32 0.0, %v2100
          %v2102 = vpop.f32.mrf.mxu0
          %2103 = vdwg.mxu0
          %v2106 = vunpack.c.l.b16 %v1945
          %v2107 = vunpack.c.l.b16 %v1946
          %v2108 = vpack.c.b16 %v2107, %v2106
          %v2110 = vsel %vm1210, %v1938, 0
          %v2113 = vsel %vm1955, %v2108, 0
          %2115 = vmatprep.subr.bf16.mxu0 0
          %2116 = vmatpush1.bf16.msra.mxu0 0
          %2117 = vmatprep.subr.bf16.mxu0 0
          %2118 = vmatpush1.bf16.msra.mxu0 0
          %2119 = vmatprep.subr.bf16.mxu0 0
          %2120 = vmatpush1.bf16.msra.mxu0 0
          %2121 = vmatprep.subr.bf16.mxu0 0
          %2122 = vmatpush1.bf16.msra.mxu0 0
          %2123 = vmatprep.subr.bf16.mxu0 0
          %2124 = vmatpush1.bf16.msra.mxu0 0
          %2125 = vmatprep.subr.bf16.mxu0 0
          %2126 = vmatpush1.bf16.msra.mxu0 0
          %2127 = vmatprep.subr.bf16.mxu0 0
          %2128 = vmatpush1.bf16.msra.mxu0 0
          %2129 = vmatprep.subr.bf16.mxu0 0
          %2130 = vmatpush1.bf16.msra.mxu0 %v2113
          %2131 = vmatprep.subr.bf16.mxu0 0
          %2132 = vmatpush2.bf16.msra.mxu0 0
          %2133 = vmatprep.subr.bf16.mxu0 0
          %2134 = vmatpush2.bf16.msra.mxu0 0
          %2135 = vmatprep.subr.bf16.mxu0 0
          %2136 = vmatpush2.bf16.msra.mxu0 0
          %2137 = vmatprep.subr.bf16.mxu0 0
          %2138 = vmatpush2.bf16.msra.mxu0 0
          %2139 = vmatprep.subr.bf16.mxu0 0
          %2140 = vmatpush2.bf16.msra.mxu0 0
          %2141 = vmatprep.subr.bf16.mxu0 0
          %2142 = vmatpush2.bf16.msra.mxu0 0
          %2143 = vmatprep.subr.bf16.mxu0 0
          %2144 = vmatpush2.bf16.msra.mxu0 0
          %2145 = vmatprep.subr.bf16.mxu0 0
          %2146 = vmatpush2.bf16.msra.mxu0 0
          %2147 = vmatprep.mubr.bf16.mxu0 0
          %2148 = vmatmul.mubr.bf16.gmra.mxu0 %v2110
          %v2149 = vpop.f32.mrf.mxu0
          %v2150 = vadd.f32 0.0, %v2149
          %v2151 = vpop.f32.mrf.mxu0
          %v2152 = vpop.f32.mrf.mxu0
          %v2153 = vadd.f32 0.0, %v2152
          %v2154 = vpop.f32.mrf.mxu0
          %2155 = vdwg.mxu0
          %v2156 = vsel %vm999, %v1994, 0.0
          %v2157 = vsel %vm999, %v2046, 0.0
          %v2158 = vadd.f32 %v2156, %v2157
          %v2159 = vsel %vm999, %v2098, 0.0
          %v2160 = vadd.f32 %v2158, %v2159
          %v2161 = vsel %vm999, %v2150, 0.0
          %v2162 = vadd.f32 %v2160, %v2161
          %v2163 = vsel %vm999, %v1997, 0.0
          %v2164 = vsel %vm999, %v2049, 0.0
          %v2165 = vadd.f32 %v2163, %v2164
          %v2166 = vsel %vm999, %v2101, 0.0
          %v2167 = vadd.f32 %v2165, %v2166
          %v2168 = vsel %vm999, %v2153, 0.0
          %v2169 = vadd.f32 %v2167, %v2168
          %v2170 = vsel %vm999, %v2162, 0.0
          %2171 = vadd.xlane.f32.xlu0 %v2170
          %v2172 = vpop.xlane.xlu0 %2171
          %v2173 = vsel %vm999, %v2169, 0.0
          %2174 = vadd.xlane.f32.xlu0 %v2173
          %v2175 = vpop.xlane.xlu0 %2174
          %v2176 = vrcp.pop 48.0
          %v2177 = vmul.f32 %v2172, %v2176
          %v2178 = vmul.f32 %v2175, %v2176
          %v2179 = vmul.f32 %v2162, %v2162
          %v2180 = vmul.f32 %v2169, %v2169
          %v2181 = vsel %vm999, %v2179, 0.0
          %2182 = vadd.xlane.f32.xlu0 %v2181
          %v2183 = vpop.xlane.xlu0 %2182
          %v2184 = vsel %vm999, %v2180, 0.0
          %2185 = vadd.xlane.f32.xlu0 %v2184
          %v2186 = vpop.xlane.xlu0 %2185
          %v2187 = vmul.f32 %v2183, %v2176
          %v2188 = vmul.f32 %v2186, %v2176
          %v2189 = vmul.f32 %v2177, %v2177
          %v2190 = vmul.f32 %v2178, %v2178
          %v2191 = vsub.f32 %v2187, %v2189
          %v2192 = vsub.f32 %v2188, %v2190
          %v2193 = vsub.f32 %v2162, %v2177
          %v2194 = vsub.f32 %v2169, %v2178
          %v2195 = vadd.f32 %v2191, 1e-05
          %v2196 = vadd.f32 %v2192, 1e-05
          %v2197 = vrsqrt.pop %v2195
          %v2198 = vrsqrt.pop %v2196
          %v2199 = vmul.f32 %v2193, %v2197
          %v2200 = vmul.f32 %v2194, %v2198
          %v2201 = vld [vmem:[%s13] sm:$0x1]
          %v2203 = vlaneseq
          %v2204 = vshrl.u32 %v2203, 7
          %v2205 = vsub.s32 0, %v2204
          %v2206 = vrot.slane %v2201, %v2205
          %v2208 = vmul.f32 %v2199, %v2206
          %v2209 = vmul.f32 %v2200, %v2206
          %v2210 = vld [vmem:[%s14] sm:$0x1]
          %v2212 = vlaneseq
          %v2213 = vshrl.u32 %v2212, 7
          %v2214 = vsub.s32 0, %v2213
          %v2215 = vrot.slane %v2210, %v2214
          %v2217 = vadd.f32 %v2208, %v2215
          %v2218 = vadd.f32 %v2209, %v2215
          %v2219 = vld [vmem:[%s752] sm:$0xff]
          %v2220 = vld [vmem:[%s752 + $0x8] sm:$0xff]
          %v2221 = vpack.c.bf16 %v2220, %v2219
          %v2222 = vld [vmem:[%s10] sm:$0xf]
          %v2223 = vld [vmem:[%s10 + $0x4] sm:$0xf]
          %v2224 = vld [vmem:[%s10 + $0x8] sm:$0xf]
          %v2225 = vld [vmem:[%s10 + $0xc] sm:$0xf]
          %v2226 = vld [vmem:[%s10 + $0x10] sm:$0xf]
          %v2227 = vld [vmem:[%s10 + $0x14] sm:$0xf]
          %v2228 = vld [vmem:[%s10 + $0x18] sm:$0xf]
          %v2229 = vld [vmem:[%s10 + $0x1c] sm:$0xf]
          %v2230 = vld [vmem:[%s10 + $0x20] sm:$0xf]
          %v2231 = vld [vmem:[%s10 + $0x24] sm:$0xf]
          %v2232 = vld [vmem:[%s10 + $0x28] sm:$0xf]
          %v2233 = vld [vmem:[%s10 + $0x2c] sm:$0xf]
          %v2234 = vpack.c.bf16 %v2218, %v2217
          %v2235 = vld [vmem:[%s11] sm:$0xf]
          %v2236 = vld [vmem:[%s11 + $0x4] sm:$0xf]
          %v2237 = vld [vmem:[%s11 + $0x8] sm:$0xf]
          %v2238 = vld [vmem:[%s11 + $0xc] sm:$0xf]
          %v2239 = vld [vmem:[%s11 + $0x10] sm:$0xf]
          %v2240 = vld [vmem:[%s11 + $0x14] sm:$0xf]
          %v2241 = vld [vmem:[%s11 + $0x18] sm:$0xf]
          %v2242 = vld [vmem:[%s11 + $0x1c] sm:$0xf]
          %v2243 = vld [vmem:[%s11 + $0x20] sm:$0xf]
          %v2244 = vld [vmem:[%s11 + $0x24] sm:$0xf]
          %v2245 = vld [vmem:[%s11 + $0x28] sm:$0xf]
          %v2246 = vld [vmem:[%s11 + $0x2c] sm:$0xf]
          %v2259 = vunpack.c.l.b16 %v2235
          %v2260 = vunpack.c.l.b16 %v2236
          %v2261 = vunpack.c.l.b16 %v2237
          %v2262 = vunpack.c.l.b16 %v2238
          %v2263 = vunpack.c.l.b16 %v2239
          %v2264 = vunpack.c.l.b16 %v2240
          %v2265 = vunpack.c.l.b16 %v2241
          %v2266 = vunpack.c.l.b16 %v2242
          %v2267 = vunpack.c.l.b16 %v2243
          %v2268 = vunpack.c.l.b16 %v2244
          %v2269 = vunpack.c.l.b16 %v2245
          %v2270 = vunpack.c.l.b16 %v2246
          %v2271 = vpack.c.b16 %v2260, %v2259
          %v2272 = vpack.c.b16 %v2262, %v2261
          %v2273 = vpack.c.b16 %v2264, %v2263
          %v2274 = vpack.c.b16 %v2266, %v2265
          %v2275 = vpack.c.b16 %v2268, %v2267
          %v2276 = vpack.c.b16 %v2270, %v2269
          %v2278 = vsel %vm999, %v2234, 0
          %v2281 = vsel %vm999, %v2271, 0
          %v2284 = vsel %vm999, %v2272, 0
          %v2287 = vsel %vm999, %v2273, 0
          %v2290 = vsel %vm999, %v2274, 0
          %v2293 = vsel %vm999, %v2275, 0
          %v2296 = vsel %vm999, %v2276, 0
          %2298 = vmatprep.subr.bf16.mxu0 0
          %2299 = vmatpush1.bf16.xpose.msra.mxu0 0
          %2300 = vmatprep.subr.bf16.mxu0 0
          %2301 = vmatpush1.bf16.xpose.msra.mxu0 0
          %2302 = vmatprep.subr.bf16.mxu0 0
          %2303 = vmatpush1.bf16.xpose.msra.mxu0 %v2296
          %2304 = vmatprep.subr.bf16.mxu0 0
          %2305 = vmatpush1.bf16.xpose.msra.mxu0 %v2293
          %2306 = vmatprep.subr.bf16.mxu0 0
          %2307 = vmatpush1.bf16.xpose.msra.mxu0 %v2290
          %2308 = vmatprep.subr.bf16.mxu0 0
          %2309 = vmatpush1.bf16.xpose.msra.mxu0 %v2287
          %2310 = vmatprep.subr.bf16.mxu0 0
          %2311 = vmatpush1.bf16.xpose.msra.mxu0 %v2284
          %2312 = vmatprep.subr.bf16.mxu0 0
          %2313 = vmatpush1.bf16.xpose.msra.mxu0 %v2281
          %2314 = vmatprep.subr.bf16.mxu0 0
          %2315 = vmatpush2.bf16.xpose.msra.mxu0 0
          %2316 = vmatprep.subr.bf16.mxu0 0
          %2317 = vmatpush2.bf16.xpose.msra.mxu0 0
          %2318 = vmatprep.subr.bf16.mxu0 0
          %2319 = vmatpush2.bf16.xpose.msra.mxu0 0
          %2320 = vmatprep.subr.bf16.mxu0 0
          %2321 = vmatpush2.bf16.xpose.msra.mxu0 0
          %2322 = vmatprep.subr.bf16.mxu0 0
          %2323 = vmatpush2.bf16.xpose.msra.mxu0 0
          %2324 = vmatprep.subr.bf16.mxu0 0
          %2325 = vmatpush2.bf16.xpose.msra.mxu0 0
          %2326 = vmatprep.subr.bf16.mxu0 0
          %2327 = vmatpush2.bf16.xpose.msra.mxu0 0
          %2328 = vmatprep.subr.bf16.mxu0 0
          %2329 = vmatpush2.bf16.xpose.msra.mxu0 0
          %2330 = vmatprep.mubr.bf16.mxu0 0
          %2331 = vmatmul.mubr.bf16.gmra.mxu0 %v2278
          %v2332 = vpop.f32.mrf.mxu0
          %v2333 = vadd.f32 0.0, %v2332
          %v2334 = vpop.f32.mrf.mxu0
          %v2335 = vpop.f32.mrf.mxu0
          %v2336 = vadd.f32 0.0, %v2335
          %v2337 = vpop.f32.mrf.mxu0
          %2338 = vdwg.mxu0
          %v2351 = vunpack.c.l.b16 %v2222
          %v2352 = vunpack.c.l.b16 %v2223
          %v2353 = vunpack.c.l.b16 %v2224
          %v2354 = vunpack.c.l.b16 %v2225
          %v2355 = vunpack.c.l.b16 %v2226
          %v2356 = vunpack.c.l.b16 %v2227
          %v2357 = vunpack.c.l.b16 %v2228
          %v2358 = vunpack.c.l.b16 %v2229
          %v2359 = vunpack.c.l.b16 %v2230
          %v2360 = vunpack.c.l.b16 %v2231
          %v2361 = vunpack.c.l.b16 %v2232
          %v2362 = vunpack.c.l.b16 %v2233
          %v2363 = vpack.c.b16 %v2352, %v2351
          %v2364 = vpack.c.b16 %v2354, %v2353
          %v2365 = vpack.c.b16 %v2356, %v2355
          %v2366 = vpack.c.b16 %v2358, %v2357
          %v2367 = vpack.c.b16 %v2360, %v2359
          %v2368 = vpack.c.b16 %v2362, %v2361
          %v2370 = vsel %vm999, %v2221, 0
          %v2373 = vsel %vm999, %v2363, 0
          %v2376 = vsel %vm999, %v2364, 0
          %v2379 = vsel %vm999, %v2365, 0
          %v2382 = vsel %vm999, %v2366, 0
          %v2385 = vsel %vm999, %v2367, 0
          %v2388 = vsel %vm999, %v2368, 0
          %2390 = vmatprep.subr.bf16.mxu0 0
          %2391 = vmatpush1.bf16.xpose.msra.mxu0 0
          %2392 = vmatprep.subr.bf16.mxu0 0
          %2393 = vmatpush1.bf16.xpose.msra.mxu0 0
          %2394 = vmatprep.subr.bf16.mxu0 0
          %2395 = vmatpush1.bf16.xpose.msra.mxu0 %v2388
          %2396 = vmatprep.subr.bf16.mxu0 0
          %2397 = vmatpush1.bf16.xpose.msra.mxu0 %v2385
          %2398 = vmatprep.subr.bf16.mxu0 0
          %2399 = vmatpush1.bf16.xpose.msra.mxu0 %v2382
          %2400 = vmatprep.subr.bf16.mxu0 0
          %2401 = vmatpush1.bf16.xpose.msra.mxu0 %v2379
          %2402 = vmatprep.subr.bf16.mxu0 0
          %2403 = vmatpush1.bf16.xpose.msra.mxu0 %v2376
          %2404 = vmatprep.subr.bf16.mxu0 0
          %2405 = vmatpush1.bf16.xpose.msra.mxu0 %v2373
          %2406 = vmatprep.subr.bf16.mxu0 0
          %2407 = vmatpush2.bf16.xpose.msra.mxu0 0
          %2408 = vmatprep.subr.bf16.mxu0 0
          %2409 = vmatpush2.bf16.xpose.msra.mxu0 0
          %2410 = vmatprep.subr.bf16.mxu0 0
          %2411 = vmatpush2.bf16.xpose.msra.mxu0 0
          %2412 = vmatprep.subr.bf16.mxu0 0
          %2413 = vmatpush2.bf16.xpose.msra.mxu0 0
          %2414 = vmatprep.subr.bf16.mxu0 0
          %2415 = vmatpush2.bf16.xpose.msra.mxu0 0
          %2416 = vmatprep.subr.bf16.mxu0 0
          %2417 = vmatpush2.bf16.xpose.msra.mxu0 0
          %2418 = vmatprep.subr.bf16.mxu0 0
          %2419 = vmatpush2.bf16.xpose.msra.mxu0 0
          %2420 = vmatprep.subr.bf16.mxu0 0
          %2421 = vmatpush2.bf16.xpose.msra.mxu0 0
          %2422 = vmatprep.mubr.bf16.mxu0 0
          %2423 = vmatmul.mubr.bf16.gmra.mxu0 %v2370
          %v2424 = vpop.f32.mrf.mxu0
          %v2425 = vadd.f32 %v2333, %v2424
          %v2426 = vpop.f32.mrf.mxu0
          %v2427 = vpop.f32.mrf.mxu0
          %v2428 = vadd.f32 %v2336, %v2427
          %v2429 = vpop.f32.mrf.mxu0
          %2430 = vdwg.mxu0
          %v2431 = vmax.f32 %v2425, 0.0
          %v2432 = vmax.f32 %v2428, 0.0
          %v2433 = vpack.c.bf16 %v2432, %v2431
          %v2434 = vld [vmem:[#allocation11] sm:$0xf]
          %v2435 = vld [vmem:[#allocation11 + $0x4] sm:$0xf]
          %v2436 = vld [vmem:[#allocation11 + $0x8] sm:$0xf]
          %v2437 = vld [vmem:[#allocation11 + $0xc] sm:$0xf]
          %v2438 = vld [vmem:[#allocation11 + $0x10] sm:$0xf]
          %v2439 = vld [vmem:[#allocation11 + $0x14] sm:$0xf]
          %v2446 = vunpack.c.l.b16 %v2434
          %v2447 = vunpack.c.l.b16 %v2435
          %v2448 = vunpack.c.l.b16 %v2436
          %v2449 = vunpack.c.l.b16 %v2437
          %v2450 = vunpack.c.l.b16 %v2438
          %v2451 = vunpack.c.l.b16 %v2439
          %v2452 = vpack.c.b16 %v2447, %v2446
          %v2453 = vpack.c.b16 %v2449, %v2448
          %v2454 = vpack.c.b16 %v2451, %v2450
          %vm2455 = vcmask 785408
          %v2457 = vsel %vm2455, %v2433, 0
          %v2460 = vsel %vm2455, %v2452, 0
          %v2463 = vsel %vm2455, %v2453, 0
          %v2466 = vsel %vm2455, %v2454, 0
          %2468 = vmatprep.subr.bf16.mxu0 0
          %2469 = vmatpush1.bf16.xpose.msra.mxu0 0
          %2470 = vmatprep.subr.bf16.mxu0 0
          %2471 = vmatpush1.bf16.xpose.msra.mxu0 0
          %2472 = vmatprep.subr.bf16.mxu0 0
          %2473 = vmatpush1.bf16.xpose.msra.mxu0 0
          %2474 = vmatprep.subr.bf16.mxu0 0
          %2475 = vmatpush1.bf16.xpose.msra.mxu0 0
          %2476 = vmatprep.subr.bf16.mxu0 0
          %2477 = vmatpush1.bf16.xpose.msra.mxu0 0
          %2478 = vmatprep.subr.bf16.mxu0 0
          %2479 = vmatpush1.bf16.xpose.msra.mxu0 %v2466
          %2480 = vmatprep.subr.bf16.mxu0 0
          %2481 = vmatpush1.bf16.xpose.msra.mxu0 %v2463
          %2482 = vmatprep.subr.bf16.mxu0 0
          %2483 = vmatpush1.bf16.xpose.msra.mxu0 %v2460
          %2484 = vmatprep.subr.bf16.mxu0 0
          %2485 = vmatpush2.bf16.xpose.msra.mxu0 0
          %2486 = vmatprep.subr.bf16.mxu0 0
          %2487 = vmatpush2.bf16.xpose.msra.mxu0 0
          %2488 = vmatprep.subr.bf16.mxu0 0
          %2489 = vmatpush2.bf16.xpose.msra.mxu0 0
          %2490 = vmatprep.subr.bf16.mxu0 0
          %2491 = vmatpush2.bf16.xpose.msra.mxu0 0
          %2492 = vmatprep.subr.bf16.mxu0 0
          %2493 = vmatpush2.bf16.xpose.msra.mxu0 0
          %2494 = vmatprep.subr.bf16.mxu0 0
          %2495 = vmatpush2.bf16.xpose.msra.mxu0 0
          %2496 = vmatprep.subr.bf16.mxu0 0
          %2497 = vmatpush2.bf16.xpose.msra.mxu0 0
          %2498 = vmatprep.subr.bf16.mxu0 0
          %2499 = vmatpush2.bf16.xpose.msra.mxu0 0
          %2500 = vmatprep.mubr.bf16.mxu0 0
          %2501 = vmatmul.mubr.bf16.gmra.mxu0 %v2457
          %v2502 = vpop.f32.mrf.mxu0
          %v2503 = vadd.f32 0.0, %v2502
          %v2504 = vpop.f32.mrf.mxu0
          %v2505 = vpop.f32.mrf.mxu0
          %v2506 = vadd.f32 0.0, %v2505
          %v2507 = vpop.f32.mrf.mxu0
          %2508 = vdwg.mxu0
          %v2509 = vsel %vm999, %v2503, 0.0
          %2510 = vadd.xlane.f32.xlu0 %v2509
          %v2511 = vpop.xlane.xlu0 %2510
          %v2512 = vsel %vm999, %v2506, 0.0
          %2513 = vadd.xlane.f32.xlu0 %v2512
          %v2514 = vpop.xlane.xlu0 %2513
          %v2515 = vmul.f32 %v2511, %v2176
          %v2516 = vmul.f32 %v2514, %v2176
          %v2517 = vmul.f32 %v2503, %v2503
          %v2518 = vmul.f32 %v2506, %v2506
          %v2519 = vsel %vm999, %v2517, 0.0
          %2520 = vadd.xlane.f32.xlu0 %v2519
          %v2521 = vpop.xlane.xlu0 %2520
          %v2522 = vsel %vm999, %v2518, 0.0
          %2523 = vadd.xlane.f32.xlu0 %v2522
          %v2524 = vpop.xlane.xlu0 %2523
          %v2525 = vmul.f32 %v2521, %v2176
          %v2526 = vmul.f32 %v2524, %v2176
          %v2527 = vmul.f32 %v2515, %v2515
          %v2528 = vmul.f32 %v2516, %v2516
          %v2529 = vsub.f32 %v2525, %v2527
          %v2530 = vsub.f32 %v2526, %v2528
          %v2531 = vsub.f32 %v2503, %v2515
          %v2532 = vsub.f32 %v2506, %v2516
          %v2533 = vadd.f32 %v2529, 1e-05
          %v2534 = vadd.f32 %v2530, 1e-05
          %v2535 = vrsqrt.pop %v2533
          %v2536 = vrsqrt.pop %v2534
          %v2537 = vmul.f32 %v2531, %v2535
          %v2538 = vmul.f32 %v2532, %v2536
          %v2539 = vld [vmem:[%s15] sm:$0x1]
          %v2541 = vlaneseq
          %v2542 = vshrl.u32 %v2541, 7
          %v2543 = vsub.s32 0, %v2542
          %v2544 = vrot.slane %v2539, %v2543
          %v2546 = vmul.f32 %v2537, %v2544
          %v2547 = vmul.f32 %v2538, %v2544
          %v2548 = vld [vmem:[%s16] sm:$0x1]
          %v2550 = vlaneseq
          %v2551 = vshrl.u32 %v2550, 7
          %v2552 = vsub.s32 0, %v2551
          %v2553 = vrot.slane %v2548, %v2552
          %v2555 = vadd.f32 %v2546, %v2553
          %v2556 = vadd.f32 %v2547, %v2553
          %v2557 = vadd.f32 %v2219, %v2555
          %v2558 = vadd.f32 %v2220, %v2556
          %2559 = vst.msk [vmem:[%s743] sm:$0xff] %vm999, %v2557
          %2560 = vst.msk [vmem:[%s743 + $0x8] sm:$0xff] %vm999, %v2558
        $region108: #{tpu_custom_call.1} parent=87 // pred_fallthru
          _
        %s2561 = sand.u32 %s463, 1
        %s2562 = scalar_lea.sflag [#allocation8], %s2561
        %s2563 = sand.u32 %s463, 1
        %s2564 = smul.addr %s2563, 16
        %s2565 = scalar_lea.vmem [#allocation12], %s2564
        // Predicated region
        $region109: #{tpu_custom_call.1} parent=87 // pred_check
          %p2566 = pneg %p473
        $region110: #{tpu_custom_call.1} parent=87 // pred_check_branch
          %2568 = sbr.rel (%p2566) target = $region112
        $region111: #{tpu_custom_call.1} parent=87 // pred_region
          %s2569 = smul.u32 2, %s41
          %s2571 = ssub.s32 256, 256
          %2572 = vsyncadd %s2562, %s2571
          %s2573 = smul.addr %s40, 2
          %s2574 = sadd.s32 %s2569, %s2573
          %s2575 = smul.addr %s2574, 128
          %s2576 = scalar_lea.hbm %s17, %s2575
          %s2577 = sshll.u32 %s2565, 4
          %s2578 = int_to_ptr.vmem [resolvable:$true] %s2577
          %2583 = dma.vmem_to_hbm [thread:$0]  %s2578, 256, %s2576, %s2562, 128, 128, 8
        $region112: #{tpu_custom_call.1} parent=87 // pred_fallthru
          _
      $region88: #{tpu_custom_call.1} parent=5 // pred_fallthru
        _
      %p2584 = scmp.le.s32.totalorder 2, %s30
      // Predicated region
      $region113: #{tpu_custom_call.1} parent=5 // pred_check
        %p2585 = pneg %p2584
      $region114: #{tpu_custom_call.1} parent=5 // pred_check_branch
        %2587 = sbr.rel (%p2585) target = $region116
      $region115: #{tpu_custom_call.1} parent=5 // pred_region
        %s2588 = ssub.s32 %s30, 2
        // Predicated region
        $region117: #{tpu_custom_call.1} parent=115 // pred_check
          %p2589 = pneg %p479
        $region118: #{tpu_custom_call.1} parent=115 // pred_check_branch
          %2591 = sbr.rel (%p2589) target = $region120
        $region119: #{tpu_custom_call.1} parent=115 // pred_region
          %s2592 = sand.u32 %s464, 1
          %s2593 = scalar_lea.sflag [#allocation8], %s2592
          %s2594 = sand.u32 %s464, 1
          %s2595 = smul.addr %s2594, 16
          %s2596 = scalar_lea.vmem [#allocation12], %s2595
          %2597 = dma.done %s2593, 256
        $region120: #{tpu_custom_call.1} parent=115 // pred_fallthru
          _
      $region116: #{tpu_custom_call.1} parent=5 // pred_fallthru
        _
    $region6: #{tpu_custom_call.1} parent=1 // loop_footer
      %s34 = sadd.s32 1, %s30
    $region7: #{tpu_custom_call.1} parent=1 // loop_footer_branch
      %29 = sbr.rel target = $region3
    $region8: #{tpu_custom_call.1} parent=1 // loop_exit
      _
    %2598 = vsyncpa [#allocation7], 1
    %s2599 = scalar_lea.sflag [#allocation7], 1
    %2600 = vsyncpa %s2599, 1
    %2601 = vsyncpa [#allocation10], 1
    %2602 = vsyncpa [#allocation8], 1
    %s2603 = scalar_lea.sflag [#allocation8], 1
    %2604 = vsyncpa %s2603, 1

</llo_original>
